<compile_context>
chip_gen: v5e
topology: v5e:2x2
jax: 0.10.0
libtpu: 0.0.40
codegen_flags: <defaults>
</compile_context>

<pallas_src>
import functools

import jax
import jax.numpy as jnp
from jax.experimental import pallas as pl
from jax.experimental.pallas import tpu as pltpu

# ---------------------------------------------------------------------------
# Model constants (match torch_nets.py; 28x28 input implied by N_FILTERS*8*8 flatten).
# ---------------------------------------------------------------------------
IM_CHANNELS = 1
N_FILTERS = 16
V_SIZE = 256
BS_SIZE = 256
IMG_HW = 28

VMEM_LIMIT = 32 * 1024 * 1024   # safe on v5e/v6e (128 MiB phys) and v7x (64 MiB phys)
TM_CONV = 2048                  # lane-dim tile for conv-style matmuls (multiple of 128)
TM_FC = 512                     # row tile for FC-style matmuls (multiple of 8)

DECONV1_CFG = dict(k=4, stride=2, pad=2)
DECONV2_CFG = dict(k=4, stride=2, pad=1)


def _round_up(x, m):
    return ((x + m - 1) // m) * m


def _apply_act(x, act):
    if act == "relu":
        return jnp.maximum(x, 0.0)
    if act == "sigmoid":
        return jax.nn.sigmoid(x)
    return x


# ---------------------------------------------------------------------------
# Pallas kernels
# ---------------------------------------------------------------------------
def _fc_mm_kernel(x_ref, w_ref, b_ref, o_ref, *, act):
    # (TM, K) @ (K, N) + (1, N); N lane-dense.
    acc = jnp.dot(x_ref[...], w_ref[...], preferred_element_type=jnp.float32)
    o_ref[...] = _apply_act(acc + b_ref[...], act).astype(o_ref.dtype)


def _enc_head_kernel(x_ref, w1_ref, b1_ref, w2_ref, b2_ref, o_ref):
    # Fused encoder FC + GRU input projection: relu(x@W1+b1) @ W2 + b2.
    v = jnp.dot(x_ref[...], w1_ref[...], preferred_element_type=jnp.float32) + b1_ref[...]
    v = jnp.maximum(v, 0.0).astype(jnp.bfloat16)
    o_ref[...] = (jnp.dot(v, w2_ref[...], preferred_element_type=jnp.float32)
                  + b2_ref[...]).astype(o_ref.dtype)


def _conv_mm_kernel(w_ref, p_ref, b_ref, o_ref, *, act):
    # (Cout, K) @ (K, TM) + (Cout, 1); TM (batch*spatial) lane-dense.
    acc = jnp.dot(w_ref[...], p_ref[...], preferred_element_type=jnp.float32)
    o_ref[...] = _apply_act(acc + b_ref[...], act).astype(o_ref.dtype)


def _gru_step_kernel(gx_ref, whh_ref, bhh_ref, o_ref, h_ref):
    # One time step per grid iteration; hidden state carried in VMEM scratch.
    # gx_ref: (1, Bp, 3H) f32 (x@W_ih^T + b_ih precomputed); whh_ref: (H, 3H) bf16 resident.
    t = pl.program_id(0)

    @pl.when(t == 0)
    def _():
        h_ref[...] = jnp.zeros_like(h_ref)

    H = h_ref.shape[1]
    gx = gx_ref[0]                                               # (Bp, 3H) f32
    h = h_ref[...]                                               # (Bp, H)  f32
    gh = jnp.dot(h.astype(jnp.bfloat16), whh_ref[...],
                 preferred_element_type=jnp.float32) + bhh_ref[...]
    # PyTorch gate order (r, z, n); n = tanh(gx_n + r * gh_n); gate math in f32.
    r = jax.nn.sigmoid(gx[:, 0:H] + gh[:, 0:H])
    z = jax.nn.sigmoid(gx[:, H:2 * H] + gh[:, H:2 * H])
    n = jnp.tanh(gx[:, 2 * H:3 * H] + r * gh[:, 2 * H:3 * H])
    h_new = (1.0 - z) * n + z * h
    h_ref[...] = h_new
    o_ref[0] = h_new.astype(o_ref.dtype)


# ---------------------------------------------------------------------------
# Pallas wrappers (M-tiled, weights resident in VMEM)
# ---------------------------------------------------------------------------
def fc_matmul(x, w_t, b_row, *, act, out_dtype, tm_max=TM_FC):
    """x: (M, K), w_t: (K, N) bf16, b_row: (1, N) f32 -> (M, N)."""
    M, K = x.shape
    N = w_t.shape[1]
    Mp = _round_up(max(M, 8), 8)
    if Mp <= tm_max:
        tm = Mp
    else:
        tm = tm_max
        Mp = _round_up(M, tm)
    xb = x.astype(jnp.bfloat16)
    if Mp != M:
        xb = jnp.pad(xb, ((0, Mp - M), (0, 0)))

    out = pl.pallas_call(
        functools.partial(_fc_mm_kernel, act=act),
        out_shape=jax.ShapeDtypeStruct((Mp, N), out_dtype),
        grid_spec=pltpu.PrefetchScalarGridSpec(
            num_scalar_prefetch=0,
            grid=(Mp // tm,),
            in_specs=[
                pl.BlockSpec((tm, K), lambda i: (i, 0)),
                pl.BlockSpec((K, N), lambda i: (0, 0)),   # weight resident
                pl.BlockSpec((1, N), lambda i: (0, 0)),
            ],
            out_specs=pl.BlockSpec((tm, N), lambda i: (i, 0)),
        ),
        compiler_params=pltpu.CompilerParams(
            dimension_semantics=("parallel",),
            vmem_limit_bytes=VMEM_LIMIT),
    )(xb, w_t, b_row)
    return out[:M]


def enc_head_matmul(x, w1, b1, w2, b2, *, tm_max=TM_FC):
    """relu(x@w1+b1)@w2 + b2 fused; x: (M, K1) -> (M, N2) f32."""
    M, K1 = x.shape
    N1 = w1.shape[1]
    N2 = w2.shape[1]
    Mp = _round_up(max(M, 8), 8)
    if Mp <= tm_max:
        tm = Mp
    else:
        tm = tm_max
        Mp = _round_up(M, tm)
    xb = x.astype(jnp.bfloat16)
    if Mp != M:
        xb = jnp.pad(xb, ((0, Mp - M), (0, 0)))

    out = pl.pallas_call(
        _enc_head_kernel,
        out_shape=jax.ShapeDtypeStruct((Mp, N2), jnp.float32),
        grid_spec=pltpu.PrefetchScalarGridSpec(
            num_scalar_prefetch=0,
            grid=(Mp // tm,),
            in_specs=[
                pl.BlockSpec((tm, K1), lambda i: (i, 0)),
                pl.BlockSpec((K1, N1), lambda i: (0, 0)),  # enc FC weight resident
                pl.BlockSpec((1, N1), lambda i: (0, 0)),
                pl.BlockSpec((N1, N2), lambda i: (0, 0)),  # GRU W_ih resident
                pl.BlockSpec((1, N2), lambda i: (0, 0)),
            ],
            out_specs=pl.BlockSpec((tm, N2), lambda i: (i, 0)),
        ),
        compiler_params=pltpu.CompilerParams(
            dimension_semantics=("parallel",),
            vmem_limit_bytes=VMEM_LIMIT),
    )(xb, w1, b1, w2, b2)
    return out[:M]


def conv_matmul(patches, w_mat, b_col, *, act, out_dtype, tm_max=TM_CONV):
    """patches: (K, M) bf16, w_mat: (Cout, K) bf16, b_col: (Cout, 1) f32 -> (Cout, M)."""
    K, M = patches.shape
    Cout = w_mat.shape[0]
    Mp = _round_up(max(M, 128), 128)
    if Mp <= tm_max:
        tm = Mp
    else:
        tm = tm_max
        Mp = _round_up(M, tm)
    pb = patches.astype(jnp.bfloat16)
    if Mp != M:
        pb = jnp.pad(pb, ((0, 0), (0, Mp - M)))

    out = pl.pallas_call(
        functools.partial(_conv_mm_kernel, act=act),
        out_shape=jax.ShapeDtypeStruct((Cout, Mp), out_dtype),
        grid_spec=pltpu.PrefetchScalarGridSpec(
            num_scalar_prefetch=0,
            grid=(Mp // tm,),
            in_specs=[
                pl.BlockSpec((Cout, K), lambda i: (0, 0)),   # weight resident
                pl.BlockSpec((K, tm), lambda i: (0, i)),
                pl.BlockSpec((Cout, 1), lambda i: (0, 0)),
            ],
            out_specs=pl.BlockSpec((Cout, tm), lambda i: (0, i)),
        ),
        compiler_params=pltpu.CompilerParams(
            dimension_semantics=("parallel",),
            vmem_limit_bytes=VMEM_LIMIT),
    )(w_mat, pb, b_col)
    return out[:, :M]


def gru_pallas(gx_seq, whh_t, bhh, H):
    """gx_seq: (T, Bp, 3H) f32; whh_t: (H, 3H) bf16; bhh: (1, 3H) f32 -> (T, Bp, H) f32."""
    T, Bp, threeH = gx_seq.shape
    return pl.pallas_call(
        _gru_step_kernel,
        out_shape=jax.ShapeDtypeStruct((T, Bp, H), jnp.float32),
        grid_spec=pltpu.PrefetchScalarGridSpec(
            num_scalar_prefetch=0,
            grid=(T,),
            in_specs=[
                pl.BlockSpec((1, Bp, threeH), lambda t: (t, 0, 0)),
                pl.BlockSpec((H, threeH), lambda t: (0, 0)),   # W_hh resident
                pl.BlockSpec((1, threeH), lambda t: (0, 0)),
            ],
            out_specs=pl.BlockSpec((1, Bp, H), lambda t: (t, 0, 0)),
            scratch_shapes=[pltpu.VMEM((Bp, H), jnp.float32)],
        ),
        compiler_params=pltpu.CompilerParams(
            dimension_semantics=("arbitrary",),    # sequential carry
            vmem_limit_bytes=VMEM_LIMIT),
    )(gx_seq, whh_t, bhh)


# ---------------------------------------------------------------------------
# JAX glue: im2col in (K, M) layout + stacked sub-pixel conv-transpose
# ---------------------------------------------------------------------------
def im2col_T(x, kh, kw, stride, pad, layout="NCHW"):
    """Returns (patches (C*kh*kw, N*OH*OW), OH, OW). Rows (C, kh, kw); cols (N, OH, OW)."""
    if layout == "NCHW":
        N, C, H, W = x.shape
    else:  # "CNHW"
        C, N, H, W = x.shape
    xp = jnp.pad(x, ((0, 0), (0, 0), (pad, pad), (pad, pad))) if pad else x
    OH = (H + 2 * pad - kh) // stride + 1
    OW = (W + 2 * pad - kw) // stride + 1
    cols = []
    for di in range(kh):
        for dj in range(kw):
            cols.append(xp[:, :, di:di + stride * OH:stride, dj:dj + stride * OW:stride])
    if layout == "NCHW":
        patches = jnp.stack(cols, axis=2)                 # (N, C, kh*kw, OH, OW)
        patches = patches.transpose(1, 2, 0, 3, 4)        # (C, kh*kw, N, OH, OW)
    else:
        patches = jnp.stack(cols, axis=1)                 # (C, kh*kw, N, OH, OW)
    return patches.reshape(C * kh * kw, N * OH * OW), OH, OW


def conv2d_lane_dense(x, w_mat, b_col, kh, kw, stride, pad, act, out_dtype,
                      in_layout="NCHW", out_layout="CNHW"):
    """w_mat: (Cout, Cin*kh*kw) bf16; b_col: (Cout, 1). Returns CNHW (default) or NCHW."""
    N = x.shape[0] if in_layout == "NCHW" else x.shape[1]
    Cout = w_mat.shape[0]
    patches, OH, OW = im2col_T(x.astype(jnp.bfloat16), kh, kw, stride, pad, layout=in_layout)
    y = conv_matmul(patches, w_mat, b_col, act=act, out_dtype=out_dtype)   # (Cout, N*OH*OW)
    y = y.reshape(Cout, N, OH, OW)
    if out_layout == "NCHW":
        y = y.transpose(1, 0, 2, 3)
    return y


def _parity_taps(k, s, p):
    """Per output parity r: list of (ky, m) with output[s*u+r] += x[u - m] * w[ky]."""
    return [[(ky, (ky - p - r) // s) for ky in range(k) if (ky - p - r) % s == 0]
            for r in range(s)]


def _global_window(k, s, p):
    """Shared tap window across ALL parities: (dsize, pad_front)."""
    ms = [m for taps in _parity_taps(k, s, p) for _, m in taps]
    max_m, min_m = max(ms), min(ms)
    assert max_m >= 0
    return max_m - min_m + 1, max_m


def prep_subpixel_weights_stacked(w, cfg):
    """w: (Cin, Cout, k, k) PyTorch ConvTranspose2d layout -> (s*s*Cout, Cin*dsy*dsx) bf16.

    All s*s parity sub-convolutions share one padded-input patch matrix, so the whole
    deconv layer becomes a single dense matmul (weights stacked along Cout)."""
    k, s, p = cfg["k"], cfg["stride"], cfg["pad"]
    Cin, Cout, kh, kw = w.shape
    taps_y = _parity_taps(kh, s, p)
    taps_x = _parity_taps(kw, s, p)
    dsy, pfy = _global_window(kh, s, p)
    dsx, pfx = _global_window(kw, s, p)
    wz = jnp.zeros((s, s, Cout, Cin, dsy, dsx), jnp.float32)
    for ry in range(s):
        for ky, my in taps_y[ry]:
            dy = pfy - my
            for rx in range(s):
                for kx, mx in taps_x[rx]:
                    dx = pfx - mx
                    wz = wz.at[ry, rx, :, :, dy, dx].set(w[:, :, ky, kx].T)
    return wz.reshape(s * s * Cout, Cin * dsy * dsx).astype(jnp.bfloat16)


def conv_transpose2d_stacked(x, w_stacked, b_col_stacked, cfg, act, out_dtype):
    """ConvTranspose2d as ONE matmul over a shared padded patch matrix (NCHW in/out)."""
    k, s, p = cfg["k"], cfg["stride"], cfg["pad"]
    N, Cin, IH, IW = x.shape
    Cout = w_stacked.shape[0] // (s * s)
    OH = (IH - 1) * s - 2 * p + k
    OW = (IW - 1) * s - 2 * p + k
    assert OH % s == 0 and OW % s == 0
    OHs, OWs = OH // s, OW // s
    dsy, pfy = _global_window(k, s, p)
    dsx, pfx = _global_window(k, s, p)
    pby = max(0, OHs + dsy - 1 - IH - pfy)
    pbx = max(0, OWs + dsx - 1 - IW - pfx)
    xp = jnp.pad(x.astype(jnp.bfloat16), ((0, 0), (0, 0), (pfy, pby), (pfx, pbx)))
    patches, oh, ow = im2col_T(xp, dsy, dsx, 1, 0, layout="NCHW")
    y = conv_matmul(patches, w_stacked, b_col_stacked,
                    act=act, out_dtype=out_dtype)                 # (s*s*Cout, N*oh*ow)
    y = y.reshape(s, s, Cout, N, oh, ow)[:, :, :, :, :OHs, :OWs]
    # interleave parities: out[n, c, s*u+ry, s*v+rx] = y[ry, rx, c, n, u, v]
    y = y.transpose(3, 2, 4, 0, 5, 1).reshape(N, Cout, OH, OW)
    return y


# ---------------------------------------------------------------------------
# Parameter init (PyTorch-shaped) and one-time preprocessing to kernel layouts
# ---------------------------------------------------------------------------
def init_params(key, v_size=V_SIZE, bs_size=BS_SIZE):
    def u(key, shape, fan_in):
        bound = 1.0 / jnp.sqrt(float(fan_in))
        return jax.random.uniform(key, shape, jnp.float32, -bound, bound)

    ks = jax.random.split(key, 16)
    p = {}
    p["conv1_w"] = u(ks[0], (N_FILTERS, IM_CHANNELS, 4, 4), IM_CHANNELS * 16)
    p["conv1_b"] = u(ks[1], (N_FILTERS,), IM_CHANNELS * 16)
    p["conv2_w"] = u(ks[2], (N_FILTERS, N_FILTERS, 4, 4), N_FILTERS * 16)
    p["conv2_b"] = u(ks[3], (N_FILTERS,), N_FILTERS * 16)
    p["enc_fc_w"] = u(ks[4], (v_size, N_FILTERS * 8 * 8), N_FILTERS * 8 * 8)
    p["enc_fc_b"] = u(ks[5], (v_size,), N_FILTERS * 8 * 8)
    p["gru_w_ih"] = u(ks[6], (3 * bs_size, v_size), bs_size)
    p["gru_w_hh"] = u(ks[7], (3 * bs_size, bs_size), bs_size)
    p["gru_b_ih"] = u(ks[8], (3 * bs_size,), bs_size)
    p["gru_b_hh"] = u(ks[9], (3 * bs_size,), bs_size)
    p["dec_fc_w"] = u(ks[10], (N_FILTERS * 8 * 8, bs_size), bs_size)
    p["dec_fc_b"] = u(ks[11], (N_FILTERS * 8 * 8,), bs_size)
    p["deconv1_w"] = u(ks[12], (N_FILTERS, N_FILTERS, 4, 4), N_FILTERS * 16)
    p["deconv1_b"] = u(ks[13], (N_FILTERS,), N_FILTERS * 16)
    p["deconv2_w"] = u(ks[14], (N_FILTERS, IM_CHANNELS, 4, 4), N_FILTERS * 16)
    p["deconv2_b"] = u(ks[15], (IM_CHANNELS,), N_FILTERS * 16)
    return p


def _stack_deconv_bias(b, s):
    return jnp.tile(b.astype(jnp.float32), s * s).reshape(-1, 1)


def preprocess_params(p):
    """One-time layout/dtype conversion (bf16 MXU operands, f32 biases)."""
    pp = {}
    pp["conv1_w"] = p["conv1_w"].reshape(N_FILTERS, -1).astype(jnp.bfloat16)
    pp["conv1_b"] = p["conv1_b"].reshape(-1, 1).astype(jnp.float32)
    pp["conv2_w"] = p["conv2_w"].reshape(N_FILTERS, -1).astype(jnp.bfloat16)
    pp["conv2_b"] = p["conv2_b"].reshape(-1, 1).astype(jnp.float32)
    pp["enc_fc_w"] = p["enc_fc_w"].T.astype(jnp.bfloat16)            # (1024, V)
    pp["enc_fc_b"] = p["enc_fc_b"].reshape(1, -1).astype(jnp.float32)
    pp["gru_wih"] = p["gru_w_ih"].T.astype(jnp.bfloat16)             # (V, 3H)
    pp["gru_bih"] = p["gru_b_ih"].reshape(1, -1).astype(jnp.float32)
    pp["gru_whh"] = p["gru_w_hh"].T.astype(jnp.bfloat16)             # (H, 3H)
    pp["gru_bhh"] = p["gru_b_hh"].reshape(1, -1).astype(jnp.float32)
    pp["dec_fc_w"] = p["dec_fc_w"].T.astype(jnp.bfloat16)            # (H, 1024)
    pp["dec_fc_b"] = p["dec_fc_b"].reshape(1, -1).astype(jnp.float32)
    pp["deconv1_w"] = prep_subpixel_weights_stacked(p["deconv1_w"], DECONV1_CFG)
    pp["deconv1_b"] = _stack_deconv_bias(p["deconv1_b"], DECONV1_CFG["stride"])
    pp["deconv2_w"] = prep_subpixel_weights_stacked(p["deconv2_w"], DECONV2_CFG)
    pp["deconv2_b"] = _stack_deconv_bias(p["deconv2_b"], DECONV2_CFG["stride"])
    return pp


# ---------------------------------------------------------------------------
# Full forward pass (mirrors PredictiveAutoencoder.forward)
# ---------------------------------------------------------------------------
def predictive_autoencoder(pp, x):
    """x: (ep_len, batch, IM_CHANNELS, 28, 28) -> same shape (sigmoid output, f32)."""
    ep_len, batch, C, H, W = x.shape
    EB = ep_len * batch
    xb = x.reshape(EB, C, H, W)

    # ---- Encoder (conv layers chained in CNHW to avoid an extra layout transpose) ----
    h = conv2d_lane_dense(xb, pp["conv1_w"], pp["conv1_b"], 4, 4, stride=2, pad=3,
                          act="relu", out_dtype=jnp.bfloat16,
                          in_layout="NCHW", out_layout="CNHW")        # (16, EB, 16, 16)
    h = conv2d_lane_dense(h, pp["conv2_w"], pp["conv2_b"], 4, 4, stride=2, pad=1,
                          act="relu", out_dtype=jnp.bfloat16,
                          in_layout="CNHW", out_layout="CNHW")        # (16, EB, 8, 8)
    h_flat = h.transpose(1, 0, 2, 3).reshape(EB, N_FILTERS * 8 * 8)   # torch .view (C,H,W) order

    # ---- Encoder FC + GRU input projection (fused, one kernel) ----
    gx = enc_head_matmul(h_flat, pp["enc_fc_w"], pp["enc_fc_b"],
                         pp["gru_wih"], pp["gru_bih"])                # (EB, 3H) f32

    # ---- GRU recurrence (streamed over time, hidden state in VMEM scratch) ----
    H_bs = pp["gru_whh"].shape[0]
    gx_seq = gx.reshape(ep_len, batch, 3 * H_bs)
    Bp = max(8, _round_up(batch, 8))                                  # pad batch to f32 sublanes
    if Bp != batch:
        gx_seq = jnp.pad(gx_seq, ((0, 0), (0, Bp - batch), (0, 0)))
    bs = gru_pallas(gx_seq, pp["gru_whh"], pp["gru_bhh"], H_bs)       # (T, Bp, H)
    bs = bs[:, :batch]

    # ---- Decoder ----
    d = fc_matmul(bs.reshape(EB, H_bs), pp["dec_fc_w"], pp["dec_fc_b"],
                  act="relu", out_dtype=jnp.bfloat16)                 # (EB, 1024)
    d = d.reshape(EB, N_FILTERS, 8, 8)
    d = conv_transpose2d_stacked(d, pp["deconv1_w"], pp["deconv1_b"], DECONV1_CFG,
                                 act="relu", out_dtype=jnp.bfloat16)      # (EB,16,14,14)
    d = conv_transpose2d_stacked(d, pp["deconv2_w"], pp["deconv2_b"], DECONV2_CFG,
                                 act="sigmoid", out_dtype=jnp.float32)    # (EB,1,28,28)

    return d.reshape(ep_len, batch, C, H, W)


# ---------------------------------------------------------------------------
if __name__ == "__main__":
    key = jax.random.PRNGKey(0)
    pkey, xkey = jax.random.split(key)

    params = init_params(pkey)
    pp = preprocess_params(params)

    ep_len, batch = 2, 2
    x = jax.random.uniform(xkey, (ep_len, batch, IM_CHANNELS, IMG_HW, IMG_HW), jnp.float32)

    fwd = jax.jit(predictive_autoencoder)
    out = jax.block_until_ready(fwd(pp, x))

    assert out.shape == x.shape, (out.shape, x.shape)
    assert out.dtype == jnp.float32
    assert bool(jnp.all(jnp.isfinite(out)))
    print("KERNEL_OK")
</pallas_src>

<mosaic_0001>
module attributes {stable_mosaic.version = 11 : i64} {
  func.func @_conv_mm_kernel(%arg0: i32, %arg1: memref<16x16xbf16, #tpu.memory_space<vmem>>, %arg2: memref<16x1024xbf16, #tpu.memory_space<vmem>>, %arg3: memref<16x1xf32, #tpu.memory_space<vmem>>, %arg4: memref<16x1024xbf16, #tpu.memory_space<vmem>>) attributes {dimension_semantics = [#tpu.dimension_semantics<parallel>], iteration_bounds = array<i64: 1>, scalar_prefetch = 0 : i64, scratch_operands = 0 : i64, tpu.core_type = #tpu.core_type<tc>, window_params = [{pipeline_mode = #tpu.pipeline_mode<synchronous>, transform_indices = @transform_0, window_bounds = array<i64: 16, 16>}, {transform_indices = @transform_1, window_bounds = array<i64: 16, 1024>}, {pipeline_mode = #tpu.pipeline_mode<synchronous>, transform_indices = @transform_2, window_bounds = array<i64: 16, 1>}, {transform_indices = @transform_3, window_bounds = array<i64: 16, 1024>}]} {
    %c0 = arith.constant 0 : index
    %c0_0 = arith.constant 0 : index
    %0 = vector.load %arg1[%c0, %c0_0] : memref<16x16xbf16, #tpu.memory_space<vmem>>, vector<16x16xbf16>
    %c0_1 = arith.constant 0 : index
    %c0_2 = arith.constant 0 : index
    %1 = vector.load %arg2[%c0_1, %c0_2] : memref<16x1024xbf16, #tpu.memory_space<vmem>>, vector<16x1024xbf16>
    %cst = arith.constant dense<0.000000e+00> : vector<16x1024xf32>
    %2 = tpu.matmul %0, %1, %cst {dimension_numbers = #tpu.dot_dimension_numbers<[1], [0], [0], [1], [0, 0, 1, 1], [], []>} : vector<16x16xbf16>, vector<16x1024xbf16>, vector<16x1024xf32> -> vector<16x1024xf32>
    %c0_3 = arith.constant 0 : index
    %c0_4 = arith.constant 0 : index
    %3 = vector.load %arg3[%c0_3, %c0_4] : memref<16x1xf32, #tpu.memory_space<vmem>>, vector<16x1xf32>
    %4 = vector.broadcast %3 : vector<16x1xf32> to vector<16x1024xf32>
    %5 = arith.addf %2, %4 : vector<16x1024xf32>
    %cst_5 = arith.constant 0.000000e+00 : f32
    %6 = vector.broadcast %cst_5 : f32 to vector<16x1024xf32>
    %7 = arith.maximumf %5, %6 : vector<16x1024xf32>
    %8 = arith.truncf %7 : vector<16x1024xf32> to vector<16x1024xbf16>
    %c0_6 = arith.constant 0 : index
    %c0_7 = arith.constant 0 : index
    %9 = vector.load %arg4[%c0_6, %c0_7] : memref<16x1024xbf16, #tpu.memory_space<vmem>>, vector<16x1024xbf16>
    tpu.vector_store %arg4[%c0_6, %c0_7], %8 {strides = array<i32>} : memref<16x1024xbf16, #tpu.memory_space<vmem>>, vector<16x1024xbf16>,
    return
  }
  func.func @transform_0(%arg0: i32) -> (i32, i32) {
    %c0_i32 = arith.constant 0 : i32
    %c0_i32_0 = arith.constant 0 : i32
    %c0_i32_1 = arith.constant 0 : i32
    return %c0_i32, %c0_i32_0 : i32, i32
  }
  func.func @transform_1(%arg0: i32) -> (i32, i32) {
    %c0_i32 = arith.constant 0 : i32
    %c0_i32_0 = arith.constant 0 : i32
    return %c0_i32, %arg0 : i32, i32
  }
  func.func @transform_2(%arg0: i32) -> (i32, i32) {
    %c0_i32 = arith.constant 0 : i32
    %c0_i32_0 = arith.constant 0 : i32
    %c0_i32_1 = arith.constant 0 : i32
    return %c0_i32, %c0_i32_0 : i32, i32
  }
  func.func @transform_3(%arg0: i32) -> (i32, i32) {
    %c0_i32 = arith.constant 0 : i32
    %c0_i32_0 = arith.constant 0 : i32
    return %c0_i32, %arg0 : i32, i32
  }
}

module attributes {stable_mosaic.version = 11 : i64} {
  func.func @_conv_mm_kernel(%arg0: i32, %arg1: memref<16x256xbf16, #tpu.memory_space<vmem>>, %arg2: memref<256x256xbf16, #tpu.memory_space<vmem>>, %arg3: memref<16x1xf32, #tpu.memory_space<vmem>>, %arg4: memref<16x256xbf16, #tpu.memory_space<vmem>>) attributes {dimension_semantics = [#tpu.dimension_semantics<parallel>], iteration_bounds = array<i64: 1>, scalar_prefetch = 0 : i64, scratch_operands = 0 : i64, tpu.core_type = #tpu.core_type<tc>, window_params = [{pipeline_mode = #tpu.pipeline_mode<synchronous>, transform_indices = @transform_0, window_bounds = array<i64: 16, 256>}, {transform_indices = @transform_1, window_bounds = array<i64: 256, 256>}, {pipeline_mode = #tpu.pipeline_mode<synchronous>, transform_indices = @transform_2, window_bounds = array<i64: 16, 1>}, {transform_indices = @transform_3, window_bounds = array<i64: 16, 256>}]} {
    %c0 = arith.constant 0 : index
    %c0_0 = arith.constant 0 : index
    %0 = vector.load %arg1[%c0, %c0_0] : memref<16x256xbf16, #tpu.memory_space<vmem>>, vector<16x256xbf16>
    %c0_1 = arith.constant 0 : index
    %c0_2 = arith.constant 0 : index
    %1 = vector.load %arg2[%c0_1, %c0_2] : memref<256x256xbf16, #tpu.memory_space<vmem>>, vector<256x256xbf16>
    %cst = arith.constant dense<0.000000e+00> : vector<16x256xf32>
    %2 = tpu.matmul %0, %1, %cst {dimension_numbers = #tpu.dot_dimension_numbers<[1], [0], [0], [1], [0, 0, 1, 1], [], []>} : vector<16x256xbf16>, vector<256x256xbf16>, vector<16x256xf32> -> vector<16x256xf32>
    %c0_3 = arith.constant 0 : index
    %c0_4 = arith.constant 0 : index
    %3 = vector.load %arg3[%c0_3, %c0_4] : memref<16x1xf32, #tpu.memory_space<vmem>>, vector<16x1xf32>
    %4 = vector.broadcast %3 : vector<16x1xf32> to vector<16x256xf32>
    %5 = arith.addf %2, %4 : vector<16x256xf32>
    %cst_5 = arith.constant 0.000000e+00 : f32
    %6 = vector.broadcast %cst_5 : f32 to vector<16x256xf32>
    %7 = arith.maximumf %5, %6 : vector<16x256xf32>
    %8 = arith.truncf %7 : vector<16x256xf32> to vector<16x256xbf16>
    %c0_6 = arith.constant 0 : index
    %c0_7 = arith.constant 0 : index
    %9 = vector.load %arg4[%c0_6, %c0_7] : memref<16x256xbf16, #tpu.memory_space<vmem>>, vector<16x256xbf16>
    tpu.vector_store %arg4[%c0_6, %c0_7], %8 {strides = array<i32>} : memref<16x256xbf16, #tpu.memory_space<vmem>>, vector<16x256xbf16>,
    return
  }
  func.func @transform_0(%arg0: i32) -> (i32, i32) {
    %c0_i32 = arith.constant 0 : i32
    %c0_i32_0 = arith.constant 0 : i32
    %c0_i32_1 = arith.constant 0 : i32
    return %c0_i32, %c0_i32_0 : i32, i32
  }
  func.func @transform_1(%arg0: i32) -> (i32, i32) {
    %c0_i32 = arith.constant 0 : i32
    %c0_i32_0 = arith.constant 0 : i32
    return %c0_i32, %arg0 : i32, i32
  }
  func.func @transform_2(%arg0: i32) -> (i32, i32) {
    %c0_i32 = arith.constant 0 : i32
    %c0_i32_0 = arith.constant 0 : i32
    %c0_i32_1 = arith.constant 0 : i32
    return %c0_i32, %c0_i32_0 : i32, i32
  }
  func.func @transform_3(%arg0: i32) -> (i32, i32) {
    %c0_i32 = arith.constant 0 : i32
    %c0_i32_0 = arith.constant 0 : i32
    return %c0_i32, %arg0 : i32, i32
  }
}

module attributes {stable_mosaic.version = 11 : i64} {
  func.func @_enc_head_kernel(%arg0: i32, %arg1: memref<8x1024xbf16, #tpu.memory_space<vmem>>, %arg2: memref<1024x256xbf16, #tpu.memory_space<vmem>>, %arg3: memref<1x256xf32, #tpu.memory_space<vmem>>, %arg4: memref<256x768xbf16, #tpu.memory_space<vmem>>, %arg5: memref<1x768xf32, #tpu.memory_space<vmem>>, %arg6: memref<8x768xf32, #tpu.memory_space<vmem>>) attributes {dimension_semantics = [#tpu.dimension_semantics<parallel>], iteration_bounds = array<i64: 1>, scalar_prefetch = 0 : i64, scratch_operands = 0 : i64, tpu.core_type = #tpu.core_type<tc>, window_params = [{transform_indices = @transform_0, window_bounds = array<i64: 8, 1024>}, {pipeline_mode = #tpu.pipeline_mode<synchronous>, transform_indices = @transform_1, window_bounds = array<i64: 1024, 256>}, {pipeline_mode = #tpu.pipeline_mode<synchronous>, transform_indices = @transform_2, window_bounds = array<i64: 1, 256>}, {pipeline_mode = #tpu.pipeline_mode<synchronous>, transform_indices = @transform_3, window_bounds = array<i64: 256, 768>}, {pipeline_mode = #tpu.pipeline_mode<synchronous>, transform_indices = @transform_4, window_bounds = array<i64: 1, 768>}, {transform_indices = @transform_5, window_bounds = array<i64: 8, 768>}]} {
    %c0 = arith.constant 0 : index
    %c0_0 = arith.constant 0 : index
    %0 = vector.load %arg1[%c0, %c0_0] : memref<8x1024xbf16, #tpu.memory_space<vmem>>, vector<8x1024xbf16>
    %c0_1 = arith.constant 0 : index
    %c0_2 = arith.constant 0 : index
    %1 = vector.load %arg2[%c0_1, %c0_2] : memref<1024x256xbf16, #tpu.memory_space<vmem>>, vector<1024x256xbf16>
    %cst = arith.constant dense<0.000000e+00> : vector<8x256xf32>
    %2 = tpu.matmul %0, %1, %cst {dimension_numbers = #tpu.dot_dimension_numbers<[1], [0], [0], [1], [0, 0, 1, 1], [], []>} : vector<8x1024xbf16>, vector<1024x256xbf16>, vector<8x256xf32> -> vector<8x256xf32>
    %c0_3 = arith.constant 0 : index
    %c0_4 = arith.constant 0 : index
    %3 = vector.load %arg3[%c0_3, %c0_4] : memref<1x256xf32, #tpu.memory_space<vmem>>, vector<1x256xf32>
    %4 = vector.broadcast %3 : vector<1x256xf32> to vector<8x256xf32>
    %5 = arith.addf %2, %4 : vector<8x256xf32>
    %cst_5 = arith.constant 0.000000e+00 : f32
    %6 = vector.broadcast %cst_5 : f32 to vector<8x256xf32>
    %7 = arith.maximumf %5, %6 : vector<8x256xf32>
    %8 = arith.truncf %7 : vector<8x256xf32> to vector<8x256xbf16>
    %c0_6 = arith.constant 0 : index
    %c0_7 = arith.constant 0 : index
    %9 = vector.load %arg4[%c0_6, %c0_7] : memref<256x768xbf16, #tpu.memory_space<vmem>>, vector<256x768xbf16>
    %cst_8 = arith.constant dense<0.000000e+00> : vector<8x768xf32>
    %10 = tpu.matmul %8, %9, %cst_8 {dimension_numbers = #tpu.dot_dimension_numbers<[1], [0], [0], [1], [0, 0, 1, 1], [], []>} : vector<8x256xbf16>, vector<256x768xbf16>, vector<8x768xf32> -> vector<8x768xf32>
    %c0_9 = arith.constant 0 : index
    %c0_10 = arith.constant 0 : index
    %11 = vector.load %arg5[%c0_9, %c0_10] : memref<1x768xf32, #tpu.memory_space<vmem>>, vector<1x768xf32>
    %12 = vector.broadcast %11 : vector<1x768xf32> to vector<8x768xf32>
    %13 = arith.addf %10, %12 : vector<8x768xf32>
    %c0_11 = arith.constant 0 : index
    %c0_12 = arith.constant 0 : index
    %14 = vector.load %arg6[%c0_11, %c0_12] : memref<8x768xf32, #tpu.memory_space<vmem>>, vector<8x768xf32>
    tpu.vector_store %arg6[%c0_11, %c0_12], %13 {strides = array<i32>} : memref<8x768xf32, #tpu.memory_space<vmem>>, vector<8x768xf32>,
    return
  }
  func.func @transform_0(%arg0: i32) -> (i32, i32) {
    %c0_i32 = arith.constant 0 : i32
    %c0_i32_0 = arith.constant 0 : i32
    return %arg0, %c0_i32 : i32, i32
  }
  func.func @transform_1(%arg0: i32) -> (i32, i32) {
    %c0_i32 = arith.constant 0 : i32
    %c0_i32_0 = arith.constant 0 : i32
    %c0_i32_1 = arith.constant 0 : i32
    return %c0_i32, %c0_i32_0 : i32, i32
  }
  func.func @transform_2(%arg0: i32) -> (i32, i32) {
    %c0_i32 = arith.constant 0 : i32
    %c0_i32_0 = arith.constant 0 : i32
    %c0_i32_1 = arith.constant 0 : i32
    return %c0_i32, %c0_i32_0 : i32, i32
  }
  func.func @transform_3(%arg0: i32) -> (i32, i32) {
    %c0_i32 = arith.constant 0 : i32
    %c0_i32_0 = arith.constant 0 : i32
    %c0_i32_1 = arith.constant 0 : i32
    return %c0_i32, %c0_i32_0 : i32, i32
  }
  func.func @transform_4(%arg0: i32) -> (i32, i32) {
    %c0_i32 = arith.constant 0 : i32
    %c0_i32_0 = arith.constant 0 : i32
    %c0_i32_1 = arith.constant 0 : i32
    return %c0_i32, %c0_i32_0 : i32, i32
  }
  func.func @transform_5(%arg0: i32) -> (i32, i32) {
    %c0_i32 = arith.constant 0 : i32
    %c0_i32_0 = arith.constant 0 : i32
    return %arg0, %c0_i32 : i32, i32
  }
}

module attributes {stable_mosaic.version = 11 : i64} {
  func.func @_gru_step_kernel(%arg0: i32, %arg1: memref<1x8x768xf32, #tpu.memory_space<vmem>>, %arg2: memref<256x768xbf16, #tpu.memory_space<vmem>>, %arg3: memref<1x768xf32, #tpu.memory_space<vmem>>, %arg4: memref<1x8x256xf32, #tpu.memory_space<vmem>>, %arg5: memref<8x256xf32, #tpu.memory_space<vmem>>) attributes {dimension_semantics = [#tpu.dimension_semantics<arbitrary>], iteration_bounds = array<i64: 2>, scalar_prefetch = 0 : i64, scratch_operands = 1 : i64, tpu.core_type = #tpu.core_type<tc>, window_params = [{transform_indices = @transform_0, window_bounds = array<i64: 1, 8, 768>}, {pipeline_mode = #tpu.pipeline_mode<synchronous>, transform_indices = @transform_1, window_bounds = array<i64: 256, 768>}, {pipeline_mode = #tpu.pipeline_mode<synchronous>, transform_indices = @transform_2, window_bounds = array<i64: 1, 768>}, {transform_indices = @transform_3, window_bounds = array<i64: 1, 8, 256>}]} {
    %c0_i32 = arith.constant 0 : i32
    %0 = arith.cmpi eq, %arg0, %c0_i32 : i32
    %1 = arith.extui %0 : i1 to i32
    %c0_i32_0 = arith.constant 0 : i32
    %2 = arith.cmpi ne, %1, %c0_i32_0 : i32
    scf.if %2 {
      %cst_17 = arith.constant 0.000000e+00 : f32
      %42 = vector.broadcast %cst_17 : f32 to vector<8x256xf32>
      %c0_18 = arith.constant 0 : index
      %c0_19 = arith.constant 0 : index
      %43 = vector.load %arg5[%c0_18, %c0_19] : memref<8x256xf32, #tpu.memory_space<vmem>>, vector<8x256xf32>
      tpu.vector_store %arg5[%c0_18, %c0_19], %42 {strides = array<i32>} : memref<8x256xf32, #tpu.memory_space<vmem>>, vector<8x256xf32>,
    } else {
    }
    %c0 = arith.constant 0 : index
    %c0_1 = arith.constant 0 : index
    %c0_2 = arith.constant 0 : index
    %3 = vector.load %arg1[%c0, %c0_1, %c0_2] : memref<1x8x768xf32, #tpu.memory_space<vmem>>, vector<1x8x768xf32>
    %4 = vector.shape_cast %3 : vector<1x8x768xf32> to vector<8x768xf32>
    %c0_3 = arith.constant 0 : index
    %c0_4 = arith.constant 0 : index
    %5 = vector.load %arg5[%c0_3, %c0_4] : memref<8x256xf32, #tpu.memory_space<vmem>>, vector<8x256xf32>
    %6 = arith.truncf %5 : vector<8x256xf32> to vector<8x256xbf16>
    %c0_5 = arith.constant 0 : index
    %c0_6 = arith.constant 0 : index
    %7 = vector.load %arg2[%c0_5, %c0_6] : memref<256x768xbf16, #tpu.memory_space<vmem>>, vector<256x768xbf16>
    %cst = arith.constant dense<0.000000e+00> : vector<8x768xf32>
    %8 = tpu.matmul %6, %7, %cst {dimension_numbers = #tpu.dot_dimension_numbers<[1], [0], [0], [1], [0, 0, 1, 1], [], []>} : vector<8x256xbf16>, vector<256x768xbf16>, vector<8x768xf32> -> vector<8x768xf32>
    %c0_7 = arith.constant 0 : index
    %c0_8 = arith.constant 0 : index
    %9 = vector.load %arg3[%c0_7, %c0_8] : memref<1x768xf32, #tpu.memory_space<vmem>>, vector<1x768xf32>
    %10 = vector.broadcast %9 : vector<1x768xf32> to vector<8x768xf32>
    %11 = arith.addf %8, %10 : vector<8x768xf32>
    %12 = vector.extract_strided_slice %4 {offsets = [0, 0], sizes = [8, 256], strides = [1, 1]} : vector<8x768xf32> to vector<8x256xf32>
    %13 = vector.extract_strided_slice %11 {offsets = [0, 0], sizes = [8, 256], strides = [1, 1]} : vector<8x768xf32> to vector<8x256xf32>
    %14 = arith.addf %12, %13 : vector<8x256xf32>
    %15 = arith.negf %14 : vector<8x256xf32>
    %16 = math.exp %15 : vector<8x256xf32>
    %cst_9 = arith.constant 1.000000e+00 : f32
    %17 = vector.broadcast %cst_9 : f32 to vector<8x256xf32>
    %18 = arith.addf %17, %16 : vector<8x256xf32>
    %19 = arith.divf %17, %18 : vector<8x256xf32>
    %20 = vector.extract_strided_slice %4 {offsets = [0, 256], sizes = [8, 256], strides = [1, 1]} : vector<8x768xf32> to vector<8x256xf32>
    %21 = vector.extract_strided_slice %11 {offsets = [0, 256], sizes = [8, 256], strides = [1, 1]} : vector<8x768xf32> to vector<8x256xf32>
    %22 = arith.addf %20, %21 : vector<8x256xf32>
    %23 = arith.negf %22 : vector<8x256xf32>
    %24 = math.exp %23 : vector<8x256xf32>
    %cst_10 = arith.constant 1.000000e+00 : f32
    %25 = vector.broadcast %cst_10 : f32 to vector<8x256xf32>
    %26 = arith.addf %25, %24 : vector<8x256xf32>
    %27 = arith.divf %25, %26 : vector<8x256xf32>
    %28 = vector.extract_strided_slice %4 {offsets = [0, 512], sizes = [8, 256], strides = [1, 1]} : vector<8x768xf32> to vector<8x256xf32>
    %29 = vector.extract_strided_slice %11 {offsets = [0, 512], sizes = [8, 256], strides = [1, 1]} : vector<8x768xf32> to vector<8x256xf32>
    %30 = arith.mulf %19, %29 : vector<8x256xf32>
    %31 = arith.addf %28, %30 : vector<8x256xf32>
    %32 = math.tanh %31 : vector<8x256xf32>
    %cst_11 = arith.constant 1.000000e+00 : f32
    %33 = vector.broadcast %cst_11 : f32 to vector<8x256xf32>
    %34 = arith.subf %33, %27 : vector<8x256xf32>
    %35 = arith.mulf %34, %32 : vector<8x256xf32>
    %36 = arith.mulf %27, %5 : vector<8x256xf32>
    %37 = arith.addf %35, %36 : vector<8x256xf32>
    %c0_12 = arith.constant 0 : index
    %c0_13 = arith.constant 0 : index
    %38 = vector.load %arg5[%c0_12, %c0_13] : memref<8x256xf32, #tpu.memory_space<vmem>>, vector<8x256xf32>
    tpu.vector_store %arg5[%c0_12, %c0_13], %37 {strides = array<i32>} : memref<8x256xf32, #tpu.memory_space<vmem>>, vector<8x256xf32>,
    %c0_14 = arith.constant 0 : index
    %c0_15 = arith.constant 0 : index
    %c0_16 = arith.constant 0 : index
    %39 = vector.load %arg4[%c0_14, %c0_15, %c0_16] : memref<1x8x256xf32, #tpu.memory_space<vmem>>, vector<1x8x256xf32>
    %40 = vector.shape_cast %39 : vector<1x8x256xf32> to vector<8x256xf32>
    %41 = vector.shape_cast %37 : vector<8x256xf32> to vector<1x8x256xf32>
    tpu.vector_store %arg4[%c0_14, %c0_15, %c0_16], %41 {strides = array<i32>} : memref<1x8x256xf32, #tpu.memory_space<vmem>>, vector<1x8x256xf32>,
    return
  }
  func.func @transform_0(%arg0: i32) -> (i32, i32, i32) {
    %c0_i32 = arith.constant 0 : i32
    %c0_i32_0 = arith.constant 0 : i32
    %c0_i32_1 = arith.constant 0 : i32
    return %arg0, %c0_i32, %c0_i32_0 : i32, i32, i32
  }
  func.func @transform_1(%arg0: i32) -> (i32, i32) {
    %c0_i32 = arith.constant 0 : i32
    %c0_i32_0 = arith.constant 0 : i32
    %c0_i32_1 = arith.constant 0 : i32
    return %c0_i32, %c0_i32_0 : i32, i32
  }
  func.func @transform_2(%arg0: i32) -> (i32, i32) {
    %c0_i32 = arith.constant 0 : i32
    %c0_i32_0 = arith.constant 0 : i32
    %c0_i32_1 = arith.constant 0 : i32
    return %c0_i32, %c0_i32_0 : i32, i32
  }
  func.func @transform_3(%arg0: i32) -> (i32, i32, i32) {
    %c0_i32 = arith.constant 0 : i32
    %c0_i32_0 = arith.constant 0 : i32
    %c0_i32_1 = arith.constant 0 : i32
    return %arg0, %c0_i32, %c0_i32_0 : i32, i32, i32
  }
}

module attributes {stable_mosaic.version = 11 : i64} {
  func.func @_fc_mm_kernel(%arg0: i32, %arg1: memref<8x256xbf16, #tpu.memory_space<vmem>>, %arg2: memref<256x1024xbf16, #tpu.memory_space<vmem>>, %arg3: memref<1x1024xf32, #tpu.memory_space<vmem>>, %arg4: memref<8x1024xbf16, #tpu.memory_space<vmem>>) attributes {dimension_semantics = [#tpu.dimension_semantics<parallel>], iteration_bounds = array<i64: 1>, scalar_prefetch = 0 : i64, scratch_operands = 0 : i64, tpu.core_type = #tpu.core_type<tc>, window_params = [{transform_indices = @transform_0, window_bounds = array<i64: 8, 256>}, {pipeline_mode = #tpu.pipeline_mode<synchronous>, transform_indices = @transform_1, window_bounds = array<i64: 256, 1024>}, {pipeline_mode = #tpu.pipeline_mode<synchronous>, transform_indices = @transform_2, window_bounds = array<i64: 1, 1024>}, {transform_indices = @transform_3, window_bounds = array<i64: 8, 1024>}]} {
    %c0 = arith.constant 0 : index
    %c0_0 = arith.constant 0 : index
    %0 = vector.load %arg1[%c0, %c0_0] : memref<8x256xbf16, #tpu.memory_space<vmem>>, vector<8x256xbf16>
    %c0_1 = arith.constant 0 : index
    %c0_2 = arith.constant 0 : index
    %1 = vector.load %arg2[%c0_1, %c0_2] : memref<256x1024xbf16, #tpu.memory_space<vmem>>, vector<256x1024xbf16>
    %cst = arith.constant dense<0.000000e+00> : vector<8x1024xf32>
    %2 = tpu.matmul %0, %1, %cst {dimension_numbers = #tpu.dot_dimension_numbers<[1], [0], [0], [1], [0, 0, 1, 1], [], []>} : vector<8x256xbf16>, vector<256x1024xbf16>, vector<8x1024xf32> -> vector<8x1024xf32>
    %c0_3 = arith.constant 0 : index
    %c0_4 = arith.constant 0 : index
    %3 = vector.load %arg3[%c0_3, %c0_4] : memref<1x1024xf32, #tpu.memory_space<vmem>>, vector<1x1024xf32>
    %4 = vector.broadcast %3 : vector<1x1024xf32> to vector<8x1024xf32>
    %5 = arith.addf %2, %4 : vector<8x1024xf32>
    %cst_5 = arith.constant 0.000000e+00 : f32
    %6 = vector.broadcast %cst_5 : f32 to vector<8x1024xf32>
    %7 = arith.maximumf %5, %6 : vector<8x1024xf32>
    %8 = arith.truncf %7 : vector<8x1024xf32> to vector<8x1024xbf16>
    %c0_6 = arith.constant 0 : index
    %c0_7 = arith.constant 0 : index
    %9 = vector.load %arg4[%c0_6, %c0_7] : memref<8x1024xbf16, #tpu.memory_space<vmem>>, vector<8x1024xbf16>
    tpu.vector_store %arg4[%c0_6, %c0_7], %8 {strides = array<i32>} : memref<8x1024xbf16, #tpu.memory_space<vmem>>, vector<8x1024xbf16>,
    return
  }
  func.func @transform_0(%arg0: i32) -> (i32, i32) {
    %c0_i32 = arith.constant 0 : i32
    %c0_i32_0 = arith.constant 0 : i32
    return %arg0, %c0_i32 : i32, i32
  }
  func.func @transform_1(%arg0: i32) -> (i32, i32) {
    %c0_i32 = arith.constant 0 : i32
    %c0_i32_0 = arith.constant 0 : i32
    %c0_i32_1 = arith.constant 0 : i32
    return %c0_i32, %c0_i32_0 : i32, i32
  }
  func.func @transform_2(%arg0: i32) -> (i32, i32) {
    %c0_i32 = arith.constant 0 : i32
    %c0_i32_0 = arith.constant 0 : i32
    %c0_i32_1 = arith.constant 0 : i32
    return %c0_i32, %c0_i32_0 : i32, i32
  }
  func.func @transform_3(%arg0: i32) -> (i32, i32) {
    %c0_i32 = arith.constant 0 : i32
    %c0_i32_0 = arith.constant 0 : i32
    return %arg0, %c0_i32 : i32, i32
  }
}

module attributes {stable_mosaic.version = 11 : i64} {
  func.func @_conv_mm_kernel(%arg0: i32, %arg1: memref<64x64xbf16, #tpu.memory_space<vmem>>, %arg2: memref<64x256xbf16, #tpu.memory_space<vmem>>, %arg3: memref<64x1xf32, #tpu.memory_space<vmem>>, %arg4: memref<64x256xbf16, #tpu.memory_space<vmem>>) attributes {dimension_semantics = [#tpu.dimension_semantics<parallel>], iteration_bounds = array<i64: 1>, scalar_prefetch = 0 : i64, scratch_operands = 0 : i64, tpu.core_type = #tpu.core_type<tc>, window_params = [{pipeline_mode = #tpu.pipeline_mode<synchronous>, transform_indices = @transform_0, window_bounds = array<i64: 64, 64>}, {transform_indices = @transform_1, window_bounds = array<i64: 64, 256>}, {pipeline_mode = #tpu.pipeline_mode<synchronous>, transform_indices = @transform_2, window_bounds = array<i64: 64, 1>}, {transform_indices = @transform_3, window_bounds = array<i64: 64, 256>}]} {
    %c0 = arith.constant 0 : index
    %c0_0 = arith.constant 0 : index
    %0 = vector.load %arg1[%c0, %c0_0] : memref<64x64xbf16, #tpu.memory_space<vmem>>, vector<64x64xbf16>
    %c0_1 = arith.constant 0 : index
    %c0_2 = arith.constant 0 : index
    %1 = vector.load %arg2[%c0_1, %c0_2] : memref<64x256xbf16, #tpu.memory_space<vmem>>, vector<64x256xbf16>
    %cst = arith.constant dense<0.000000e+00> : vector<64x256xf32>
    %2 = tpu.matmul %0, %1, %cst {dimension_numbers = #tpu.dot_dimension_numbers<[1], [0], [0], [1], [0, 0, 1, 1], [], []>} : vector<64x64xbf16>, vector<64x256xbf16>, vector<64x256xf32> -> vector<64x256xf32>
    %c0_3 = arith.constant 0 : index
    %c0_4 = arith.constant 0 : index
    %3 = vector.load %arg3[%c0_3, %c0_4] : memref<64x1xf32, #tpu.memory_space<vmem>>, vector<64x1xf32>
    %4 = vector.broadcast %3 : vector<64x1xf32> to vector<64x256xf32>
    %5 = arith.addf %2, %4 : vector<64x256xf32>
    %cst_5 = arith.constant 0.000000e+00 : f32
    %6 = vector.broadcast %cst_5 : f32 to vector<64x256xf32>
    %7 = arith.maximumf %5, %6 : vector<64x256xf32>
    %8 = arith.truncf %7 : vector<64x256xf32> to vector<64x256xbf16>
    %c0_6 = arith.constant 0 : index
    %c0_7 = arith.constant 0 : index
    %9 = vector.load %arg4[%c0_6, %c0_7] : memref<64x256xbf16, #tpu.memory_space<vmem>>, vector<64x256xbf16>
    tpu.vector_store %arg4[%c0_6, %c0_7], %8 {strides = array<i32>} : memref<64x256xbf16, #tpu.memory_space<vmem>>, vector<64x256xbf16>,
    return
  }
  func.func @transform_0(%arg0: i32) -> (i32, i32) {
    %c0_i32 = arith.constant 0 : i32
    %c0_i32_0 = arith.constant 0 : i32
    %c0_i32_1 = arith.constant 0 : i32
    return %c0_i32, %c0_i32_0 : i32, i32
  }
  func.func @transform_1(%arg0: i32) -> (i32, i32) {
    %c0_i32 = arith.constant 0 : i32
    %c0_i32_0 = arith.constant 0 : i32
    return %c0_i32, %arg0 : i32, i32
  }
  func.func @transform_2(%arg0: i32) -> (i32, i32) {
    %c0_i32 = arith.constant 0 : i32
    %c0_i32_0 = arith.constant 0 : i32
    %c0_i32_1 = arith.constant 0 : i32
    return %c0_i32, %c0_i32_0 : i32, i32
  }
  func.func @transform_3(%arg0: i32) -> (i32, i32) {
    %c0_i32 = arith.constant 0 : i32
    %c0_i32_0 = arith.constant 0 : i32
    return %c0_i32, %arg0 : i32, i32
  }
}

module attributes {stable_mosaic.version = 11 : i64} {
  func.func @_conv_mm_kernel(%arg0: i32, %arg1: memref<4x144xbf16, #tpu.memory_space<vmem>>, %arg2: memref<144x896xbf16, #tpu.memory_space<vmem>>, %arg3: memref<4x1xf32, #tpu.memory_space<vmem>>, %arg4: memref<4x896xf32, #tpu.memory_space<vmem>>) attributes {dimension_semantics = [#tpu.dimension_semantics<parallel>], iteration_bounds = array<i64: 1>, scalar_prefetch = 0 : i64, scratch_operands = 0 : i64, tpu.core_type = #tpu.core_type<tc>, window_params = [{pipeline_mode = #tpu.pipeline_mode<synchronous>, transform_indices = @transform_0, window_bounds = array<i64: 4, 144>}, {transform_indices = @transform_1, window_bounds = array<i64: 144, 896>}, {pipeline_mode = #tpu.pipeline_mode<synchronous>, transform_indices = @transform_2, window_bounds = array<i64: 4, 1>}, {transform_indices = @transform_3, window_bounds = array<i64: 4, 896>}]} {
    %c0 = arith.constant 0 : index
    %c0_0 = arith.constant 0 : index
    %0 = vector.load %arg1[%c0, %c0_0] : memref<4x144xbf16, #tpu.memory_space<vmem>>, vector<4x144xbf16>
    %c0_1 = arith.constant 0 : index
    %c0_2 = arith.constant 0 : index
    %1 = vector.load %arg2[%c0_1, %c0_2] : memref<144x896xbf16, #tpu.memory_space<vmem>>, vector<144x896xbf16>
    %cst = arith.constant dense<0.000000e+00> : vector<4x896xf32>
    %2 = tpu.matmul %0, %1, %cst {dimension_numbers = #tpu.dot_dimension_numbers<[1], [0], [0], [1], [0, 0, 1, 1], [], []>} : vector<4x144xbf16>, vector<144x896xbf16>, vector<4x896xf32> -> vector<4x896xf32>
    %c0_3 = arith.constant 0 : index
    %c0_4 = arith.constant 0 : index
    %3 = vector.load %arg3[%c0_3, %c0_4] : memref<4x1xf32, #tpu.memory_space<vmem>>, vector<4x1xf32>
    %4 = vector.broadcast %3 : vector<4x1xf32> to vector<4x896xf32>
    %5 = arith.addf %2, %4 : vector<4x896xf32>
    %6 = arith.negf %5 : vector<4x896xf32>
    %7 = math.exp %6 : vector<4x896xf32>
    %cst_5 = arith.constant 1.000000e+00 : f32
    %8 = vector.broadcast %cst_5 : f32 to vector<4x896xf32>
    %9 = arith.addf %8, %7 : vector<4x896xf32>
    %10 = arith.divf %8, %9 : vector<4x896xf32>
    %c0_6 = arith.constant 0 : index
    %c0_7 = arith.constant 0 : index
    %11 = vector.load %arg4[%c0_6, %c0_7] : memref<4x896xf32, #tpu.memory_space<vmem>>, vector<4x896xf32>
    tpu.vector_store %arg4[%c0_6, %c0_7], %10 {strides = array<i32>} : memref<4x896xf32, #tpu.memory_space<vmem>>, vector<4x896xf32>,
    return
  }
  func.func @transform_0(%arg0: i32) -> (i32, i32) {
    %c0_i32 = arith.constant 0 : i32
    %c0_i32_0 = arith.constant 0 : i32
    %c0_i32_1 = arith.constant 0 : i32
    return %c0_i32, %c0_i32_0 : i32, i32
  }
  func.func @transform_1(%arg0: i32) -> (i32, i32) {
    %c0_i32 = arith.constant 0 : i32
    %c0_i32_0 = arith.constant 0 : i32
    return %c0_i32, %arg0 : i32, i32
  }
  func.func @transform_2(%arg0: i32) -> (i32, i32) {
    %c0_i32 = arith.constant 0 : i32
    %c0_i32_0 = arith.constant 0 : i32
    %c0_i32_1 = arith.constant 0 : i32
    return %c0_i32, %c0_i32_0 : i32, i32
  }
  func.func @transform_3(%arg0: i32) -> (i32, i32) {
    %c0_i32 = arith.constant 0 : i32
    %c0_i32_0 = arith.constant 0 : i32
    return %c0_i32, %arg0 : i32, i32
  }
}

</mosaic_0001>

<llo_original>
// kernel: predictive_autoencoder.7
$region0: #{predictive_autoencoder.7}
  #allocation0 [shape = 'u32[]', space=smem, size = 0x4, offset = 0x4, fixed_abs, tag = 'smem constant byte address 0x4 - core index']
  #allocation1 [shape = 'u32[72,128]{1,0:T(1,128)}', space=vmem, size = 0x9000, scoped, tag = 'internal scratch']
  %s0 = inlined_call_operand.vmem [shape: bf16[16,16], index: 0, kind: input, shape index: {}]
  %s1 = inlined_call_operand.vmem [shape: bf16[16,1024], index: 1, kind: input, shape index: {}]
  %s2 = inlined_call_operand.vmem [shape: f32[16,1], index: 2, kind: input, shape index: {}]
  %s3 = inlined_call_operand.vmem [shape: bf16[16,1024], index: 3, kind: output, shape index: {}]
  %s4 = sld [smem:[#allocation0]]
  $region22: #{predictive_autoencoder.7} parent=0
    _
  %s6 = ssub.s32 1, %s4
  %s7 = scalar_select 0, %s6, %s4
  // Predicated region
  $region2: #{predictive_autoencoder.7} parent=0 // pred_check
    _
  $region3: #{predictive_autoencoder.7} parent=0 // pred_check_branch
    %9 = sbr.rel (0) target = $region5
  $region4: #{predictive_autoencoder.7} parent=0 // pred_region
    _
  $region5: #{predictive_autoencoder.7} parent=0 // pred_fallthru
    _
  // Predicated region
  $region6: #{predictive_autoencoder.7} parent=0 // pred_check
    _
  $region7: #{predictive_autoencoder.7} parent=0 // pred_check_branch
    %11 = sbr.rel (0) target = $region9
  $region8: #{predictive_autoencoder.7} parent=0 // pred_region
    _
  $region9: #{predictive_autoencoder.7} parent=0 // pred_fallthru
    _
  // Predicated region
  $region10: #{predictive_autoencoder.7} parent=0 // pred_check
    _
  $region11: #{predictive_autoencoder.7} parent=0 // pred_check_branch
    %13 = sbr.rel (0) target = $region13
  $region12: #{predictive_autoencoder.7} parent=0 // pred_region
    _
  $region13: #{predictive_autoencoder.7} parent=0 // pred_fallthru
    _
  %v15 = vld [vmem:[%s0] sm:$0xf]
  %v16 = vld [vmem:[%s0 + $0x4] sm:$0xf]
  %v17 = vld [vmem:[%s1] sm:$0xff]
  %v18 = vld [vmem:[%s1 + $0x8] sm:$0xff]
  %v19 = vld [vmem:[%s1 + $0x10] sm:$0xff]
  %v20 = vld [vmem:[%s1 + $0x18] sm:$0xff]
  %v21 = vld [vmem:[%s1 + $0x20] sm:$0xff]
  %v22 = vld [vmem:[%s1 + $0x28] sm:$0xff]
  %v23 = vld [vmem:[%s1 + $0x30] sm:$0xff]
  %v24 = vld [vmem:[%s1 + $0x38] sm:$0xff]
  %v25 = vld [vmem:[%s2] sm:$0xff]
  %v26 = vld [vmem:[%s2 + $0x8] sm:$0xff]
  %28 = vset.pattern.permute.xlu0 0
  %29 = vperm.xlu0 %28, %v25
  %v30 = vpop.permute.xlu0 %29
  %33 = vset.pattern.permute.xlu0 0
  %34 = vperm.xlu0 %33, %v26
  %v35 = vpop.permute.xlu0 %34
  %v39 = vunpack.c.l.b16 %v15
  %v40 = vunpack.c.l.b16 %v16
  %v41 = vpack.c.b16 %v40, %v39
  %v50 = vunpack.c.l.b16 %v17
  %v51 = vunpack.c.h.b16 %v17
  %v52 = vunpack.c.l.b16 %v18
  %v53 = vunpack.c.h.b16 %v18
  %v54 = vunpack.c.l.b16 %v19
  %v55 = vunpack.c.h.b16 %v19
  %v56 = vunpack.c.l.b16 %v20
  %v57 = vunpack.c.h.b16 %v20
  %v58 = vunpack.c.l.b16 %v21
  %v59 = vunpack.c.h.b16 %v21
  %v60 = vunpack.c.l.b16 %v22
  %v61 = vunpack.c.h.b16 %v22
  %v62 = vunpack.c.l.b16 %v23
  %v63 = vunpack.c.h.b16 %v23
  %v64 = vunpack.c.l.b16 %v24
  %v65 = vunpack.c.h.b16 %v24
  %v66 = vpack.c.b16 %v58, %v50
  %v67 = vpack.c.b16 %v59, %v51
  %v68 = vpack.c.b16 %v60, %v52
  %v69 = vpack.c.b16 %v61, %v53
  %v70 = vpack.c.b16 %v62, %v54
  %v71 = vpack.c.b16 %v63, %v55
  %v72 = vpack.c.b16 %v64, %v56
  %v73 = vpack.c.b16 %v65, %v57
  %vm82 = vcmask 130048
  %v84 = vsel %vm82, %v41, 0
  %86 = vmatpush.bf16.msra.mxu0 0
  %87 = vmatpush.bf16.msra.mxu0 0
  %88 = vmatpush.bf16.msra.mxu0 0
  %89 = vmatpush.bf16.msra.mxu0 0
  %90 = vmatpush.bf16.msra.mxu0 0
  %91 = vmatpush.bf16.msra.mxu0 0
  %92 = vmatpush.bf16.msra.mxu0 0
  %93 = vmatpush.bf16.msra.mxu0 %v66
  %94 = vmatmul.bf16.gmra.mxu0 %v84
  %v95 = vpop.f32.mrf.mxu0
  %v96 = vadd.f32 %v30, %v95
  %v97 = vpop.f32.mrf.mxu0
  %v98 = vadd.f32 %v35, %v97
  %99 = vdwg.mxu0
  %100 = vmatpush.bf16.msra.mxu0 0
  %101 = vmatpush.bf16.msra.mxu0 0
  %102 = vmatpush.bf16.msra.mxu0 0
  %103 = vmatpush.bf16.msra.mxu0 0
  %104 = vmatpush.bf16.msra.mxu0 0
  %105 = vmatpush.bf16.msra.mxu0 0
  %106 = vmatpush.bf16.msra.mxu0 0
  %107 = vmatpush.bf16.msra.mxu0 %v67
  %108 = vmatmul.bf16.gmra.mxu0 %v84
  %v109 = vpop.f32.mrf.mxu0
  %v110 = vadd.f32 %v30, %v109
  %v111 = vpop.f32.mrf.mxu0
  %v112 = vadd.f32 %v35, %v111
  %113 = vdwg.mxu0
  %114 = vmatpush.bf16.msra.mxu0 0
  %115 = vmatpush.bf16.msra.mxu0 0
  %116 = vmatpush.bf16.msra.mxu0 0
  %117 = vmatpush.bf16.msra.mxu0 0
  %118 = vmatpush.bf16.msra.mxu0 0
  %119 = vmatpush.bf16.msra.mxu0 0
  %120 = vmatpush.bf16.msra.mxu0 0
  %121 = vmatpush.bf16.msra.mxu0 %v68
  %122 = vmatmul.bf16.gmra.mxu0 %v84
  %v123 = vpop.f32.mrf.mxu0
  %v124 = vadd.f32 %v30, %v123
  %v125 = vpop.f32.mrf.mxu0
  %v126 = vadd.f32 %v35, %v125
  %127 = vdwg.mxu0
  %128 = vmatpush.bf16.msra.mxu0 0
  %129 = vmatpush.bf16.msra.mxu0 0
  %130 = vmatpush.bf16.msra.mxu0 0
  %131 = vmatpush.bf16.msra.mxu0 0
  %132 = vmatpush.bf16.msra.mxu0 0
  %133 = vmatpush.bf16.msra.mxu0 0
  %134 = vmatpush.bf16.msra.mxu0 0
  %135 = vmatpush.bf16.msra.mxu0 %v69
  %136 = vmatmul.bf16.gmra.mxu0 %v84
  %v137 = vpop.f32.mrf.mxu0
  %v138 = vadd.f32 %v30, %v137
  %v139 = vpop.f32.mrf.mxu0
  %v140 = vadd.f32 %v35, %v139
  %141 = vdwg.mxu0
  %142 = vmatpush.bf16.msra.mxu0 0
  %143 = vmatpush.bf16.msra.mxu0 0
  %144 = vmatpush.bf16.msra.mxu0 0
  %145 = vmatpush.bf16.msra.mxu0 0
  %146 = vmatpush.bf16.msra.mxu0 0
  %147 = vmatpush.bf16.msra.mxu0 0
  %148 = vmatpush.bf16.msra.mxu0 0
  %149 = vmatpush.bf16.msra.mxu0 %v70
  %150 = vmatmul.bf16.gmra.mxu0 %v84
  %v151 = vpop.f32.mrf.mxu0
  %v152 = vadd.f32 %v30, %v151
  %v153 = vpop.f32.mrf.mxu0
  %v154 = vadd.f32 %v35, %v153
  %155 = vdwg.mxu0
  %156 = vmatpush.bf16.msra.mxu0 0
  %157 = vmatpush.bf16.msra.mxu0 0
  %158 = vmatpush.bf16.msra.mxu0 0
  %159 = vmatpush.bf16.msra.mxu0 0
  %160 = vmatpush.bf16.msra.mxu0 0
  %161 = vmatpush.bf16.msra.mxu0 0
  %162 = vmatpush.bf16.msra.mxu0 0
  %163 = vmatpush.bf16.msra.mxu0 %v71
  %164 = vmatmul.bf16.gmra.mxu0 %v84
  %v165 = vpop.f32.mrf.mxu0
  %v166 = vadd.f32 %v30, %v165
  %v167 = vpop.f32.mrf.mxu0
  %v168 = vadd.f32 %v35, %v167
  %169 = vdwg.mxu0
  %170 = vmatpush.bf16.msra.mxu0 0
  %171 = vmatpush.bf16.msra.mxu0 0
  %172 = vmatpush.bf16.msra.mxu0 0
  %173 = vmatpush.bf16.msra.mxu0 0
  %174 = vmatpush.bf16.msra.mxu0 0
  %175 = vmatpush.bf16.msra.mxu0 0
  %176 = vmatpush.bf16.msra.mxu0 0
  %177 = vmatpush.bf16.msra.mxu0 %v72
  %178 = vmatmul.bf16.gmra.mxu0 %v84
  %v179 = vpop.f32.mrf.mxu0
  %v180 = vadd.f32 %v30, %v179
  %v181 = vpop.f32.mrf.mxu0
  %v182 = vadd.f32 %v35, %v181
  %183 = vdwg.mxu0
  %184 = vmatpush.bf16.msra.mxu0 0
  %185 = vmatpush.bf16.msra.mxu0 0
  %186 = vmatpush.bf16.msra.mxu0 0
  %187 = vmatpush.bf16.msra.mxu0 0
  %188 = vmatpush.bf16.msra.mxu0 0
  %189 = vmatpush.bf16.msra.mxu0 0
  %190 = vmatpush.bf16.msra.mxu0 0
  %191 = vmatpush.bf16.msra.mxu0 %v73
  %192 = vmatmul.bf16.gmra.mxu0 %v84
  %v193 = vpop.f32.mrf.mxu0
  %v194 = vadd.f32 %v30, %v193
  %v195 = vpop.f32.mrf.mxu0
  %v196 = vadd.f32 %v35, %v195
  %197 = vdwg.mxu0
  %v198 = vmax.f32 %v96, 0.0
  %v199 = vmax.f32 %v110, 0.0
  %v200 = vmax.f32 %v124, 0.0
  %v201 = vmax.f32 %v138, 0.0
  %v202 = vmax.f32 %v152, 0.0
  %v203 = vmax.f32 %v166, 0.0
  %v204 = vmax.f32 %v180, 0.0
  %v205 = vmax.f32 %v194, 0.0
  %v206 = vmax.f32 %v98, 0.0
  %v207 = vmax.f32 %v112, 0.0
  %v208 = vmax.f32 %v126, 0.0
  %v209 = vmax.f32 %v140, 0.0
  %v210 = vmax.f32 %v154, 0.0
  %v211 = vmax.f32 %v168, 0.0
  %v212 = vmax.f32 %v182, 0.0
  %v213 = vmax.f32 %v196, 0.0
  %v214 = vpack.c.bf16 %v199, %v198
  %v215 = vpack.c.bf16 %v201, %v200
  %v216 = vpack.c.bf16 %v203, %v202
  %v217 = vpack.c.bf16 %v205, %v204
  %v218 = vpack.c.bf16 %v207, %v206
  %v219 = vpack.c.bf16 %v209, %v208
  %v220 = vpack.c.bf16 %v211, %v210
  %v221 = vpack.c.bf16 %v213, %v212
  %222 = vst [vmem:[%s3] sm:$0xff] %v214
  %223 = vst [vmem:[%s3 + $0x8] sm:$0xff] %v215
  %224 = vst [vmem:[%s3 + $0x10] sm:$0xff] %v216
  %225 = vst [vmem:[%s3 + $0x18] sm:$0xff] %v217
  %226 = vst [vmem:[%s3 + $0x20] sm:$0xff] %v218
  %227 = vst [vmem:[%s3 + $0x28] sm:$0xff] %v219
  %228 = vst [vmem:[%s3 + $0x30] sm:$0xff] %v220
  %229 = vst [vmem:[%s3 + $0x38] sm:$0xff] %v221
  // Predicated region
  $region14: #{predictive_autoencoder.7} parent=0 // pred_check
    _
  $region15: #{predictive_autoencoder.7} parent=0 // pred_check_branch
    %231 = sbr.rel (0) target = $region17
  $region16: #{predictive_autoencoder.7} parent=0 // pred_region
    _
  $region17: #{predictive_autoencoder.7} parent=0 // pred_fallthru
    _
  // Predicated region
  $region18: #{predictive_autoencoder.7} parent=0 // pred_check
    _
  $region19: #{predictive_autoencoder.7} parent=0 // pred_check_branch
    %233 = sbr.rel (0) target = $region21
  $region20: #{predictive_autoencoder.7} parent=0 // pred_region
    _
  $region21: #{predictive_autoencoder.7} parent=0 // pred_fallthru
    _

// kernel: predictive_autoencoder.8
$region0: #{predictive_autoencoder.8}
  #allocation0 [shape = 'u32[]', space=smem, size = 0x4, offset = 0x4, fixed_abs, tag = 'smem constant byte address 0x4 - core index']
  #allocation1 [shape = 'u32[72,128]{1,0:T(1,128)}', space=vmem, size = 0x9000, scoped, tag = 'internal scratch']
  %s0 = inlined_call_operand.vmem [shape: bf16[16,256], index: 0, kind: input, shape index: {}]
  %s1 = inlined_call_operand.vmem [shape: bf16[256,256], index: 1, kind: input, shape index: {}]
  %s2 = inlined_call_operand.vmem [shape: f32[16,1], index: 2, kind: input, shape index: {}]
  %s3 = inlined_call_operand.vmem [shape: bf16[16,256], index: 3, kind: output, shape index: {}]
  %s4 = sld [smem:[#allocation0]]
  $region22: #{predictive_autoencoder.8} parent=0
    _
  %s6 = ssub.s32 1, %s4
  %s7 = scalar_select 0, %s6, %s4
  // Predicated region
  $region2: #{predictive_autoencoder.8} parent=0 // pred_check
    _
  $region3: #{predictive_autoencoder.8} parent=0 // pred_check_branch
    %9 = sbr.rel (0) target = $region5
  $region4: #{predictive_autoencoder.8} parent=0 // pred_region
    _
  $region5: #{predictive_autoencoder.8} parent=0 // pred_fallthru
    _
  // Predicated region
  $region6: #{predictive_autoencoder.8} parent=0 // pred_check
    _
  $region7: #{predictive_autoencoder.8} parent=0 // pred_check_branch
    %11 = sbr.rel (0) target = $region9
  $region8: #{predictive_autoencoder.8} parent=0 // pred_region
    _
  $region9: #{predictive_autoencoder.8} parent=0 // pred_fallthru
    _
  // Predicated region
  $region10: #{predictive_autoencoder.8} parent=0 // pred_check
    _
  $region11: #{predictive_autoencoder.8} parent=0 // pred_check_branch
    %13 = sbr.rel (0) target = $region13
  $region12: #{predictive_autoencoder.8} parent=0 // pred_region
    _
  $region13: #{predictive_autoencoder.8} parent=0 // pred_fallthru
    _
  %v14 = vld [vmem:[%s0] sm:$0xff]
  %v15 = vld [vmem:[%s0 + $0x8] sm:$0xff]
  %v16 = vld [vmem:[%s1] sm:$0xff]
  %v17 = vld [vmem:[%s1 + $0x8] sm:$0xff]
  %v18 = vld [vmem:[%s1 + $0x10] sm:$0xff]
  %v19 = vld [vmem:[%s1 + $0x18] sm:$0xff]
  %v20 = vld [vmem:[%s1 + $0x20] sm:$0xff]
  %v21 = vld [vmem:[%s1 + $0x28] sm:$0xff]
  %v22 = vld [vmem:[%s1 + $0x30] sm:$0xff]
  %v23 = vld [vmem:[%s1 + $0x38] sm:$0xff]
  %v24 = vld [vmem:[%s1 + $0x40] sm:$0xff]
  %v25 = vld [vmem:[%s1 + $0x48] sm:$0xff]
  %v26 = vld [vmem:[%s1 + $0x50] sm:$0xff]
  %v27 = vld [vmem:[%s1 + $0x58] sm:$0xff]
  %v28 = vld [vmem:[%s1 + $0x60] sm:$0xff]
  %v29 = vld [vmem:[%s1 + $0x68] sm:$0xff]
  %v30 = vld [vmem:[%s1 + $0x70] sm:$0xff]
  %v31 = vld [vmem:[%s1 + $0x78] sm:$0xff]
  %v32 = vld [vmem:[%s1 + $0x80] sm:$0xff]
  %v33 = vld [vmem:[%s1 + $0x88] sm:$0xff]
  %v34 = vld [vmem:[%s1 + $0x90] sm:$0xff]
  %v35 = vld [vmem:[%s1 + $0x98] sm:$0xff]
  %v36 = vld [vmem:[%s1 + $0xa0] sm:$0xff]
  %v37 = vld [vmem:[%s1 + $0xa8] sm:$0xff]
  %v38 = vld [vmem:[%s1 + $0xb0] sm:$0xff]
  %v39 = vld [vmem:[%s1 + $0xb8] sm:$0xff]
  %v40 = vld [vmem:[%s1 + $0xc0] sm:$0xff]
  %v41 = vld [vmem:[%s1 + $0xc8] sm:$0xff]
  %v42 = vld [vmem:[%s1 + $0xd0] sm:$0xff]
  %v43 = vld [vmem:[%s1 + $0xd8] sm:$0xff]
  %v44 = vld [vmem:[%s1 + $0xe0] sm:$0xff]
  %v45 = vld [vmem:[%s1 + $0xe8] sm:$0xff]
  %v46 = vld [vmem:[%s1 + $0xf0] sm:$0xff]
  %v47 = vld [vmem:[%s1 + $0xf8] sm:$0xff]
  %v48 = vld [vmem:[%s2] sm:$0xff]
  %v49 = vld [vmem:[%s2 + $0x8] sm:$0xff]
  %51 = vset.pattern.permute.xlu0 0
  %52 = vperm.xlu0 %51, %v48
  %v53 = vpop.permute.xlu0 %52
  %56 = vset.pattern.permute.xlu0 0
  %57 = vperm.xlu0 %56, %v49
  %v58 = vpop.permute.xlu0 %57
  %v62 = vunpack.c.l.b16 %v14
  %v63 = vunpack.c.h.b16 %v14
  %v64 = vunpack.c.l.b16 %v15
  %v65 = vunpack.c.h.b16 %v15
  %v66 = vpack.c.b16 %v64, %v62
  %v67 = vpack.c.b16 %v65, %v63
  %v102 = vunpack.c.l.b16 %v16
  %v103 = vunpack.c.h.b16 %v16
  %v104 = vunpack.c.l.b16 %v17
  %v105 = vunpack.c.h.b16 %v17
  %v106 = vunpack.c.l.b16 %v18
  %v107 = vunpack.c.h.b16 %v18
  %v108 = vunpack.c.l.b16 %v19
  %v109 = vunpack.c.h.b16 %v19
  %v110 = vunpack.c.l.b16 %v20
  %v111 = vunpack.c.h.b16 %v20
  %v112 = vunpack.c.l.b16 %v21
  %v113 = vunpack.c.h.b16 %v21
  %v114 = vunpack.c.l.b16 %v22
  %v115 = vunpack.c.h.b16 %v22
  %v116 = vunpack.c.l.b16 %v23
  %v117 = vunpack.c.h.b16 %v23
  %v118 = vunpack.c.l.b16 %v24
  %v119 = vunpack.c.h.b16 %v24
  %v120 = vunpack.c.l.b16 %v25
  %v121 = vunpack.c.h.b16 %v25
  %v122 = vunpack.c.l.b16 %v26
  %v123 = vunpack.c.h.b16 %v26
  %v124 = vunpack.c.l.b16 %v27
  %v125 = vunpack.c.h.b16 %v27
  %v126 = vunpack.c.l.b16 %v28
  %v127 = vunpack.c.h.b16 %v28
  %v128 = vunpack.c.l.b16 %v29
  %v129 = vunpack.c.h.b16 %v29
  %v130 = vunpack.c.l.b16 %v30
  %v131 = vunpack.c.h.b16 %v30
  %v132 = vunpack.c.l.b16 %v31
  %v133 = vunpack.c.h.b16 %v31
  %v134 = vunpack.c.l.b16 %v32
  %v135 = vunpack.c.h.b16 %v32
  %v136 = vunpack.c.l.b16 %v33
  %v137 = vunpack.c.h.b16 %v33
  %v138 = vunpack.c.l.b16 %v34
  %v139 = vunpack.c.h.b16 %v34
  %v140 = vunpack.c.l.b16 %v35
  %v141 = vunpack.c.h.b16 %v35
  %v142 = vunpack.c.l.b16 %v36
  %v143 = vunpack.c.h.b16 %v36
  %v144 = vunpack.c.l.b16 %v37
  %v145 = vunpack.c.h.b16 %v37
  %v146 = vunpack.c.l.b16 %v38
  %v147 = vunpack.c.h.b16 %v38
  %v148 = vunpack.c.l.b16 %v39
  %v149 = vunpack.c.h.b16 %v39
  %v150 = vunpack.c.l.b16 %v40
  %v151 = vunpack.c.h.b16 %v40
  %v152 = vunpack.c.l.b16 %v41
  %v153 = vunpack.c.h.b16 %v41
  %v154 = vunpack.c.l.b16 %v42
  %v155 = vunpack.c.h.b16 %v42
  %v156 = vunpack.c.l.b16 %v43
  %v157 = vunpack.c.h.b16 %v43
  %v158 = vunpack.c.l.b16 %v44
  %v159 = vunpack.c.h.b16 %v44
  %v160 = vunpack.c.l.b16 %v45
  %v161 = vunpack.c.h.b16 %v45
  %v162 = vunpack.c.l.b16 %v46
  %v163 = vunpack.c.h.b16 %v46
  %v164 = vunpack.c.l.b16 %v47
  %v165 = vunpack.c.h.b16 %v47
  %v166 = vpack.c.b16 %v104, %v102
  %v167 = vpack.c.b16 %v105, %v103
  %v168 = vpack.c.b16 %v108, %v106
  %v169 = vpack.c.b16 %v109, %v107
  %v170 = vpack.c.b16 %v112, %v110
  %v171 = vpack.c.b16 %v113, %v111
  %v172 = vpack.c.b16 %v116, %v114
  %v173 = vpack.c.b16 %v117, %v115
  %v174 = vpack.c.b16 %v120, %v118
  %v175 = vpack.c.b16 %v121, %v119
  %v176 = vpack.c.b16 %v124, %v122
  %v177 = vpack.c.b16 %v125, %v123
  %v178 = vpack.c.b16 %v128, %v126
  %v179 = vpack.c.b16 %v129, %v127
  %v180 = vpack.c.b16 %v132, %v130
  %v181 = vpack.c.b16 %v133, %v131
  %v182 = vpack.c.b16 %v136, %v134
  %v183 = vpack.c.b16 %v137, %v135
  %v184 = vpack.c.b16 %v140, %v138
  %v185 = vpack.c.b16 %v141, %v139
  %v186 = vpack.c.b16 %v144, %v142
  %v187 = vpack.c.b16 %v145, %v143
  %v188 = vpack.c.b16 %v148, %v146
  %v189 = vpack.c.b16 %v149, %v147
  %v190 = vpack.c.b16 %v152, %v150
  %v191 = vpack.c.b16 %v153, %v151
  %v192 = vpack.c.b16 %v156, %v154
  %v193 = vpack.c.b16 %v157, %v155
  %v194 = vpack.c.b16 %v160, %v158
  %v195 = vpack.c.b16 %v161, %v159
  %v196 = vpack.c.b16 %v164, %v162
  %v197 = vpack.c.b16 %v165, %v163
  %230 = vmatpush.bf16.msra.mxu0 %v180
  %231 = vmatpush.bf16.msra.mxu0 %v178
  %232 = vmatpush.bf16.msra.mxu0 %v176
  %233 = vmatpush.bf16.msra.mxu0 %v174
  %234 = vmatpush.bf16.msra.mxu0 %v172
  %235 = vmatpush.bf16.msra.mxu0 %v170
  %236 = vmatpush.bf16.msra.mxu0 %v168
  %237 = vmatpush.bf16.msra.mxu0 %v166
  %238 = vmatmul.bf16.gmra.mxu0 %v66
  %v239 = vpop.f32.mrf.mxu0
  %v240 = vadd.f32 %v53, %v239
  %v241 = vpop.f32.mrf.mxu0
  %v242 = vadd.f32 %v58, %v241
  %243 = vdwg.mxu0
  %244 = vmatpush.bf16.msra.mxu0 %v196
  %245 = vmatpush.bf16.msra.mxu0 %v194
  %246 = vmatpush.bf16.msra.mxu0 %v192
  %247 = vmatpush.bf16.msra.mxu0 %v190
  %248 = vmatpush.bf16.msra.mxu0 %v188
  %249 = vmatpush.bf16.msra.mxu0 %v186
  %250 = vmatpush.bf16.msra.mxu0 %v184
  %251 = vmatpush.bf16.msra.mxu0 %v182
  %252 = vmatmul.bf16.gmra.mxu0 %v67
  %v253 = vpop.f32.mrf.mxu0
  %v254 = vadd.f32 %v240, %v253
  %v255 = vpop.f32.mrf.mxu0
  %v256 = vadd.f32 %v242, %v255
  %257 = vdwg.mxu0
  %258 = vmatpush.bf16.msra.mxu0 %v181
  %259 = vmatpush.bf16.msra.mxu0 %v179
  %260 = vmatpush.bf16.msra.mxu0 %v177
  %261 = vmatpush.bf16.msra.mxu0 %v175
  %262 = vmatpush.bf16.msra.mxu0 %v173
  %263 = vmatpush.bf16.msra.mxu0 %v171
  %264 = vmatpush.bf16.msra.mxu0 %v169
  %265 = vmatpush.bf16.msra.mxu0 %v167
  %266 = vmatmul.bf16.gmra.mxu0 %v66
  %v267 = vpop.f32.mrf.mxu0
  %v268 = vadd.f32 %v53, %v267
  %v269 = vpop.f32.mrf.mxu0
  %v270 = vadd.f32 %v58, %v269
  %271 = vdwg.mxu0
  %272 = vmatpush.bf16.msra.mxu0 %v197
  %273 = vmatpush.bf16.msra.mxu0 %v195
  %274 = vmatpush.bf16.msra.mxu0 %v193
  %275 = vmatpush.bf16.msra.mxu0 %v191
  %276 = vmatpush.bf16.msra.mxu0 %v189
  %277 = vmatpush.bf16.msra.mxu0 %v187
  %278 = vmatpush.bf16.msra.mxu0 %v185
  %279 = vmatpush.bf16.msra.mxu0 %v183
  %280 = vmatmul.bf16.gmra.mxu0 %v67
  %v281 = vpop.f32.mrf.mxu0
  %v282 = vadd.f32 %v268, %v281
  %v283 = vpop.f32.mrf.mxu0
  %v284 = vadd.f32 %v270, %v283
  %285 = vdwg.mxu0
  %v286 = vmax.f32 %v254, 0.0
  %v287 = vmax.f32 %v282, 0.0
  %v288 = vmax.f32 %v256, 0.0
  %v289 = vmax.f32 %v284, 0.0
  %v290 = vpack.c.bf16 %v287, %v286
  %v291 = vpack.c.bf16 %v289, %v288
  %292 = vst [vmem:[%s3] sm:$0xff] %v290
  %293 = vst [vmem:[%s3 + $0x8] sm:$0xff] %v291
  // Predicated region
  $region14: #{predictive_autoencoder.8} parent=0 // pred_check
    _
  $region15: #{predictive_autoencoder.8} parent=0 // pred_check_branch
    %295 = sbr.rel (0) target = $region17
  $region16: #{predictive_autoencoder.8} parent=0 // pred_region
    _
  $region17: #{predictive_autoencoder.8} parent=0 // pred_fallthru
    _
  // Predicated region
  $region18: #{predictive_autoencoder.8} parent=0 // pred_check
    _
  $region19: #{predictive_autoencoder.8} parent=0 // pred_check_branch
    %297 = sbr.rel (0) target = $region21
  $region20: #{predictive_autoencoder.8} parent=0 // pred_region
    _
  $region21: #{predictive_autoencoder.8} parent=0 // pred_fallthru
    _

// kernel: predictive_autoencoder.10
$region0: #{predictive_autoencoder.10}
  #allocation0 [shape = 'u32[]', space=smem, size = 0x4, offset = 0x4, fixed_abs, tag = 'smem constant byte address 0x4 - core index']
  #allocation1 [shape = 'u32[72,128]{1,0:T(1,128)}', space=vmem, size = 0x9000, scoped, tag = 'internal scratch']
  #allocation2 [shape = 'f32[8,256]{1,0:T(8,128)}', space=vmem, size = 0x2000, scoped, tag = 'scratch operand']
  %s0 = inlined_call_operand.vmem [shape: f32[2,8,768], index: 0, kind: input, shape index: {}]
  %s1 = inlined_call_operand.vmem [shape: bf16[256,768], index: 1, kind: input, shape index: {}]
  %s2 = inlined_call_operand.vmem [shape: f32[1,768], index: 2, kind: input, shape index: {}]
  %s3 = inlined_call_operand.vmem [shape: f32[2,8,256], index: 3, kind: output, shape index: {}]
  %s4 = sld [smem:[#allocation0]]
  $region49: #{predictive_autoencoder.10} parent=0
    _
  %s6 = ssub.s32 1, %s4
  %s7 = scalar_select 0, %s6, %s4
  loop: start=0, step=1, limit=4
  $region2: #{predictive_autoencoder.10} parent=0 // loop_pre_header
    _
  $region3: #{predictive_autoencoder.10} parent=0 // loop_header
    %s9 = sphi 0, %s13
    %p10 = scmp.ge.s32.totalorder %s9, 4
    %s19 = sphi 0, %s21
    %s22 = sphi 0, %s19
    %s23 = sphi 0, %s22
    %s39 = sphi 0, %s23
    %s43 = sphi 0, %s43
    %s45 = sphi 0, %s43
    %s46 = sphi 0, %s45
    %s60 = sphi 0, %s46
    %s64 = sphi 0, %s64
    %s66 = sphi 0, %s64
    %s67 = sphi 0, %s66
    %s81 = sphi 0, %s67
    %s87 = sphi 0, %s89
    %s90 = sphi 0, %s87
    %s91 = sphi 0, %s90
    %s107 = sphi 0, %s91
  $region4: #{predictive_autoencoder.10} parent=0 // loop_header_branch
    %12 = sbr.rel (%p10) target = $region8
  $region5: #{predictive_autoencoder.10} parent=0 // loop_body
    %s14 = ssub.s32 %s9, 1
    %s15 = ssub.s32 %s9, 2
    %s16 = sadd.s32 %s9, 1
    %s17 = ssub.s32 %s9, %s16
    %p18 = scmp.eq.s32.totalorder %s17, 0
    %s20 = sadd.s32 %s19, 1
    %s21 = scalar_select %p18, %s19, %s20
    %p24 = pneg %p18
    %p25 = scmp.eq.s32.totalorder %s9, 1
    %p26 = por %p24, %p25
    %p27 = scmp.ne.s32.totalorder %s19, %s22
    %p28 = scmp.eq.s32.totalorder %s9, 0
    %p29 = por %p27, %p28
    %p30 = scmp.ne.s32.totalorder %s19, %s22
    %p31 = scmp.eq.s32.totalorder %s14, 1
    %p32 = por %p30, %p31
    %p33 = scmp.ne.s32.totalorder %s22, %s23
    %p34 = scmp.eq.s32.totalorder %s14, 0
    %p35 = por %p33, %p34
    %p36 = scmp.ne.s32.totalorder %s22, %s23
    %p37 = scmp.eq.s32.totalorder %s15, 1
    %p38 = por %p36, %p37
    %p40 = scmp.ne.s32.totalorder %s23, %s39
    %p41 = scmp.eq.s32.totalorder %s15, 0
    %p42 = por %p40, %p41
    %s44 = sadd.s32 %s43, 1
    %p47 = scmp.eq.s32.totalorder %s9, 1
    %p48 = scmp.ne.s32.totalorder %s43, %s45
    %p49 = scmp.eq.s32.totalorder %s9, 0
    %p50 = por %p48, %p49
    %p51 = scmp.ne.s32.totalorder %s43, %s45
    %p52 = scmp.eq.s32.totalorder %s14, 1
    %p53 = por %p51, %p52
    %p54 = scmp.ne.s32.totalorder %s45, %s46
    %p55 = scmp.eq.s32.totalorder %s14, 0
    %p56 = por %p54, %p55
    %p57 = scmp.ne.s32.totalorder %s45, %s46
    %p58 = scmp.eq.s32.totalorder %s15, 1
    %p59 = por %p57, %p58
    %p61 = scmp.ne.s32.totalorder %s46, %s60
    %p62 = scmp.eq.s32.totalorder %s15, 0
    %p63 = por %p61, %p62
    %s65 = sadd.s32 %s64, 1
    %p68 = scmp.eq.s32.totalorder %s9, 1
    %p69 = scmp.ne.s32.totalorder %s64, %s66
    %p70 = scmp.eq.s32.totalorder %s9, 0
    %p71 = por %p69, %p70
    %p72 = scmp.ne.s32.totalorder %s64, %s66
    %p73 = scmp.eq.s32.totalorder %s14, 1
    %p74 = por %p72, %p73
    %p75 = scmp.ne.s32.totalorder %s66, %s67
    %p76 = scmp.eq.s32.totalorder %s14, 0
    %p77 = por %p75, %p76
    %p78 = scmp.ne.s32.totalorder %s66, %s67
    %p79 = scmp.eq.s32.totalorder %s15, 1
    %p80 = por %p78, %p79
    %p82 = scmp.ne.s32.totalorder %s67, %s81
    %p83 = scmp.eq.s32.totalorder %s15, 0
    %p84 = por %p82, %p83
    %s85 = ssub.s32 %s9, %s16
    %p86 = scmp.eq.s32.totalorder %s85, 0
    %s88 = sadd.s32 %s87, 1
    %s89 = scalar_select %p86, %s87, %s88
    %p92 = pneg %p86
    %p93 = scmp.eq.s32.totalorder %s9, 1
    %p94 = por %p92, %p93
    %p95 = scmp.ne.s32.totalorder %s87, %s90
    %p96 = scmp.eq.s32.totalorder %s9, 0
    %p97 = por %p95, %p96
    %p98 = scmp.ne.s32.totalorder %s87, %s90
    %p99 = scmp.eq.s32.totalorder %s14, 1
    %p100 = por %p98, %p99
    %p101 = scmp.ne.s32.totalorder %s90, %s91
    %p102 = scmp.eq.s32.totalorder %s14, 0
    %p103 = por %p101, %p102
    %p104 = scmp.ne.s32.totalorder %s90, %s91
    %p105 = scmp.eq.s32.totalorder %s15, 1
    %p106 = por %p104, %p105
    %p108 = scmp.ne.s32.totalorder %s91, %s107
    %p109 = scmp.eq.s32.totalorder %s15, 0
    %p110 = por %p108, %p109
    %p111 = scmp.le.s32.totalorder 1, %s9
    %p112 = scmp.lt.s32.totalorder %s9, 3
    %p113 = pnand %p111, %p112
    %p114 = pneg %p113
    // Predicated region
    $region9: #{predictive_autoencoder.10} parent=5 // pred_check
      _
    $region10: #{predictive_autoencoder.10} parent=5 // pred_check_branch
      %116 = sbr.rel (%p113) target = $region12
    $region11: #{predictive_autoencoder.10} parent=5 // pred_region
      %s117 = ssub.s32 %s9, 1
      // Predicated region
      $region13: #{predictive_autoencoder.10} parent=11 // pred_check
        %p118 = pneg %p56
      $region14: #{predictive_autoencoder.10} parent=11 // pred_check_branch
        %120 = sbr.rel (%p118) target = $region16
      $region15: #{predictive_autoencoder.10} parent=11 // pred_region
        _
      $region16: #{predictive_autoencoder.10} parent=11 // pred_fallthru
        _
      // Predicated region
      $region17: #{predictive_autoencoder.10} parent=11 // pred_check
        %p121 = pneg %p77
      $region18: #{predictive_autoencoder.10} parent=11 // pred_check_branch
        %123 = sbr.rel (%p121) target = $region20
      $region19: #{predictive_autoencoder.10} parent=11 // pred_region
        _
      $region20: #{predictive_autoencoder.10} parent=11 // pred_fallthru
        _
    $region12: #{predictive_autoencoder.10} parent=5 // pred_fallthru
      _
    %p124 = scmp.lt.s32.totalorder %s9, 2
    // Predicated region
    $region21: #{predictive_autoencoder.10} parent=5 // pred_check
      %p125 = pneg %p124
    $region22: #{predictive_autoencoder.10} parent=5 // pred_check_branch
      %127 = sbr.rel (%p125) target = $region24
    $region23: #{predictive_autoencoder.10} parent=5 // pred_region
      // Predicated region
      $region25: #{predictive_autoencoder.10} parent=23 // pred_check
        %p128 = pneg %p29
      $region26: #{predictive_autoencoder.10} parent=23 // pred_check_branch
        %130 = sbr.rel (%p128) target = $region28
      $region27: #{predictive_autoencoder.10} parent=23 // pred_region
        %p131 = scmp.lt.s32.totalorder %s9, 1
        %s132 = scalar_select %p131, %s9, 1
        %s133 = smul.addr %s132, 6
        %s134 = smul.addr %s133, 8
        %s135 = scalar_lea.vmem %s0, %s134
      $region28: #{predictive_autoencoder.10} parent=23 // pred_fallthru
        _
    $region24: #{predictive_autoencoder.10} parent=5 // pred_fallthru
      _
    %p136 = scmp.le.s32.totalorder 1, %s9
    %p137 = scmp.lt.s32.totalorder %s9, 3
    %p138 = pnand %p136, %p137
    %p139 = pneg %p138
    // Predicated region
    $region29: #{predictive_autoencoder.10} parent=5 // pred_check
      _
    $region30: #{predictive_autoencoder.10} parent=5 // pred_check_branch
      %141 = sbr.rel (%p138) target = $region32
    $region31: #{predictive_autoencoder.10} parent=5 // pred_region
      %s142 = ssub.s32 %s9, 1
      %p143 = scmp.lt.s32.totalorder %s14, 1
      %s144 = scalar_select %p143, %s14, 1
      %s145 = smul.addr %s144, 6
      %s146 = smul.addr %s145, 8
      %s147 = scalar_lea.vmem %s0, %s146
      %p148 = pneg %p35
      %p149 = pneg %p32
      %p150 = pneg %p56
      %p151 = pneg %p53
      %p152 = pneg %p77
      %p153 = pneg %p74
      %p154 = pneg %p103
      %p155 = pneg %p100
      %p156 = scmp.lt.s32.totalorder %s14, 1
      %s157 = scalar_select %p156, %s14, 1
      %s158 = smul.addr %s157, 2
      %s159 = smul.addr %s158, 8
      %s160 = scalar_lea.vmem %s3, %s159
      %p161 = scmp.lt.s32.totalorder %s14, 1
      %s162 = scalar_select %p161, %s14, 1
      %s163 = smul.addr %s162, 6
      %s164 = smul.addr %s163, 8
      %s165 = scalar_lea.vmem %s0, %s164
      %p166 = scmp.lt.s32.totalorder %s14, 1
      %s167 = scalar_select %p166, %s14, 1
      %s168 = smul.addr %s167, 2
      %s169 = smul.addr %s168, 8
      %s170 = scalar_lea.vmem %s3, %s169
      %p171 = scmp.eq.s32.totalorder %s14, 0
      // Predicated region
      $region33: #{predictive_autoencoder.10} parent=31 // pred_check
        %p172 = pneg %p171
      $region34: #{predictive_autoencoder.10} parent=31 // pred_check_branch
        %174 = sbr.rel (%p172) target = $region36
      $region35: #{predictive_autoencoder.10} parent=31 // pred_region
        %175 = vst [vmem:[#allocation2] sm:$0xff] 0.0
        %176 = vst [vmem:[#allocation2 + $0x8] sm:$0xff] 0.0
      $region36: #{predictive_autoencoder.10} parent=31 // pred_fallthru
        _
      %v177 = vld [vmem:[%s165] sm:$0xff]
      %v178 = vld [vmem:[%s165 + $0x8] sm:$0xff]
      %v179 = vld [vmem:[%s165 + $0x10] sm:$0xff]
      %v180 = vld [vmem:[%s165 + $0x18] sm:$0xff]
      %v181 = vld [vmem:[%s165 + $0x20] sm:$0xff]
      %v182 = vld [vmem:[%s165 + $0x28] sm:$0xff]
      %v183 = vld [vmem:[#allocation2] sm:$0xff]
      %v184 = vld [vmem:[#allocation2 + $0x8] sm:$0xff]
      %v185 = vpack.c.bf16 %v183, %v183
      %v186 = vpack.c.bf16 %v184, %v184
      %v187 = vld [vmem:[%s1] sm:$0xff]
      %v188 = vld [vmem:[%s1 + $0x8] sm:$0xff]
      %v189 = vld [vmem:[%s1 + $0x10] sm:$0xff]
      %v190 = vld [vmem:[%s1 + $0x18] sm:$0xff]
      %v191 = vld [vmem:[%s1 + $0x20] sm:$0xff]
      %v192 = vld [vmem:[%s1 + $0x28] sm:$0xff]
      %v193 = vld [vmem:[%s1 + $0x30] sm:$0xff]
      %v194 = vld [vmem:[%s1 + $0x38] sm:$0xff]
      %v195 = vld [vmem:[%s1 + $0x40] sm:$0xff]
      %v196 = vld [vmem:[%s1 + $0x48] sm:$0xff]
      %v197 = vld [vmem:[%s1 + $0x50] sm:$0xff]
      %v198 = vld [vmem:[%s1 + $0x58] sm:$0xff]
      %v199 = vld [vmem:[%s1 + $0x60] sm:$0xff]
      %v200 = vld [vmem:[%s1 + $0x68] sm:$0xff]
      %v201 = vld [vmem:[%s1 + $0x70] sm:$0xff]
      %v202 = vld [vmem:[%s1 + $0x78] sm:$0xff]
      %v203 = vld [vmem:[%s1 + $0x80] sm:$0xff]
      %v204 = vld [vmem:[%s1 + $0x88] sm:$0xff]
      %v205 = vld [vmem:[%s1 + $0x90] sm:$0xff]
      %v206 = vld [vmem:[%s1 + $0x98] sm:$0xff]
      %v207 = vld [vmem:[%s1 + $0xa0] sm:$0xff]
      %v208 = vld [vmem:[%s1 + $0xa8] sm:$0xff]
      %v209 = vld [vmem:[%s1 + $0xb0] sm:$0xff]
      %v210 = vld [vmem:[%s1 + $0xb8] sm:$0xff]
      %v211 = vld [vmem:[%s1 + $0xc0] sm:$0xff]
      %v212 = vld [vmem:[%s1 + $0xc8] sm:$0xff]
      %v213 = vld [vmem:[%s1 + $0xd0] sm:$0xff]
      %v214 = vld [vmem:[%s1 + $0xd8] sm:$0xff]
      %v215 = vld [vmem:[%s1 + $0xe0] sm:$0xff]
      %v216 = vld [vmem:[%s1 + $0xe8] sm:$0xff]
      %v217 = vld [vmem:[%s1 + $0xf0] sm:$0xff]
      %v218 = vld [vmem:[%s1 + $0xf8] sm:$0xff]
      %v219 = vld [vmem:[%s1 + $0x100] sm:$0xff]
      %v220 = vld [vmem:[%s1 + $0x108] sm:$0xff]
      %v221 = vld [vmem:[%s1 + $0x110] sm:$0xff]
      %v222 = vld [vmem:[%s1 + $0x118] sm:$0xff]
      %v223 = vld [vmem:[%s1 + $0x120] sm:$0xff]
      %v224 = vld [vmem:[%s1 + $0x128] sm:$0xff]
      %v225 = vld [vmem:[%s1 + $0x130] sm:$0xff]
      %v226 = vld [vmem:[%s1 + $0x138] sm:$0xff]
      %v227 = vld [vmem:[%s1 + $0x140] sm:$0xff]
      %v228 = vld [vmem:[%s1 + $0x148] sm:$0xff]
      %v229 = vld [vmem:[%s1 + $0x150] sm:$0xff]
      %v230 = vld [vmem:[%s1 + $0x158] sm:$0xff]
      %v231 = vld [vmem:[%s1 + $0x160] sm:$0xff]
      %v232 = vld [vmem:[%s1 + $0x168] sm:$0xff]
      %v233 = vld [vmem:[%s1 + $0x170] sm:$0xff]
      %v234 = vld [vmem:[%s1 + $0x178] sm:$0xff]
      %v235 = vld [vmem:[%s1 + $0x180] sm:$0xff]
      %v236 = vld [vmem:[%s1 + $0x188] sm:$0xff]
      %v237 = vld [vmem:[%s1 + $0x190] sm:$0xff]
      %v238 = vld [vmem:[%s1 + $0x198] sm:$0xff]
      %v239 = vld [vmem:[%s1 + $0x1a0] sm:$0xff]
      %v240 = vld [vmem:[%s1 + $0x1a8] sm:$0xff]
      %v241 = vld [vmem:[%s1 + $0x1b0] sm:$0xff]
      %v242 = vld [vmem:[%s1 + $0x1b8] sm:$0xff]
      %v243 = vld [vmem:[%s1 + $0x1c0] sm:$0xff]
      %v244 = vld [vmem:[%s1 + $0x1c8] sm:$0xff]
      %v245 = vld [vmem:[%s1 + $0x1d0] sm:$0xff]
      %v246 = vld [vmem:[%s1 + $0x1d8] sm:$0xff]
      %v247 = vld [vmem:[%s1 + $0x1e0] sm:$0xff]
      %v248 = vld [vmem:[%s1 + $0x1e8] sm:$0xff]
      %v249 = vld [vmem:[%s1 + $0x1f0] sm:$0xff]
      %v250 = vld [vmem:[%s1 + $0x1f8] sm:$0xff]
      %v251 = vld [vmem:[%s1 + $0x200] sm:$0xff]
      %v252 = vld [vmem:[%s1 + $0x208] sm:$0xff]
      %v253 = vld [vmem:[%s1 + $0x210] sm:$0xff]
      %v254 = vld [vmem:[%s1 + $0x218] sm:$0xff]
      %v255 = vld [vmem:[%s1 + $0x220] sm:$0xff]
      %v256 = vld [vmem:[%s1 + $0x228] sm:$0xff]
      %v257 = vld [vmem:[%s1 + $0x230] sm:$0xff]
      %v258 = vld [vmem:[%s1 + $0x238] sm:$0xff]
      %v259 = vld [vmem:[%s1 + $0x240] sm:$0xff]
      %v260 = vld [vmem:[%s1 + $0x248] sm:$0xff]
      %v261 = vld [vmem:[%s1 + $0x250] sm:$0xff]
      %v262 = vld [vmem:[%s1 + $0x258] sm:$0xff]
      %v263 = vld [vmem:[%s1 + $0x260] sm:$0xff]
      %v264 = vld [vmem:[%s1 + $0x268] sm:$0xff]
      %v265 = vld [vmem:[%s1 + $0x270] sm:$0xff]
      %v266 = vld [vmem:[%s1 + $0x278] sm:$0xff]
      %v267 = vld [vmem:[%s1 + $0x280] sm:$0xff]
      %v268 = vld [vmem:[%s1 + $0x288] sm:$0xff]
      %v269 = vld [vmem:[%s1 + $0x290] sm:$0xff]
      %v270 = vld [vmem:[%s1 + $0x298] sm:$0xff]
      %v271 = vld [vmem:[%s1 + $0x2a0] sm:$0xff]
      %v272 = vld [vmem:[%s1 + $0x2a8] sm:$0xff]
      %v273 = vld [vmem:[%s1 + $0x2b0] sm:$0xff]
      %v274 = vld [vmem:[%s1 + $0x2b8] sm:$0xff]
      %v275 = vld [vmem:[%s1 + $0x2c0] sm:$0xff]
      %v276 = vld [vmem:[%s1 + $0x2c8] sm:$0xff]
      %v277 = vld [vmem:[%s1 + $0x2d0] sm:$0xff]
      %v278 = vld [vmem:[%s1 + $0x2d8] sm:$0xff]
      %v279 = vld [vmem:[%s1 + $0x2e0] sm:$0xff]
      %v280 = vld [vmem:[%s1 + $0x2e8] sm:$0xff]
      %v281 = vld [vmem:[%s1 + $0x2f0] sm:$0xff]
      %v282 = vld [vmem:[%s1 + $0x2f8] sm:$0xff]
      %v283 = vld [vmem:[%s2] sm:$0x3f]
      %v285 = vperm.slane %v283, 0
      %v286 = vperm.slane %v283, 1
      %v287 = vperm.slane %v283, 2
      %v288 = vperm.slane %v283, 3
      %v289 = vperm.slane %v283, 4
      %v290 = vperm.slane %v283, 5
      %v393 = vunpack.c.l.b16 %v187
      %v394 = vunpack.c.h.b16 %v187
      %v395 = vunpack.c.l.b16 %v188
      %v396 = vunpack.c.h.b16 %v188
      %v397 = vunpack.c.l.b16 %v189
      %v398 = vunpack.c.h.b16 %v189
      %v399 = vunpack.c.l.b16 %v190
      %v400 = vunpack.c.h.b16 %v190
      %v401 = vunpack.c.l.b16 %v191
      %v402 = vunpack.c.h.b16 %v191
      %v403 = vunpack.c.l.b16 %v192
      %v404 = vunpack.c.h.b16 %v192
      %v405 = vunpack.c.l.b16 %v193
      %v406 = vunpack.c.h.b16 %v193
      %v407 = vunpack.c.l.b16 %v194
      %v408 = vunpack.c.h.b16 %v194
      %v409 = vunpack.c.l.b16 %v195
      %v410 = vunpack.c.h.b16 %v195
      %v411 = vunpack.c.l.b16 %v196
      %v412 = vunpack.c.h.b16 %v196
      %v413 = vunpack.c.l.b16 %v197
      %v414 = vunpack.c.h.b16 %v197
      %v415 = vunpack.c.l.b16 %v198
      %v416 = vunpack.c.h.b16 %v198
      %v417 = vunpack.c.l.b16 %v199
      %v418 = vunpack.c.h.b16 %v199
      %v419 = vunpack.c.l.b16 %v200
      %v420 = vunpack.c.h.b16 %v200
      %v421 = vunpack.c.l.b16 %v201
      %v422 = vunpack.c.h.b16 %v201
      %v423 = vunpack.c.l.b16 %v202
      %v424 = vunpack.c.h.b16 %v202
      %v425 = vunpack.c.l.b16 %v203
      %v426 = vunpack.c.h.b16 %v203
      %v427 = vunpack.c.l.b16 %v204
      %v428 = vunpack.c.h.b16 %v204
      %v429 = vunpack.c.l.b16 %v205
      %v430 = vunpack.c.h.b16 %v205
      %v431 = vunpack.c.l.b16 %v206
      %v432 = vunpack.c.h.b16 %v206
      %v433 = vunpack.c.l.b16 %v207
      %v434 = vunpack.c.h.b16 %v207
      %v435 = vunpack.c.l.b16 %v208
      %v436 = vunpack.c.h.b16 %v208
      %v437 = vunpack.c.l.b16 %v209
      %v438 = vunpack.c.h.b16 %v209
      %v439 = vunpack.c.l.b16 %v210
      %v440 = vunpack.c.h.b16 %v210
      %v441 = vunpack.c.l.b16 %v211
      %v442 = vunpack.c.h.b16 %v211
      %v443 = vunpack.c.l.b16 %v212
      %v444 = vunpack.c.h.b16 %v212
      %v445 = vunpack.c.l.b16 %v213
      %v446 = vunpack.c.h.b16 %v213
      %v447 = vunpack.c.l.b16 %v214
      %v448 = vunpack.c.h.b16 %v214
      %v449 = vunpack.c.l.b16 %v215
      %v450 = vunpack.c.h.b16 %v215
      %v451 = vunpack.c.l.b16 %v216
      %v452 = vunpack.c.h.b16 %v216
      %v453 = vunpack.c.l.b16 %v217
      %v454 = vunpack.c.h.b16 %v217
      %v455 = vunpack.c.l.b16 %v218
      %v456 = vunpack.c.h.b16 %v218
      %v457 = vunpack.c.l.b16 %v219
      %v458 = vunpack.c.h.b16 %v219
      %v459 = vunpack.c.l.b16 %v220
      %v460 = vunpack.c.h.b16 %v220
      %v461 = vunpack.c.l.b16 %v221
      %v462 = vunpack.c.h.b16 %v221
      %v463 = vunpack.c.l.b16 %v222
      %v464 = vunpack.c.h.b16 %v222
      %v465 = vunpack.c.l.b16 %v223
      %v466 = vunpack.c.h.b16 %v223
      %v467 = vunpack.c.l.b16 %v224
      %v468 = vunpack.c.h.b16 %v224
      %v469 = vunpack.c.l.b16 %v225
      %v470 = vunpack.c.h.b16 %v225
      %v471 = vunpack.c.l.b16 %v226
      %v472 = vunpack.c.h.b16 %v226
      %v473 = vunpack.c.l.b16 %v227
      %v474 = vunpack.c.h.b16 %v227
      %v475 = vunpack.c.l.b16 %v228
      %v476 = vunpack.c.h.b16 %v228
      %v477 = vunpack.c.l.b16 %v229
      %v478 = vunpack.c.h.b16 %v229
      %v479 = vunpack.c.l.b16 %v230
      %v480 = vunpack.c.h.b16 %v230
      %v481 = vunpack.c.l.b16 %v231
      %v482 = vunpack.c.h.b16 %v231
      %v483 = vunpack.c.l.b16 %v232
      %v484 = vunpack.c.h.b16 %v232
      %v485 = vunpack.c.l.b16 %v233
      %v486 = vunpack.c.h.b16 %v233
      %v487 = vunpack.c.l.b16 %v234
      %v488 = vunpack.c.h.b16 %v234
      %v489 = vunpack.c.l.b16 %v235
      %v490 = vunpack.c.h.b16 %v235
      %v491 = vunpack.c.l.b16 %v236
      %v492 = vunpack.c.h.b16 %v236
      %v493 = vunpack.c.l.b16 %v237
      %v494 = vunpack.c.h.b16 %v237
      %v495 = vunpack.c.l.b16 %v238
      %v496 = vunpack.c.h.b16 %v238
      %v497 = vunpack.c.l.b16 %v239
      %v498 = vunpack.c.h.b16 %v239
      %v499 = vunpack.c.l.b16 %v240
      %v500 = vunpack.c.h.b16 %v240
      %v501 = vunpack.c.l.b16 %v241
      %v502 = vunpack.c.h.b16 %v241
      %v503 = vunpack.c.l.b16 %v242
      %v504 = vunpack.c.h.b16 %v242
      %v505 = vunpack.c.l.b16 %v243
      %v506 = vunpack.c.h.b16 %v243
      %v507 = vunpack.c.l.b16 %v244
      %v508 = vunpack.c.h.b16 %v244
      %v509 = vunpack.c.l.b16 %v245
      %v510 = vunpack.c.h.b16 %v245
      %v511 = vunpack.c.l.b16 %v246
      %v512 = vunpack.c.h.b16 %v246
      %v513 = vunpack.c.l.b16 %v247
      %v514 = vunpack.c.h.b16 %v247
      %v515 = vunpack.c.l.b16 %v248
      %v516 = vunpack.c.h.b16 %v248
      %v517 = vunpack.c.l.b16 %v249
      %v518 = vunpack.c.h.b16 %v249
      %v519 = vunpack.c.l.b16 %v250
      %v520 = vunpack.c.h.b16 %v250
      %v521 = vunpack.c.l.b16 %v251
      %v522 = vunpack.c.h.b16 %v251
      %v523 = vunpack.c.l.b16 %v252
      %v524 = vunpack.c.h.b16 %v252
      %v525 = vunpack.c.l.b16 %v253
      %v526 = vunpack.c.h.b16 %v253
      %v527 = vunpack.c.l.b16 %v254
      %v528 = vunpack.c.h.b16 %v254
      %v529 = vunpack.c.l.b16 %v255
      %v530 = vunpack.c.h.b16 %v255
      %v531 = vunpack.c.l.b16 %v256
      %v532 = vunpack.c.h.b16 %v256
      %v533 = vunpack.c.l.b16 %v257
      %v534 = vunpack.c.h.b16 %v257
      %v535 = vunpack.c.l.b16 %v258
      %v536 = vunpack.c.h.b16 %v258
      %v537 = vunpack.c.l.b16 %v259
      %v538 = vunpack.c.h.b16 %v259
      %v539 = vunpack.c.l.b16 %v260
      %v540 = vunpack.c.h.b16 %v260
      %v541 = vunpack.c.l.b16 %v261
      %v542 = vunpack.c.h.b16 %v261
      %v543 = vunpack.c.l.b16 %v262
      %v544 = vunpack.c.h.b16 %v262
      %v545 = vunpack.c.l.b16 %v263
      %v546 = vunpack.c.h.b16 %v263
      %v547 = vunpack.c.l.b16 %v264
      %v548 = vunpack.c.h.b16 %v264
      %v549 = vunpack.c.l.b16 %v265
      %v550 = vunpack.c.h.b16 %v265
      %v551 = vunpack.c.l.b16 %v266
      %v552 = vunpack.c.h.b16 %v266
      %v553 = vunpack.c.l.b16 %v267
      %v554 = vunpack.c.h.b16 %v267
      %v555 = vunpack.c.l.b16 %v268
      %v556 = vunpack.c.h.b16 %v268
      %v557 = vunpack.c.l.b16 %v269
      %v558 = vunpack.c.h.b16 %v269
      %v559 = vunpack.c.l.b16 %v270
      %v560 = vunpack.c.h.b16 %v270
      %v561 = vunpack.c.l.b16 %v271
      %v562 = vunpack.c.h.b16 %v271
      %v563 = vunpack.c.l.b16 %v272
      %v564 = vunpack.c.h.b16 %v272
      %v565 = vunpack.c.l.b16 %v273
      %v566 = vunpack.c.h.b16 %v273
      %v567 = vunpack.c.l.b16 %v274
      %v568 = vunpack.c.h.b16 %v274
      %v569 = vunpack.c.l.b16 %v275
      %v570 = vunpack.c.h.b16 %v275
      %v571 = vunpack.c.l.b16 %v276
      %v572 = vunpack.c.h.b16 %v276
      %v573 = vunpack.c.l.b16 %v277
      %v574 = vunpack.c.h.b16 %v277
      %v575 = vunpack.c.l.b16 %v278
      %v576 = vunpack.c.h.b16 %v278
      %v577 = vunpack.c.l.b16 %v279
      %v578 = vunpack.c.h.b16 %v279
      %v579 = vunpack.c.l.b16 %v280
      %v580 = vunpack.c.h.b16 %v280
      %v581 = vunpack.c.l.b16 %v281
      %v582 = vunpack.c.h.b16 %v281
      %v583 = vunpack.c.l.b16 %v282
      %v584 = vunpack.c.h.b16 %v282
      %v585 = vpack.c.b16 %v399, %v393
      %v586 = vpack.c.b16 %v400, %v394
      %v587 = vpack.c.b16 %v401, %v395
      %v588 = vpack.c.b16 %v402, %v396
      %v589 = vpack.c.b16 %v403, %v397
      %v590 = vpack.c.b16 %v404, %v398
      %v591 = vpack.c.b16 %v411, %v405
      %v592 = vpack.c.b16 %v412, %v406
      %v593 = vpack.c.b16 %v413, %v407
      %v594 = vpack.c.b16 %v414, %v408
      %v595 = vpack.c.b16 %v415, %v409
      %v596 = vpack.c.b16 %v416, %v410
      %v597 = vpack.c.b16 %v423, %v417
      %v598 = vpack.c.b16 %v424, %v418
      %v599 = vpack.c.b16 %v425, %v419
      %v600 = vpack.c.b16 %v426, %v420
      %v601 = vpack.c.b16 %v427, %v421
      %v602 = vpack.c.b16 %v428, %v422
      %v603 = vpack.c.b16 %v435, %v429
      %v604 = vpack.c.b16 %v436, %v430
      %v605 = vpack.c.b16 %v437, %v431
      %v606 = vpack.c.b16 %v438, %v432
      %v607 = vpack.c.b16 %v439, %v433
      %v608 = vpack.c.b16 %v440, %v434
      %v609 = vpack.c.b16 %v447, %v441
      %v610 = vpack.c.b16 %v448, %v442
      %v611 = vpack.c.b16 %v449, %v443
      %v612 = vpack.c.b16 %v450, %v444
      %v613 = vpack.c.b16 %v451, %v445
      %v614 = vpack.c.b16 %v452, %v446
      %v615 = vpack.c.b16 %v459, %v453
      %v616 = vpack.c.b16 %v460, %v454
      %v617 = vpack.c.b16 %v461, %v455
      %v618 = vpack.c.b16 %v462, %v456
      %v619 = vpack.c.b16 %v463, %v457
      %v620 = vpack.c.b16 %v464, %v458
      %v621 = vpack.c.b16 %v471, %v465
      %v622 = vpack.c.b16 %v472, %v466
      %v623 = vpack.c.b16 %v473, %v467
      %v624 = vpack.c.b16 %v474, %v468
      %v625 = vpack.c.b16 %v475, %v469
      %v626 = vpack.c.b16 %v476, %v470
      %v627 = vpack.c.b16 %v483, %v477
      %v628 = vpack.c.b16 %v484, %v478
      %v629 = vpack.c.b16 %v485, %v479
      %v630 = vpack.c.b16 %v486, %v480
      %v631 = vpack.c.b16 %v487, %v481
      %v632 = vpack.c.b16 %v488, %v482
      %v633 = vpack.c.b16 %v495, %v489
      %v634 = vpack.c.b16 %v496, %v490
      %v635 = vpack.c.b16 %v497, %v491
      %v636 = vpack.c.b16 %v498, %v492
      %v637 = vpack.c.b16 %v499, %v493
      %v638 = vpack.c.b16 %v500, %v494
      %v639 = vpack.c.b16 %v507, %v501
      %v640 = vpack.c.b16 %v508, %v502
      %v641 = vpack.c.b16 %v509, %v503
      %v642 = vpack.c.b16 %v510, %v504
      %v643 = vpack.c.b16 %v511, %v505
      %v644 = vpack.c.b16 %v512, %v506
      %v645 = vpack.c.b16 %v519, %v513
      %v646 = vpack.c.b16 %v520, %v514
      %v647 = vpack.c.b16 %v521, %v515
      %v648 = vpack.c.b16 %v522, %v516
      %v649 = vpack.c.b16 %v523, %v517
      %v650 = vpack.c.b16 %v524, %v518
      %v651 = vpack.c.b16 %v531, %v525
      %v652 = vpack.c.b16 %v532, %v526
      %v653 = vpack.c.b16 %v533, %v527
      %v654 = vpack.c.b16 %v534, %v528
      %v655 = vpack.c.b16 %v535, %v529
      %v656 = vpack.c.b16 %v536, %v530
      %v657 = vpack.c.b16 %v543, %v537
      %v658 = vpack.c.b16 %v544, %v538
      %v659 = vpack.c.b16 %v545, %v539
      %v660 = vpack.c.b16 %v546, %v540
      %v661 = vpack.c.b16 %v547, %v541
      %v662 = vpack.c.b16 %v548, %v542
      %v663 = vpack.c.b16 %v555, %v549
      %v664 = vpack.c.b16 %v556, %v550
      %v665 = vpack.c.b16 %v557, %v551
      %v666 = vpack.c.b16 %v558, %v552
      %v667 = vpack.c.b16 %v559, %v553
      %v668 = vpack.c.b16 %v560, %v554
      %v669 = vpack.c.b16 %v567, %v561
      %v670 = vpack.c.b16 %v568, %v562
      %v671 = vpack.c.b16 %v569, %v563
      %v672 = vpack.c.b16 %v570, %v564
      %v673 = vpack.c.b16 %v571, %v565
      %v674 = vpack.c.b16 %v572, %v566
      %v675 = vpack.c.b16 %v579, %v573
      %v676 = vpack.c.b16 %v580, %v574
      %v677 = vpack.c.b16 %v581, %v575
      %v678 = vpack.c.b16 %v582, %v576
      %v679 = vpack.c.b16 %v583, %v577
      %v680 = vpack.c.b16 %v584, %v578
      %777 = vmatpush.bf16.msra.mxu0 %v627
      %778 = vmatpush.bf16.msra.mxu0 %v621
      %779 = vmatpush.bf16.msra.mxu0 %v615
      %780 = vmatpush.bf16.msra.mxu0 %v609
      %781 = vmatpush.bf16.msra.mxu0 %v603
      %782 = vmatpush.bf16.msra.mxu0 %v597
      %783 = vmatpush.bf16.msra.mxu0 %v591
      %784 = vmatpush.bf16.msra.mxu0 %v585
      %785 = vmatmul.bf16.gmra.mxu0 %v185
      %v786 = vpop.f32.mrf.mxu0
      %v787 = vadd.f32 %v285, %v786
      %v788 = vpop.f32.mrf.mxu0
      %789 = vdwg.mxu0
      %790 = vmatpush.bf16.msra.mxu0 %v675
      %791 = vmatpush.bf16.msra.mxu0 %v669
      %792 = vmatpush.bf16.msra.mxu0 %v663
      %793 = vmatpush.bf16.msra.mxu0 %v657
      %794 = vmatpush.bf16.msra.mxu0 %v651
      %795 = vmatpush.bf16.msra.mxu0 %v645
      %796 = vmatpush.bf16.msra.mxu0 %v639
      %797 = vmatpush.bf16.msra.mxu0 %v633
      %798 = vmatmul.bf16.gmra.mxu0 %v186
      %v799 = vpop.f32.mrf.mxu0
      %v800 = vadd.f32 %v787, %v799
      %v801 = vpop.f32.mrf.mxu0
      %802 = vdwg.mxu0
      %803 = vmatpush.bf16.msra.mxu0 %v628
      %804 = vmatpush.bf16.msra.mxu0 %v622
      %805 = vmatpush.bf16.msra.mxu0 %v616
      %806 = vmatpush.bf16.msra.mxu0 %v610
      %807 = vmatpush.bf16.msra.mxu0 %v604
      %808 = vmatpush.bf16.msra.mxu0 %v598
      %809 = vmatpush.bf16.msra.mxu0 %v592
      %810 = vmatpush.bf16.msra.mxu0 %v586
      %811 = vmatmul.bf16.gmra.mxu0 %v185
      %v812 = vpop.f32.mrf.mxu0
      %v813 = vadd.f32 %v286, %v812
      %v814 = vpop.f32.mrf.mxu0
      %815 = vdwg.mxu0
      %816 = vmatpush.bf16.msra.mxu0 %v676
      %817 = vmatpush.bf16.msra.mxu0 %v670
      %818 = vmatpush.bf16.msra.mxu0 %v664
      %819 = vmatpush.bf16.msra.mxu0 %v658
      %820 = vmatpush.bf16.msra.mxu0 %v652
      %821 = vmatpush.bf16.msra.mxu0 %v646
      %822 = vmatpush.bf16.msra.mxu0 %v640
      %823 = vmatpush.bf16.msra.mxu0 %v634
      %824 = vmatmul.bf16.gmra.mxu0 %v186
      %v825 = vpop.f32.mrf.mxu0
      %v826 = vadd.f32 %v813, %v825
      %v827 = vpop.f32.mrf.mxu0
      %828 = vdwg.mxu0
      %829 = vmatpush.bf16.msra.mxu0 %v629
      %830 = vmatpush.bf16.msra.mxu0 %v623
      %831 = vmatpush.bf16.msra.mxu0 %v617
      %832 = vmatpush.bf16.msra.mxu0 %v611
      %833 = vmatpush.bf16.msra.mxu0 %v605
      %834 = vmatpush.bf16.msra.mxu0 %v599
      %835 = vmatpush.bf16.msra.mxu0 %v593
      %836 = vmatpush.bf16.msra.mxu0 %v587
      %837 = vmatmul.bf16.gmra.mxu0 %v185
      %v838 = vpop.f32.mrf.mxu0
      %v839 = vadd.f32 %v287, %v838
      %v840 = vpop.f32.mrf.mxu0
      %841 = vdwg.mxu0
      %842 = vmatpush.bf16.msra.mxu0 %v677
      %843 = vmatpush.bf16.msra.mxu0 %v671
      %844 = vmatpush.bf16.msra.mxu0 %v665
      %845 = vmatpush.bf16.msra.mxu0 %v659
      %846 = vmatpush.bf16.msra.mxu0 %v653
      %847 = vmatpush.bf16.msra.mxu0 %v647
      %848 = vmatpush.bf16.msra.mxu0 %v641
      %849 = vmatpush.bf16.msra.mxu0 %v635
      %850 = vmatmul.bf16.gmra.mxu0 %v186
      %v851 = vpop.f32.mrf.mxu0
      %v852 = vadd.f32 %v839, %v851
      %v853 = vpop.f32.mrf.mxu0
      %854 = vdwg.mxu0
      %855 = vmatpush.bf16.msra.mxu0 %v630
      %856 = vmatpush.bf16.msra.mxu0 %v624
      %857 = vmatpush.bf16.msra.mxu0 %v618
      %858 = vmatpush.bf16.msra.mxu0 %v612
      %859 = vmatpush.bf16.msra.mxu0 %v606
      %860 = vmatpush.bf16.msra.mxu0 %v600
      %861 = vmatpush.bf16.msra.mxu0 %v594
      %862 = vmatpush.bf16.msra.mxu0 %v588
      %863 = vmatmul.bf16.gmra.mxu0 %v185
      %v864 = vpop.f32.mrf.mxu0
      %v865 = vadd.f32 %v288, %v864
      %v866 = vpop.f32.mrf.mxu0
      %867 = vdwg.mxu0
      %868 = vmatpush.bf16.msra.mxu0 %v678
      %869 = vmatpush.bf16.msra.mxu0 %v672
      %870 = vmatpush.bf16.msra.mxu0 %v666
      %871 = vmatpush.bf16.msra.mxu0 %v660
      %872 = vmatpush.bf16.msra.mxu0 %v654
      %873 = vmatpush.bf16.msra.mxu0 %v648
      %874 = vmatpush.bf16.msra.mxu0 %v642
      %875 = vmatpush.bf16.msra.mxu0 %v636
      %876 = vmatmul.bf16.gmra.mxu0 %v186
      %v877 = vpop.f32.mrf.mxu0
      %v878 = vadd.f32 %v865, %v877
      %v879 = vpop.f32.mrf.mxu0
      %880 = vdwg.mxu0
      %881 = vmatpush.bf16.msra.mxu0 %v631
      %882 = vmatpush.bf16.msra.mxu0 %v625
      %883 = vmatpush.bf16.msra.mxu0 %v619
      %884 = vmatpush.bf16.msra.mxu0 %v613
      %885 = vmatpush.bf16.msra.mxu0 %v607
      %886 = vmatpush.bf16.msra.mxu0 %v601
      %887 = vmatpush.bf16.msra.mxu0 %v595
      %888 = vmatpush.bf16.msra.mxu0 %v589
      %889 = vmatmul.bf16.gmra.mxu0 %v185
      %v890 = vpop.f32.mrf.mxu0
      %v891 = vadd.f32 %v289, %v890
      %v892 = vpop.f32.mrf.mxu0
      %893 = vdwg.mxu0
      %894 = vmatpush.bf16.msra.mxu0 %v679
      %895 = vmatpush.bf16.msra.mxu0 %v673
      %896 = vmatpush.bf16.msra.mxu0 %v667
      %897 = vmatpush.bf16.msra.mxu0 %v661
      %898 = vmatpush.bf16.msra.mxu0 %v655
      %899 = vmatpush.bf16.msra.mxu0 %v649
      %900 = vmatpush.bf16.msra.mxu0 %v643
      %901 = vmatpush.bf16.msra.mxu0 %v637
      %902 = vmatmul.bf16.gmra.mxu0 %v186
      %v903 = vpop.f32.mrf.mxu0
      %v904 = vadd.f32 %v891, %v903
      %v905 = vpop.f32.mrf.mxu0
      %906 = vdwg.mxu0
      %907 = vmatpush.bf16.msra.mxu0 %v632
      %908 = vmatpush.bf16.msra.mxu0 %v626
      %909 = vmatpush.bf16.msra.mxu0 %v620
      %910 = vmatpush.bf16.msra.mxu0 %v614
      %911 = vmatpush.bf16.msra.mxu0 %v608
      %912 = vmatpush.bf16.msra.mxu0 %v602
      %913 = vmatpush.bf16.msra.mxu0 %v596
      %914 = vmatpush.bf16.msra.mxu0 %v590
      %915 = vmatmul.bf16.gmra.mxu0 %v185
      %v916 = vpop.f32.mrf.mxu0
      %v917 = vadd.f32 %v290, %v916
      %v918 = vpop.f32.mrf.mxu0
      %919 = vdwg.mxu0
      %920 = vmatpush.bf16.msra.mxu0 %v680
      %921 = vmatpush.bf16.msra.mxu0 %v674
      %922 = vmatpush.bf16.msra.mxu0 %v668
      %923 = vmatpush.bf16.msra.mxu0 %v662
      %924 = vmatpush.bf16.msra.mxu0 %v656
      %925 = vmatpush.bf16.msra.mxu0 %v650
      %926 = vmatpush.bf16.msra.mxu0 %v644
      %927 = vmatpush.bf16.msra.mxu0 %v638
      %928 = vmatmul.bf16.gmra.mxu0 %v186
      %v929 = vpop.f32.mrf.mxu0
      %v930 = vadd.f32 %v917, %v929
      %v931 = vpop.f32.mrf.mxu0
      %932 = vdwg.mxu0
      %v933 = vadd.f32 %v177, %v800
      %v934 = vadd.f32 %v178, %v826
      %v935 = vxor.u32 %v933, 2147483648
      %v936 = vxor.u32 %v934, 2147483648
      %v937 = vmul.f32 %v935, 1.442695
      %v938 = vpow.pop %v937
      %v939 = vmul.f32 %v936, 1.442695
      %v940 = vpow.pop %v939
      %v941 = vadd.f32 %v938, 1.0
      %v942 = vadd.f32 %v940, 1.0
      %v943 = vrcp.pop %v941
      %v944 = vmul.f32 %v941, %v943
      %v945 = vsub.f32 1.0, %v944
      %v946 = vmul.f32 %v943, %v945
      %v947 = vadd.f32 %v943, %v946
      %vm948 = vweird.f32 %v941
      %vm949 = vweird.f32 %v943
      %vm950 = vmor %vm948, %vm949
      %v951 = vsel %vm950, %v943, %v947
      %v952 = vand.u32 2147483647, %v941
      %vm953 = vcmp.eq.f32.partialorder %v952, 8.507059e+37
      %v954 = vand.u32 %v941, 2147483648
      %v955 = vor.u32 1.1754944e-38, %v954
      %v956 = vsel %vm953, %v955, %v951
      %v957 = vmul.f32 1.0, %v956
      %v958 = vrcp.pop %v942
      %v959 = vmul.f32 %v942, %v958
      %v960 = vsub.f32 1.0, %v959
      %v961 = vmul.f32 %v958, %v960
      %v962 = vadd.f32 %v958, %v961
      %vm963 = vweird.f32 %v942
      %vm964 = vweird.f32 %v958
      %vm965 = vmor %vm963, %vm964
      %v966 = vsel %vm965, %v958, %v962
      %v967 = vand.u32 2147483647, %v942
      %vm968 = vcmp.eq.f32.partialorder %v967, 8.507059e+37
      %v969 = vand.u32 %v942, 2147483648
      %v970 = vor.u32 1.1754944e-38, %v969
      %v971 = vsel %vm968, %v970, %v966
      %v972 = vmul.f32 1.0, %v971
      %v973 = vadd.f32 %v179, %v852
      %v974 = vadd.f32 %v180, %v878
      %v975 = vxor.u32 %v973, 2147483648
      %v976 = vxor.u32 %v974, 2147483648
      %v977 = vmul.f32 %v975, 1.442695
      %v978 = vpow.pop %v977
      %v979 = vmul.f32 %v976, 1.442695
      %v980 = vpow.pop %v979
      %v981 = vadd.f32 %v978, 1.0
      %v982 = vadd.f32 %v980, 1.0
      %v983 = vrcp.pop %v981
      %v984 = vmul.f32 %v981, %v983
      %v985 = vsub.f32 1.0, %v984
      %v986 = vmul.f32 %v983, %v985
      %v987 = vadd.f32 %v983, %v986
      %vm988 = vweird.f32 %v981
      %vm989 = vweird.f32 %v983
      %vm990 = vmor %vm988, %vm989
      %v991 = vsel %vm990, %v983, %v987
      %v992 = vand.u32 2147483647, %v981
      %vm993 = vcmp.eq.f32.partialorder %v992, 8.507059e+37
      %v994 = vand.u32 %v981, 2147483648
      %v995 = vor.u32 1.1754944e-38, %v994
      %v996 = vsel %vm993, %v995, %v991
      %v997 = vmul.f32 1.0, %v996
      %v998 = vrcp.pop %v982
      %v999 = vmul.f32 %v982, %v998
      %v1000 = vsub.f32 1.0, %v999
      %v1001 = vmul.f32 %v998, %v1000
      %v1002 = vadd.f32 %v998, %v1001
      %vm1003 = vweird.f32 %v982
      %vm1004 = vweird.f32 %v998
      %vm1005 = vmor %vm1003, %vm1004
      %v1006 = vsel %vm1005, %v998, %v1002
      %v1007 = vand.u32 2147483647, %v982
      %vm1008 = vcmp.eq.f32.partialorder %v1007, 8.507059e+37
      %v1009 = vand.u32 %v982, 2147483648
      %v1010 = vor.u32 1.1754944e-38, %v1009
      %v1011 = vsel %vm1008, %v1010, %v1006
      %v1012 = vmul.f32 1.0, %v1011
      %v1013 = vmul.f32 %v957, %v904
      %v1014 = vmul.f32 %v972, %v930
      %v1015 = vadd.f32 %v181, %v1013
      %v1016 = vadd.f32 %v182, %v1014
      %v1017 = vtanh.pop %v1015
      %v1018 = vtanh.pop %v1016
      %v1019 = vsub.f32 1.0, %v997
      %v1020 = vsub.f32 1.0, %v1012
      %v1021 = vmul.f32 %v1019, %v1017
      %v1022 = vmul.f32 %v1020, %v1018
      %v1023 = vmul.f32 %v997, %v183
      %v1024 = vmul.f32 %v1012, %v184
      %v1025 = vadd.f32 %v1021, %v1023
      %v1026 = vadd.f32 %v1022, %v1024
      %1027 = vst [vmem:[#allocation2] sm:$0xff] %v1025
      %1028 = vst [vmem:[#allocation2 + $0x8] sm:$0xff] %v1026
      %1029 = vst [vmem:[%s170] sm:$0xff] %v1025
      %1030 = vst [vmem:[%s170 + $0x8] sm:$0xff] %v1026
      %p1031 = scmp.lt.s32.totalorder %s14, 1
      %s1032 = scalar_select %p1031, %s14, 1
      %s1033 = smul.addr %s1032, 2
      %s1034 = smul.addr %s1033, 8
      %s1035 = scalar_lea.vmem %s3, %s1034
      // Predicated region
      $region37: #{predictive_autoencoder.10} parent=31 // pred_check
        %p1036 = pneg %p100
      $region38: #{predictive_autoencoder.10} parent=31 // pred_check_branch
        %1038 = sbr.rel (%p1036) target = $region40
      $region39: #{predictive_autoencoder.10} parent=31 // pred_region
        _
      $region40: #{predictive_autoencoder.10} parent=31 // pred_fallthru
        _
    $region32: #{predictive_autoencoder.10} parent=5 // pred_fallthru
      _
    %p1039 = scmp.le.s32.totalorder 2, %s9
    // Predicated region
    $region41: #{predictive_autoencoder.10} parent=5 // pred_check
      %p1040 = pneg %p1039
    $region42: #{predictive_autoencoder.10} parent=5 // pred_check_branch
      %1042 = sbr.rel (%p1040) target = $region44
    $region43: #{predictive_autoencoder.10} parent=5 // pred_region
      %s1043 = ssub.s32 %s9, 2
      // Predicated region
      $region45: #{predictive_autoencoder.10} parent=43 // pred_check
        %p1044 = pneg %p106
      $region46: #{predictive_autoencoder.10} parent=43 // pred_check_branch
        %1046 = sbr.rel (%p1044) target = $region48
      $region47: #{predictive_autoencoder.10} parent=43 // pred_region
        %p1047 = scmp.lt.s32.totalorder %s15, 1
        %s1048 = scalar_select %p1047, %s15, 1
        %s1049 = smul.addr %s1048, 2
        %s1050 = smul.addr %s1049, 8
        %s1051 = scalar_lea.vmem %s3, %s1050
      $region48: #{predictive_autoencoder.10} parent=43 // pred_fallthru
        _
    $region44: #{predictive_autoencoder.10} parent=5 // pred_fallthru
      _
  $region6: #{predictive_autoencoder.10} parent=0 // loop_footer
    %s13 = sadd.s32 1, %s9
  $region7: #{predictive_autoencoder.10} parent=0 // loop_footer_branch
    %8 = sbr.rel target = $region3
  $region8: #{predictive_autoencoder.10} parent=0 // loop_exit
    _

// kernel: predictive_autoencoder.9
$region0: #{predictive_autoencoder.9}
  #allocation0 [shape = 'u32[]', space=smem, size = 0x4, offset = 0x4, fixed_abs, tag = 'smem constant byte address 0x4 - core index']
  #allocation1 [shape = 'u32[72,128]{1,0:T(1,128)}', space=vmem, size = 0x9000, scoped, tag = 'internal scratch']
  %s0 = inlined_call_operand.vmem [shape: bf16[8,1024], index: 0, kind: input, shape index: {}]
  %s1 = inlined_call_operand.vmem [shape: bf16[1024,256], index: 1, kind: input, shape index: {}]
  %s2 = inlined_call_operand.vmem [shape: f32[1,256], index: 2, kind: input, shape index: {}]
  %s3 = inlined_call_operand.vmem [shape: bf16[256,768], index: 3, kind: input, shape index: {}]
  %s4 = inlined_call_operand.vmem [shape: f32[1,768], index: 4, kind: input, shape index: {}]
  %s5 = inlined_call_operand.vmem [shape: f32[8,768], index: 5, kind: output, shape index: {}]
  %s6 = sld [smem:[#allocation0]]
  $region30: #{predictive_autoencoder.9} parent=0
    _
  %s8 = ssub.s32 1, %s6
  %s9 = scalar_select 0, %s8, %s6
  // Predicated region
  $region2: #{predictive_autoencoder.9} parent=0 // pred_check
    _
  $region3: #{predictive_autoencoder.9} parent=0 // pred_check_branch
    %11 = sbr.rel (0) target = $region5
  $region4: #{predictive_autoencoder.9} parent=0 // pred_region
    _
  $region5: #{predictive_autoencoder.9} parent=0 // pred_fallthru
    _
  // Predicated region
  $region6: #{predictive_autoencoder.9} parent=0 // pred_check
    _
  $region7: #{predictive_autoencoder.9} parent=0 // pred_check_branch
    %13 = sbr.rel (0) target = $region9
  $region8: #{predictive_autoencoder.9} parent=0 // pred_region
    _
  $region9: #{predictive_autoencoder.9} parent=0 // pred_fallthru
    _
  // Predicated region
  $region10: #{predictive_autoencoder.9} parent=0 // pred_check
    _
  $region11: #{predictive_autoencoder.9} parent=0 // pred_check_branch
    %15 = sbr.rel (0) target = $region13
  $region12: #{predictive_autoencoder.9} parent=0 // pred_region
    _
  $region13: #{predictive_autoencoder.9} parent=0 // pred_fallthru
    _
  // Predicated region
  $region14: #{predictive_autoencoder.9} parent=0 // pred_check
    _
  $region15: #{predictive_autoencoder.9} parent=0 // pred_check_branch
    %17 = sbr.rel (0) target = $region17
  $region16: #{predictive_autoencoder.9} parent=0 // pred_region
    _
  $region17: #{predictive_autoencoder.9} parent=0 // pred_fallthru
    _
  // Predicated region
  $region18: #{predictive_autoencoder.9} parent=0 // pred_check
    _
  $region19: #{predictive_autoencoder.9} parent=0 // pred_check_branch
    %19 = sbr.rel (0) target = $region21
  $region20: #{predictive_autoencoder.9} parent=0 // pred_region
    _
  $region21: #{predictive_autoencoder.9} parent=0 // pred_fallthru
    _
  %v20 = vld [vmem:[%s0] sm:$0xff]
  %v21 = vld [vmem:[%s0 + $0x8] sm:$0xff]
  %v22 = vld [vmem:[%s0 + $0x10] sm:$0xff]
  %v23 = vld [vmem:[%s0 + $0x18] sm:$0xff]
  %v24 = vld [vmem:[%s1] sm:$0xff]
  %v25 = vld [vmem:[%s1 + $0x8] sm:$0xff]
  %v26 = vld [vmem:[%s1 + $0x10] sm:$0xff]
  %v27 = vld [vmem:[%s1 + $0x18] sm:$0xff]
  %v28 = vld [vmem:[%s1 + $0x20] sm:$0xff]
  %v29 = vld [vmem:[%s1 + $0x28] sm:$0xff]
  %v30 = vld [vmem:[%s1 + $0x30] sm:$0xff]
  %v31 = vld [vmem:[%s1 + $0x38] sm:$0xff]
  %v32 = vld [vmem:[%s1 + $0x40] sm:$0xff]
  %v33 = vld [vmem:[%s1 + $0x48] sm:$0xff]
  %v34 = vld [vmem:[%s1 + $0x50] sm:$0xff]
  %v35 = vld [vmem:[%s1 + $0x58] sm:$0xff]
  %v36 = vld [vmem:[%s1 + $0x60] sm:$0xff]
  %v37 = vld [vmem:[%s1 + $0x68] sm:$0xff]
  %v38 = vld [vmem:[%s1 + $0x70] sm:$0xff]
  %v39 = vld [vmem:[%s1 + $0x78] sm:$0xff]
  %v40 = vld [vmem:[%s1 + $0x80] sm:$0xff]
  %v41 = vld [vmem:[%s1 + $0x88] sm:$0xff]
  %v42 = vld [vmem:[%s1 + $0x90] sm:$0xff]
  %v43 = vld [vmem:[%s1 + $0x98] sm:$0xff]
  %v44 = vld [vmem:[%s1 + $0xa0] sm:$0xff]
  %v45 = vld [vmem:[%s1 + $0xa8] sm:$0xff]
  %v46 = vld [vmem:[%s1 + $0xb0] sm:$0xff]
  %v47 = vld [vmem:[%s1 + $0xb8] sm:$0xff]
  %v48 = vld [vmem:[%s1 + $0xc0] sm:$0xff]
  %v49 = vld [vmem:[%s1 + $0xc8] sm:$0xff]
  %v50 = vld [vmem:[%s1 + $0xd0] sm:$0xff]
  %v51 = vld [vmem:[%s1 + $0xd8] sm:$0xff]
  %v52 = vld [vmem:[%s1 + $0xe0] sm:$0xff]
  %v53 = vld [vmem:[%s1 + $0xe8] sm:$0xff]
  %v54 = vld [vmem:[%s1 + $0xf0] sm:$0xff]
  %v55 = vld [vmem:[%s1 + $0xf8] sm:$0xff]
  %v56 = vld [vmem:[%s1 + $0x100] sm:$0xff]
  %v57 = vld [vmem:[%s1 + $0x108] sm:$0xff]
  %v58 = vld [vmem:[%s1 + $0x110] sm:$0xff]
  %v59 = vld [vmem:[%s1 + $0x118] sm:$0xff]
  %v60 = vld [vmem:[%s1 + $0x120] sm:$0xff]
  %v61 = vld [vmem:[%s1 + $0x128] sm:$0xff]
  %v62 = vld [vmem:[%s1 + $0x130] sm:$0xff]
  %v63 = vld [vmem:[%s1 + $0x138] sm:$0xff]
  %v64 = vld [vmem:[%s1 + $0x140] sm:$0xff]
  %v65 = vld [vmem:[%s1 + $0x148] sm:$0xff]
  %v66 = vld [vmem:[%s1 + $0x150] sm:$0xff]
  %v67 = vld [vmem:[%s1 + $0x158] sm:$0xff]
  %v68 = vld [vmem:[%s1 + $0x160] sm:$0xff]
  %v69 = vld [vmem:[%s1 + $0x168] sm:$0xff]
  %v70 = vld [vmem:[%s1 + $0x170] sm:$0xff]
  %v71 = vld [vmem:[%s1 + $0x178] sm:$0xff]
  %v72 = vld [vmem:[%s1 + $0x180] sm:$0xff]
  %v73 = vld [vmem:[%s1 + $0x188] sm:$0xff]
  %v74 = vld [vmem:[%s1 + $0x190] sm:$0xff]
  %v75 = vld [vmem:[%s1 + $0x198] sm:$0xff]
  %v76 = vld [vmem:[%s1 + $0x1a0] sm:$0xff]
  %v77 = vld [vmem:[%s1 + $0x1a8] sm:$0xff]
  %v78 = vld [vmem:[%s1 + $0x1b0] sm:$0xff]
  %v79 = vld [vmem:[%s1 + $0x1b8] sm:$0xff]
  %v80 = vld [vmem:[%s1 + $0x1c0] sm:$0xff]
  %v81 = vld [vmem:[%s1 + $0x1c8] sm:$0xff]
  %v82 = vld [vmem:[%s1 + $0x1d0] sm:$0xff]
  %v83 = vld [vmem:[%s1 + $0x1d8] sm:$0xff]
  %v84 = vld [vmem:[%s1 + $0x1e0] sm:$0xff]
  %v85 = vld [vmem:[%s1 + $0x1e8] sm:$0xff]
  %v86 = vld [vmem:[%s1 + $0x1f0] sm:$0xff]
  %v87 = vld [vmem:[%s1 + $0x1f8] sm:$0xff]
  %v88 = vld [vmem:[%s1 + $0x200] sm:$0xff]
  %v89 = vld [vmem:[%s1 + $0x208] sm:$0xff]
  %v90 = vld [vmem:[%s1 + $0x210] sm:$0xff]
  %v91 = vld [vmem:[%s1 + $0x218] sm:$0xff]
  %v92 = vld [vmem:[%s1 + $0x220] sm:$0xff]
  %v93 = vld [vmem:[%s1 + $0x228] sm:$0xff]
  %v94 = vld [vmem:[%s1 + $0x230] sm:$0xff]
  %v95 = vld [vmem:[%s1 + $0x238] sm:$0xff]
  %v96 = vld [vmem:[%s1 + $0x240] sm:$0xff]
  %v97 = vld [vmem:[%s1 + $0x248] sm:$0xff]
  %v98 = vld [vmem:[%s1 + $0x250] sm:$0xff]
  %v99 = vld [vmem:[%s1 + $0x258] sm:$0xff]
  %v100 = vld [vmem:[%s1 + $0x260] sm:$0xff]
  %v101 = vld [vmem:[%s1 + $0x268] sm:$0xff]
  %v102 = vld [vmem:[%s1 + $0x270] sm:$0xff]
  %v103 = vld [vmem:[%s1 + $0x278] sm:$0xff]
  %v104 = vld [vmem:[%s1 + $0x280] sm:$0xff]
  %v105 = vld [vmem:[%s1 + $0x288] sm:$0xff]
  %v106 = vld [vmem:[%s1 + $0x290] sm:$0xff]
  %v107 = vld [vmem:[%s1 + $0x298] sm:$0xff]
  %v108 = vld [vmem:[%s1 + $0x2a0] sm:$0xff]
  %v109 = vld [vmem:[%s1 + $0x2a8] sm:$0xff]
  %v110 = vld [vmem:[%s1 + $0x2b0] sm:$0xff]
  %v111 = vld [vmem:[%s1 + $0x2b8] sm:$0xff]
  %v112 = vld [vmem:[%s1 + $0x2c0] sm:$0xff]
  %v113 = vld [vmem:[%s1 + $0x2c8] sm:$0xff]
  %v114 = vld [vmem:[%s1 + $0x2d0] sm:$0xff]
  %v115 = vld [vmem:[%s1 + $0x2d8] sm:$0xff]
  %v116 = vld [vmem:[%s1 + $0x2e0] sm:$0xff]
  %v117 = vld [vmem:[%s1 + $0x2e8] sm:$0xff]
  %v118 = vld [vmem:[%s1 + $0x2f0] sm:$0xff]
  %v119 = vld [vmem:[%s1 + $0x2f8] sm:$0xff]
  %v120 = vld [vmem:[%s1 + $0x300] sm:$0xff]
  %v121 = vld [vmem:[%s1 + $0x308] sm:$0xff]
  %v122 = vld [vmem:[%s1 + $0x310] sm:$0xff]
  %v123 = vld [vmem:[%s1 + $0x318] sm:$0xff]
  %v124 = vld [vmem:[%s1 + $0x320] sm:$0xff]
  %v125 = vld [vmem:[%s1 + $0x328] sm:$0xff]
  %v126 = vld [vmem:[%s1 + $0x330] sm:$0xff]
  %v127 = vld [vmem:[%s1 + $0x338] sm:$0xff]
  %v128 = vld [vmem:[%s1 + $0x340] sm:$0xff]
  %v129 = vld [vmem:[%s1 + $0x348] sm:$0xff]
  %v130 = vld [vmem:[%s1 + $0x350] sm:$0xff]
  %v131 = vld [vmem:[%s1 + $0x358] sm:$0xff]
  %v132 = vld [vmem:[%s1 + $0x360] sm:$0xff]
  %v133 = vld [vmem:[%s1 + $0x368] sm:$0xff]
  %v134 = vld [vmem:[%s1 + $0x370] sm:$0xff]
  %v135 = vld [vmem:[%s1 + $0x378] sm:$0xff]
  %v136 = vld [vmem:[%s1 + $0x380] sm:$0xff]
  %v137 = vld [vmem:[%s1 + $0x388] sm:$0xff]
  %v138 = vld [vmem:[%s1 + $0x390] sm:$0xff]
  %v139 = vld [vmem:[%s1 + $0x398] sm:$0xff]
  %v140 = vld [vmem:[%s1 + $0x3a0] sm:$0xff]
  %v141 = vld [vmem:[%s1 + $0x3a8] sm:$0xff]
  %v142 = vld [vmem:[%s1 + $0x3b0] sm:$0xff]
  %v143 = vld [vmem:[%s1 + $0x3b8] sm:$0xff]
  %v144 = vld [vmem:[%s1 + $0x3c0] sm:$0xff]
  %v145 = vld [vmem:[%s1 + $0x3c8] sm:$0xff]
  %v146 = vld [vmem:[%s1 + $0x3d0] sm:$0xff]
  %v147 = vld [vmem:[%s1 + $0x3d8] sm:$0xff]
  %v148 = vld [vmem:[%s1 + $0x3e0] sm:$0xff]
  %v149 = vld [vmem:[%s1 + $0x3e8] sm:$0xff]
  %v150 = vld [vmem:[%s1 + $0x3f0] sm:$0xff]
  %v151 = vld [vmem:[%s1 + $0x3f8] sm:$0xff]
  %v152 = vld [vmem:[%s2] sm:$0x3]
  %v154 = vperm.slane %v152, 0
  %v155 = vperm.slane %v152, 1
  %v162 = vunpack.c.l.b16 %v20
  %v163 = vunpack.c.h.b16 %v20
  %v164 = vunpack.c.l.b16 %v21
  %v165 = vunpack.c.h.b16 %v21
  %v166 = vunpack.c.l.b16 %v22
  %v167 = vunpack.c.h.b16 %v22
  %v168 = vunpack.c.l.b16 %v23
  %v169 = vunpack.c.h.b16 %v23
  %v170 = vpack.c.b16 %v162, %v162
  %v171 = vpack.c.b16 %v163, %v163
  %v172 = vpack.c.b16 %v164, %v164
  %v173 = vpack.c.b16 %v165, %v165
  %v174 = vpack.c.b16 %v166, %v166
  %v175 = vpack.c.b16 %v167, %v167
  %v176 = vpack.c.b16 %v168, %v168
  %v177 = vpack.c.b16 %v169, %v169
  %v314 = vunpack.c.l.b16 %v24
  %v315 = vunpack.c.h.b16 %v24
  %v316 = vunpack.c.l.b16 %v25
  %v317 = vunpack.c.h.b16 %v25
  %v318 = vunpack.c.l.b16 %v26
  %v319 = vunpack.c.h.b16 %v26
  %v320 = vunpack.c.l.b16 %v27
  %v321 = vunpack.c.h.b16 %v27
  %v322 = vunpack.c.l.b16 %v28
  %v323 = vunpack.c.h.b16 %v28
  %v324 = vunpack.c.l.b16 %v29
  %v325 = vunpack.c.h.b16 %v29
  %v326 = vunpack.c.l.b16 %v30
  %v327 = vunpack.c.h.b16 %v30
  %v328 = vunpack.c.l.b16 %v31
  %v329 = vunpack.c.h.b16 %v31
  %v330 = vunpack.c.l.b16 %v32
  %v331 = vunpack.c.h.b16 %v32
  %v332 = vunpack.c.l.b16 %v33
  %v333 = vunpack.c.h.b16 %v33
  %v334 = vunpack.c.l.b16 %v34
  %v335 = vunpack.c.h.b16 %v34
  %v336 = vunpack.c.l.b16 %v35
  %v337 = vunpack.c.h.b16 %v35
  %v338 = vunpack.c.l.b16 %v36
  %v339 = vunpack.c.h.b16 %v36
  %v340 = vunpack.c.l.b16 %v37
  %v341 = vunpack.c.h.b16 %v37
  %v342 = vunpack.c.l.b16 %v38
  %v343 = vunpack.c.h.b16 %v38
  %v344 = vunpack.c.l.b16 %v39
  %v345 = vunpack.c.h.b16 %v39
  %v346 = vunpack.c.l.b16 %v40
  %v347 = vunpack.c.h.b16 %v40
  %v348 = vunpack.c.l.b16 %v41
  %v349 = vunpack.c.h.b16 %v41
  %v350 = vunpack.c.l.b16 %v42
  %v351 = vunpack.c.h.b16 %v42
  %v352 = vunpack.c.l.b16 %v43
  %v353 = vunpack.c.h.b16 %v43
  %v354 = vunpack.c.l.b16 %v44
  %v355 = vunpack.c.h.b16 %v44
  %v356 = vunpack.c.l.b16 %v45
  %v357 = vunpack.c.h.b16 %v45
  %v358 = vunpack.c.l.b16 %v46
  %v359 = vunpack.c.h.b16 %v46
  %v360 = vunpack.c.l.b16 %v47
  %v361 = vunpack.c.h.b16 %v47
  %v362 = vunpack.c.l.b16 %v48
  %v363 = vunpack.c.h.b16 %v48
  %v364 = vunpack.c.l.b16 %v49
  %v365 = vunpack.c.h.b16 %v49
  %v366 = vunpack.c.l.b16 %v50
  %v367 = vunpack.c.h.b16 %v50
  %v368 = vunpack.c.l.b16 %v51
  %v369 = vunpack.c.h.b16 %v51
  %v370 = vunpack.c.l.b16 %v52
  %v371 = vunpack.c.h.b16 %v52
  %v372 = vunpack.c.l.b16 %v53
  %v373 = vunpack.c.h.b16 %v53
  %v374 = vunpack.c.l.b16 %v54
  %v375 = vunpack.c.h.b16 %v54
  %v376 = vunpack.c.l.b16 %v55
  %v377 = vunpack.c.h.b16 %v55
  %v378 = vunpack.c.l.b16 %v56
  %v379 = vunpack.c.h.b16 %v56
  %v380 = vunpack.c.l.b16 %v57
  %v381 = vunpack.c.h.b16 %v57
  %v382 = vunpack.c.l.b16 %v58
  %v383 = vunpack.c.h.b16 %v58
  %v384 = vunpack.c.l.b16 %v59
  %v385 = vunpack.c.h.b16 %v59
  %v386 = vunpack.c.l.b16 %v60
  %v387 = vunpack.c.h.b16 %v60
  %v388 = vunpack.c.l.b16 %v61
  %v389 = vunpack.c.h.b16 %v61
  %v390 = vunpack.c.l.b16 %v62
  %v391 = vunpack.c.h.b16 %v62
  %v392 = vunpack.c.l.b16 %v63
  %v393 = vunpack.c.h.b16 %v63
  %v394 = vunpack.c.l.b16 %v64
  %v395 = vunpack.c.h.b16 %v64
  %v396 = vunpack.c.l.b16 %v65
  %v397 = vunpack.c.h.b16 %v65
  %v398 = vunpack.c.l.b16 %v66
  %v399 = vunpack.c.h.b16 %v66
  %v400 = vunpack.c.l.b16 %v67
  %v401 = vunpack.c.h.b16 %v67
  %v402 = vunpack.c.l.b16 %v68
  %v403 = vunpack.c.h.b16 %v68
  %v404 = vunpack.c.l.b16 %v69
  %v405 = vunpack.c.h.b16 %v69
  %v406 = vunpack.c.l.b16 %v70
  %v407 = vunpack.c.h.b16 %v70
  %v408 = vunpack.c.l.b16 %v71
  %v409 = vunpack.c.h.b16 %v71
  %v410 = vunpack.c.l.b16 %v72
  %v411 = vunpack.c.h.b16 %v72
  %v412 = vunpack.c.l.b16 %v73
  %v413 = vunpack.c.h.b16 %v73
  %v414 = vunpack.c.l.b16 %v74
  %v415 = vunpack.c.h.b16 %v74
  %v416 = vunpack.c.l.b16 %v75
  %v417 = vunpack.c.h.b16 %v75
  %v418 = vunpack.c.l.b16 %v76
  %v419 = vunpack.c.h.b16 %v76
  %v420 = vunpack.c.l.b16 %v77
  %v421 = vunpack.c.h.b16 %v77
  %v422 = vunpack.c.l.b16 %v78
  %v423 = vunpack.c.h.b16 %v78
  %v424 = vunpack.c.l.b16 %v79
  %v425 = vunpack.c.h.b16 %v79
  %v426 = vunpack.c.l.b16 %v80
  %v427 = vunpack.c.h.b16 %v80
  %v428 = vunpack.c.l.b16 %v81
  %v429 = vunpack.c.h.b16 %v81
  %v430 = vunpack.c.l.b16 %v82
  %v431 = vunpack.c.h.b16 %v82
  %v432 = vunpack.c.l.b16 %v83
  %v433 = vunpack.c.h.b16 %v83
  %v434 = vunpack.c.l.b16 %v84
  %v435 = vunpack.c.h.b16 %v84
  %v436 = vunpack.c.l.b16 %v85
  %v437 = vunpack.c.h.b16 %v85
  %v438 = vunpack.c.l.b16 %v86
  %v439 = vunpack.c.h.b16 %v86
  %v440 = vunpack.c.l.b16 %v87
  %v441 = vunpack.c.h.b16 %v87
  %v442 = vunpack.c.l.b16 %v88
  %v443 = vunpack.c.h.b16 %v88
  %v444 = vunpack.c.l.b16 %v89
  %v445 = vunpack.c.h.b16 %v89
  %v446 = vunpack.c.l.b16 %v90
  %v447 = vunpack.c.h.b16 %v90
  %v448 = vunpack.c.l.b16 %v91
  %v449 = vunpack.c.h.b16 %v91
  %v450 = vunpack.c.l.b16 %v92
  %v451 = vunpack.c.h.b16 %v92
  %v452 = vunpack.c.l.b16 %v93
  %v453 = vunpack.c.h.b16 %v93
  %v454 = vunpack.c.l.b16 %v94
  %v455 = vunpack.c.h.b16 %v94
  %v456 = vunpack.c.l.b16 %v95
  %v457 = vunpack.c.h.b16 %v95
  %v458 = vunpack.c.l.b16 %v96
  %v459 = vunpack.c.h.b16 %v96
  %v460 = vunpack.c.l.b16 %v97
  %v461 = vunpack.c.h.b16 %v97
  %v462 = vunpack.c.l.b16 %v98
  %v463 = vunpack.c.h.b16 %v98
  %v464 = vunpack.c.l.b16 %v99
  %v465 = vunpack.c.h.b16 %v99
  %v466 = vunpack.c.l.b16 %v100
  %v467 = vunpack.c.h.b16 %v100
  %v468 = vunpack.c.l.b16 %v101
  %v469 = vunpack.c.h.b16 %v101
  %v470 = vunpack.c.l.b16 %v102
  %v471 = vunpack.c.h.b16 %v102
  %v472 = vunpack.c.l.b16 %v103
  %v473 = vunpack.c.h.b16 %v103
  %v474 = vunpack.c.l.b16 %v104
  %v475 = vunpack.c.h.b16 %v104
  %v476 = vunpack.c.l.b16 %v105
  %v477 = vunpack.c.h.b16 %v105
  %v478 = vunpack.c.l.b16 %v106
  %v479 = vunpack.c.h.b16 %v106
  %v480 = vunpack.c.l.b16 %v107
  %v481 = vunpack.c.h.b16 %v107
  %v482 = vunpack.c.l.b16 %v108
  %v483 = vunpack.c.h.b16 %v108
  %v484 = vunpack.c.l.b16 %v109
  %v485 = vunpack.c.h.b16 %v109
  %v486 = vunpack.c.l.b16 %v110
  %v487 = vunpack.c.h.b16 %v110
  %v488 = vunpack.c.l.b16 %v111
  %v489 = vunpack.c.h.b16 %v111
  %v490 = vunpack.c.l.b16 %v112
  %v491 = vunpack.c.h.b16 %v112
  %v492 = vunpack.c.l.b16 %v113
  %v493 = vunpack.c.h.b16 %v113
  %v494 = vunpack.c.l.b16 %v114
  %v495 = vunpack.c.h.b16 %v114
  %v496 = vunpack.c.l.b16 %v115
  %v497 = vunpack.c.h.b16 %v115
  %v498 = vunpack.c.l.b16 %v116
  %v499 = vunpack.c.h.b16 %v116
  %v500 = vunpack.c.l.b16 %v117
  %v501 = vunpack.c.h.b16 %v117
  %v502 = vunpack.c.l.b16 %v118
  %v503 = vunpack.c.h.b16 %v118
  %v504 = vunpack.c.l.b16 %v119
  %v505 = vunpack.c.h.b16 %v119
  %v506 = vunpack.c.l.b16 %v120
  %v507 = vunpack.c.h.b16 %v120
  %v508 = vunpack.c.l.b16 %v121
  %v509 = vunpack.c.h.b16 %v121
  %v510 = vunpack.c.l.b16 %v122
  %v511 = vunpack.c.h.b16 %v122
  %v512 = vunpack.c.l.b16 %v123
  %v513 = vunpack.c.h.b16 %v123
  %v514 = vunpack.c.l.b16 %v124
  %v515 = vunpack.c.h.b16 %v124
  %v516 = vunpack.c.l.b16 %v125
  %v517 = vunpack.c.h.b16 %v125
  %v518 = vunpack.c.l.b16 %v126
  %v519 = vunpack.c.h.b16 %v126
  %v520 = vunpack.c.l.b16 %v127
  %v521 = vunpack.c.h.b16 %v127
  %v522 = vunpack.c.l.b16 %v128
  %v523 = vunpack.c.h.b16 %v128
  %v524 = vunpack.c.l.b16 %v129
  %v525 = vunpack.c.h.b16 %v129
  %v526 = vunpack.c.l.b16 %v130
  %v527 = vunpack.c.h.b16 %v130
  %v528 = vunpack.c.l.b16 %v131
  %v529 = vunpack.c.h.b16 %v131
  %v530 = vunpack.c.l.b16 %v132
  %v531 = vunpack.c.h.b16 %v132
  %v532 = vunpack.c.l.b16 %v133
  %v533 = vunpack.c.h.b16 %v133
  %v534 = vunpack.c.l.b16 %v134
  %v535 = vunpack.c.h.b16 %v134
  %v536 = vunpack.c.l.b16 %v135
  %v537 = vunpack.c.h.b16 %v135
  %v538 = vunpack.c.l.b16 %v136
  %v539 = vunpack.c.h.b16 %v136
  %v540 = vunpack.c.l.b16 %v137
  %v541 = vunpack.c.h.b16 %v137
  %v542 = vunpack.c.l.b16 %v138
  %v543 = vunpack.c.h.b16 %v138
  %v544 = vunpack.c.l.b16 %v139
  %v545 = vunpack.c.h.b16 %v139
  %v546 = vunpack.c.l.b16 %v140
  %v547 = vunpack.c.h.b16 %v140
  %v548 = vunpack.c.l.b16 %v141
  %v549 = vunpack.c.h.b16 %v141
  %v550 = vunpack.c.l.b16 %v142
  %v551 = vunpack.c.h.b16 %v142
  %v552 = vunpack.c.l.b16 %v143
  %v553 = vunpack.c.h.b16 %v143
  %v554 = vunpack.c.l.b16 %v144
  %v555 = vunpack.c.h.b16 %v144
  %v556 = vunpack.c.l.b16 %v145
  %v557 = vunpack.c.h.b16 %v145
  %v558 = vunpack.c.l.b16 %v146
  %v559 = vunpack.c.h.b16 %v146
  %v560 = vunpack.c.l.b16 %v147
  %v561 = vunpack.c.h.b16 %v147
  %v562 = vunpack.c.l.b16 %v148
  %v563 = vunpack.c.h.b16 %v148
  %v564 = vunpack.c.l.b16 %v149
  %v565 = vunpack.c.h.b16 %v149
  %v566 = vunpack.c.l.b16 %v150
  %v567 = vunpack.c.h.b16 %v150
  %v568 = vunpack.c.l.b16 %v151
  %v569 = vunpack.c.h.b16 %v151
  %v570 = vpack.c.b16 %v316, %v314
  %v571 = vpack.c.b16 %v317, %v315
  %v572 = vpack.c.b16 %v320, %v318
  %v573 = vpack.c.b16 %v321, %v319
  %v574 = vpack.c.b16 %v324, %v322
  %v575 = vpack.c.b16 %v325, %v323
  %v576 = vpack.c.b16 %v328, %v326
  %v577 = vpack.c.b16 %v329, %v327
  %v578 = vpack.c.b16 %v332, %v330
  %v579 = vpack.c.b16 %v333, %v331
  %v580 = vpack.c.b16 %v336, %v334
  %v581 = vpack.c.b16 %v337, %v335
  %v582 = vpack.c.b16 %v340, %v338
  %v583 = vpack.c.b16 %v341, %v339
  %v584 = vpack.c.b16 %v344, %v342
  %v585 = vpack.c.b16 %v345, %v343
  %v586 = vpack.c.b16 %v348, %v346
  %v587 = vpack.c.b16 %v349, %v347
  %v588 = vpack.c.b16 %v352, %v350
  %v589 = vpack.c.b16 %v353, %v351
  %v590 = vpack.c.b16 %v356, %v354
  %v591 = vpack.c.b16 %v357, %v355
  %v592 = vpack.c.b16 %v360, %v358
  %v593 = vpack.c.b16 %v361, %v359
  %v594 = vpack.c.b16 %v364, %v362
  %v595 = vpack.c.b16 %v365, %v363
  %v596 = vpack.c.b16 %v368, %v366
  %v597 = vpack.c.b16 %v369, %v367
  %v598 = vpack.c.b16 %v372, %v370
  %v599 = vpack.c.b16 %v373, %v371
  %v600 = vpack.c.b16 %v376, %v374
  %v601 = vpack.c.b16 %v377, %v375
  %v602 = vpack.c.b16 %v380, %v378
  %v603 = vpack.c.b16 %v381, %v379
  %v604 = vpack.c.b16 %v384, %v382
  %v605 = vpack.c.b16 %v385, %v383
  %v606 = vpack.c.b16 %v388, %v386
  %v607 = vpack.c.b16 %v389, %v387
  %v608 = vpack.c.b16 %v392, %v390
  %v609 = vpack.c.b16 %v393, %v391
  %v610 = vpack.c.b16 %v396, %v394
  %v611 = vpack.c.b16 %v397, %v395
  %v612 = vpack.c.b16 %v400, %v398
  %v613 = vpack.c.b16 %v401, %v399
  %v614 = vpack.c.b16 %v404, %v402
  %v615 = vpack.c.b16 %v405, %v403
  %v616 = vpack.c.b16 %v408, %v406
  %v617 = vpack.c.b16 %v409, %v407
  %v618 = vpack.c.b16 %v412, %v410
  %v619 = vpack.c.b16 %v413, %v411
  %v620 = vpack.c.b16 %v416, %v414
  %v621 = vpack.c.b16 %v417, %v415
  %v622 = vpack.c.b16 %v420, %v418
  %v623 = vpack.c.b16 %v421, %v419
  %v624 = vpack.c.b16 %v424, %v422
  %v625 = vpack.c.b16 %v425, %v423
  %v626 = vpack.c.b16 %v428, %v426
  %v627 = vpack.c.b16 %v429, %v427
  %v628 = vpack.c.b16 %v432, %v430
  %v629 = vpack.c.b16 %v433, %v431
  %v630 = vpack.c.b16 %v436, %v434
  %v631 = vpack.c.b16 %v437, %v435
  %v632 = vpack.c.b16 %v440, %v438
  %v633 = vpack.c.b16 %v441, %v439
  %v634 = vpack.c.b16 %v444, %v442
  %v635 = vpack.c.b16 %v445, %v443
  %v636 = vpack.c.b16 %v448, %v446
  %v637 = vpack.c.b16 %v449, %v447
  %v638 = vpack.c.b16 %v452, %v450
  %v639 = vpack.c.b16 %v453, %v451
  %v640 = vpack.c.b16 %v456, %v454
  %v641 = vpack.c.b16 %v457, %v455
  %v642 = vpack.c.b16 %v460, %v458
  %v643 = vpack.c.b16 %v461, %v459
  %v644 = vpack.c.b16 %v464, %v462
  %v645 = vpack.c.b16 %v465, %v463
  %v646 = vpack.c.b16 %v468, %v466
  %v647 = vpack.c.b16 %v469, %v467
  %v648 = vpack.c.b16 %v472, %v470
  %v649 = vpack.c.b16 %v473, %v471
  %v650 = vpack.c.b16 %v476, %v474
  %v651 = vpack.c.b16 %v477, %v475
  %v652 = vpack.c.b16 %v480, %v478
  %v653 = vpack.c.b16 %v481, %v479
  %v654 = vpack.c.b16 %v484, %v482
  %v655 = vpack.c.b16 %v485, %v483
  %v656 = vpack.c.b16 %v488, %v486
  %v657 = vpack.c.b16 %v489, %v487
  %v658 = vpack.c.b16 %v492, %v490
  %v659 = vpack.c.b16 %v493, %v491
  %v660 = vpack.c.b16 %v496, %v494
  %v661 = vpack.c.b16 %v497, %v495
  %v662 = vpack.c.b16 %v500, %v498
  %v663 = vpack.c.b16 %v501, %v499
  %v664 = vpack.c.b16 %v504, %v502
  %v665 = vpack.c.b16 %v505, %v503
  %v666 = vpack.c.b16 %v508, %v506
  %v667 = vpack.c.b16 %v509, %v507
  %v668 = vpack.c.b16 %v512, %v510
  %v669 = vpack.c.b16 %v513, %v511
  %v670 = vpack.c.b16 %v516, %v514
  %v671 = vpack.c.b16 %v517, %v515
  %v672 = vpack.c.b16 %v520, %v518
  %v673 = vpack.c.b16 %v521, %v519
  %v674 = vpack.c.b16 %v524, %v522
  %v675 = vpack.c.b16 %v525, %v523
  %v676 = vpack.c.b16 %v528, %v526
  %v677 = vpack.c.b16 %v529, %v527
  %v678 = vpack.c.b16 %v532, %v530
  %v679 = vpack.c.b16 %v533, %v531
  %v680 = vpack.c.b16 %v536, %v534
  %v681 = vpack.c.b16 %v537, %v535
  %v682 = vpack.c.b16 %v540, %v538
  %v683 = vpack.c.b16 %v541, %v539
  %v684 = vpack.c.b16 %v544, %v542
  %v685 = vpack.c.b16 %v545, %v543
  %v686 = vpack.c.b16 %v548, %v546
  %v687 = vpack.c.b16 %v549, %v547
  %v688 = vpack.c.b16 %v552, %v550
  %v689 = vpack.c.b16 %v553, %v551
  %v690 = vpack.c.b16 %v556, %v554
  %v691 = vpack.c.b16 %v557, %v555
  %v692 = vpack.c.b16 %v560, %v558
  %v693 = vpack.c.b16 %v561, %v559
  %v694 = vpack.c.b16 %v564, %v562
  %v695 = vpack.c.b16 %v565, %v563
  %v696 = vpack.c.b16 %v568, %v566
  %v697 = vpack.c.b16 %v569, %v567
  %826 = vmatpush.bf16.msra.mxu0 %v584
  %827 = vmatpush.bf16.msra.mxu0 %v582
  %828 = vmatpush.bf16.msra.mxu0 %v580
  %829 = vmatpush.bf16.msra.mxu0 %v578
  %830 = vmatpush.bf16.msra.mxu0 %v576
  %831 = vmatpush.bf16.msra.mxu0 %v574
  %832 = vmatpush.bf16.msra.mxu0 %v572
  %833 = vmatpush.bf16.msra.mxu0 %v570
  %834 = vmatmul.bf16.gmra.mxu0 %v170
  %v835 = vpop.f32.mrf.mxu0
  %v836 = vadd.f32 %v154, %v835
  %v837 = vpop.f32.mrf.mxu0
  %838 = vdwg.mxu0
  %839 = vmatpush.bf16.msra.mxu0 %v600
  %840 = vmatpush.bf16.msra.mxu0 %v598
  %841 = vmatpush.bf16.msra.mxu0 %v596
  %842 = vmatpush.bf16.msra.mxu0 %v594
  %843 = vmatpush.bf16.msra.mxu0 %v592
  %844 = vmatpush.bf16.msra.mxu0 %v590
  %845 = vmatpush.bf16.msra.mxu0 %v588
  %846 = vmatpush.bf16.msra.mxu0 %v586
  %847 = vmatmul.bf16.gmra.mxu0 %v171
  %v848 = vpop.f32.mrf.mxu0
  %v849 = vadd.f32 %v836, %v848
  %v850 = vpop.f32.mrf.mxu0
  %851 = vdwg.mxu0
  %852 = vmatpush.bf16.msra.mxu0 %v616
  %853 = vmatpush.bf16.msra.mxu0 %v614
  %854 = vmatpush.bf16.msra.mxu0 %v612
  %855 = vmatpush.bf16.msra.mxu0 %v610
  %856 = vmatpush.bf16.msra.mxu0 %v608
  %857 = vmatpush.bf16.msra.mxu0 %v606
  %858 = vmatpush.bf16.msra.mxu0 %v604
  %859 = vmatpush.bf16.msra.mxu0 %v602
  %860 = vmatmul.bf16.gmra.mxu0 %v172
  %v861 = vpop.f32.mrf.mxu0
  %v862 = vadd.f32 %v849, %v861
  %v863 = vpop.f32.mrf.mxu0
  %864 = vdwg.mxu0
  %865 = vmatpush.bf16.msra.mxu0 %v632
  %866 = vmatpush.bf16.msra.mxu0 %v630
  %867 = vmatpush.bf16.msra.mxu0 %v628
  %868 = vmatpush.bf16.msra.mxu0 %v626
  %869 = vmatpush.bf16.msra.mxu0 %v624
  %870 = vmatpush.bf16.msra.mxu0 %v622
  %871 = vmatpush.bf16.msra.mxu0 %v620
  %872 = vmatpush.bf16.msra.mxu0 %v618
  %873 = vmatmul.bf16.gmra.mxu0 %v173
  %v874 = vpop.f32.mrf.mxu0
  %v875 = vadd.f32 %v862, %v874
  %v876 = vpop.f32.mrf.mxu0
  %877 = vdwg.mxu0
  %878 = vmatpush.bf16.msra.mxu0 %v648
  %879 = vmatpush.bf16.msra.mxu0 %v646
  %880 = vmatpush.bf16.msra.mxu0 %v644
  %881 = vmatpush.bf16.msra.mxu0 %v642
  %882 = vmatpush.bf16.msra.mxu0 %v640
  %883 = vmatpush.bf16.msra.mxu0 %v638
  %884 = vmatpush.bf16.msra.mxu0 %v636
  %885 = vmatpush.bf16.msra.mxu0 %v634
  %886 = vmatmul.bf16.gmra.mxu0 %v174
  %v887 = vpop.f32.mrf.mxu0
  %v888 = vadd.f32 %v875, %v887
  %v889 = vpop.f32.mrf.mxu0
  %890 = vdwg.mxu0
  %891 = vmatpush.bf16.msra.mxu0 %v664
  %892 = vmatpush.bf16.msra.mxu0 %v662
  %893 = vmatpush.bf16.msra.mxu0 %v660
  %894 = vmatpush.bf16.msra.mxu0 %v658
  %895 = vmatpush.bf16.msra.mxu0 %v656
  %896 = vmatpush.bf16.msra.mxu0 %v654
  %897 = vmatpush.bf16.msra.mxu0 %v652
  %898 = vmatpush.bf16.msra.mxu0 %v650
  %899 = vmatmul.bf16.gmra.mxu0 %v175
  %v900 = vpop.f32.mrf.mxu0
  %v901 = vadd.f32 %v888, %v900
  %v902 = vpop.f32.mrf.mxu0
  %903 = vdwg.mxu0
  %904 = vmatpush.bf16.msra.mxu0 %v680
  %905 = vmatpush.bf16.msra.mxu0 %v678
  %906 = vmatpush.bf16.msra.mxu0 %v676
  %907 = vmatpush.bf16.msra.mxu0 %v674
  %908 = vmatpush.bf16.msra.mxu0 %v672
  %909 = vmatpush.bf16.msra.mxu0 %v670
  %910 = vmatpush.bf16.msra.mxu0 %v668
  %911 = vmatpush.bf16.msra.mxu0 %v666
  %912 = vmatmul.bf16.gmra.mxu0 %v176
  %v913 = vpop.f32.mrf.mxu0
  %v914 = vadd.f32 %v901, %v913
  %v915 = vpop.f32.mrf.mxu0
  %916 = vdwg.mxu0
  %917 = vmatpush.bf16.msra.mxu0 %v696
  %918 = vmatpush.bf16.msra.mxu0 %v694
  %919 = vmatpush.bf16.msra.mxu0 %v692
  %920 = vmatpush.bf16.msra.mxu0 %v690
  %921 = vmatpush.bf16.msra.mxu0 %v688
  %922 = vmatpush.bf16.msra.mxu0 %v686
  %923 = vmatpush.bf16.msra.mxu0 %v684
  %924 = vmatpush.bf16.msra.mxu0 %v682
  %925 = vmatmul.bf16.gmra.mxu0 %v177
  %v926 = vpop.f32.mrf.mxu0
  %v927 = vadd.f32 %v914, %v926
  %v928 = vpop.f32.mrf.mxu0
  %929 = vdwg.mxu0
  %930 = vmatpush.bf16.msra.mxu0 %v585
  %931 = vmatpush.bf16.msra.mxu0 %v583
  %932 = vmatpush.bf16.msra.mxu0 %v581
  %933 = vmatpush.bf16.msra.mxu0 %v579
  %934 = vmatpush.bf16.msra.mxu0 %v577
  %935 = vmatpush.bf16.msra.mxu0 %v575
  %936 = vmatpush.bf16.msra.mxu0 %v573
  %937 = vmatpush.bf16.msra.mxu0 %v571
  %938 = vmatmul.bf16.gmra.mxu0 %v170
  %v939 = vpop.f32.mrf.mxu0
  %v940 = vadd.f32 %v155, %v939
  %v941 = vpop.f32.mrf.mxu0
  %942 = vdwg.mxu0
  %943 = vmatpush.bf16.msra.mxu0 %v601
  %944 = vmatpush.bf16.msra.mxu0 %v599
  %945 = vmatpush.bf16.msra.mxu0 %v597
  %946 = vmatpush.bf16.msra.mxu0 %v595
  %947 = vmatpush.bf16.msra.mxu0 %v593
  %948 = vmatpush.bf16.msra.mxu0 %v591
  %949 = vmatpush.bf16.msra.mxu0 %v589
  %950 = vmatpush.bf16.msra.mxu0 %v587
  %951 = vmatmul.bf16.gmra.mxu0 %v171
  %v952 = vpop.f32.mrf.mxu0
  %v953 = vadd.f32 %v940, %v952
  %v954 = vpop.f32.mrf.mxu0
  %955 = vdwg.mxu0
  %956 = vmatpush.bf16.msra.mxu0 %v617
  %957 = vmatpush.bf16.msra.mxu0 %v615
  %958 = vmatpush.bf16.msra.mxu0 %v613
  %959 = vmatpush.bf16.msra.mxu0 %v611
  %960 = vmatpush.bf16.msra.mxu0 %v609
  %961 = vmatpush.bf16.msra.mxu0 %v607
  %962 = vmatpush.bf16.msra.mxu0 %v605
  %963 = vmatpush.bf16.msra.mxu0 %v603
  %964 = vmatmul.bf16.gmra.mxu0 %v172
  %v965 = vpop.f32.mrf.mxu0
  %v966 = vadd.f32 %v953, %v965
  %v967 = vpop.f32.mrf.mxu0
  %968 = vdwg.mxu0
  %969 = vmatpush.bf16.msra.mxu0 %v633
  %970 = vmatpush.bf16.msra.mxu0 %v631
  %971 = vmatpush.bf16.msra.mxu0 %v629
  %972 = vmatpush.bf16.msra.mxu0 %v627
  %973 = vmatpush.bf16.msra.mxu0 %v625
  %974 = vmatpush.bf16.msra.mxu0 %v623
  %975 = vmatpush.bf16.msra.mxu0 %v621
  %976 = vmatpush.bf16.msra.mxu0 %v619
  %977 = vmatmul.bf16.gmra.mxu0 %v173
  %v978 = vpop.f32.mrf.mxu0
  %v979 = vadd.f32 %v966, %v978
  %v980 = vpop.f32.mrf.mxu0
  %981 = vdwg.mxu0
  %982 = vmatpush.bf16.msra.mxu0 %v649
  %983 = vmatpush.bf16.msra.mxu0 %v647
  %984 = vmatpush.bf16.msra.mxu0 %v645
  %985 = vmatpush.bf16.msra.mxu0 %v643
  %986 = vmatpush.bf16.msra.mxu0 %v641
  %987 = vmatpush.bf16.msra.mxu0 %v639
  %988 = vmatpush.bf16.msra.mxu0 %v637
  %989 = vmatpush.bf16.msra.mxu0 %v635
  %990 = vmatmul.bf16.gmra.mxu0 %v174
  %v991 = vpop.f32.mrf.mxu0
  %v992 = vadd.f32 %v979, %v991
  %v993 = vpop.f32.mrf.mxu0
  %994 = vdwg.mxu0
  %995 = vmatpush.bf16.msra.mxu0 %v665
  %996 = vmatpush.bf16.msra.mxu0 %v663
  %997 = vmatpush.bf16.msra.mxu0 %v661
  %998 = vmatpush.bf16.msra.mxu0 %v659
  %999 = vmatpush.bf16.msra.mxu0 %v657
  %1000 = vmatpush.bf16.msra.mxu0 %v655
  %1001 = vmatpush.bf16.msra.mxu0 %v653
  %1002 = vmatpush.bf16.msra.mxu0 %v651
  %1003 = vmatmul.bf16.gmra.mxu0 %v175
  %v1004 = vpop.f32.mrf.mxu0
  %v1005 = vadd.f32 %v992, %v1004
  %v1006 = vpop.f32.mrf.mxu0
  %1007 = vdwg.mxu0
  %1008 = vmatpush.bf16.msra.mxu0 %v681
  %1009 = vmatpush.bf16.msra.mxu0 %v679
  %1010 = vmatpush.bf16.msra.mxu0 %v677
  %1011 = vmatpush.bf16.msra.mxu0 %v675
  %1012 = vmatpush.bf16.msra.mxu0 %v673
  %1013 = vmatpush.bf16.msra.mxu0 %v671
  %1014 = vmatpush.bf16.msra.mxu0 %v669
  %1015 = vmatpush.bf16.msra.mxu0 %v667
  %1016 = vmatmul.bf16.gmra.mxu0 %v176
  %v1017 = vpop.f32.mrf.mxu0
  %v1018 = vadd.f32 %v1005, %v1017
  %v1019 = vpop.f32.mrf.mxu0
  %1020 = vdwg.mxu0
  %1021 = vmatpush.bf16.msra.mxu0 %v697
  %1022 = vmatpush.bf16.msra.mxu0 %v695
  %1023 = vmatpush.bf16.msra.mxu0 %v693
  %1024 = vmatpush.bf16.msra.mxu0 %v691
  %1025 = vmatpush.bf16.msra.mxu0 %v689
  %1026 = vmatpush.bf16.msra.mxu0 %v687
  %1027 = vmatpush.bf16.msra.mxu0 %v685
  %1028 = vmatpush.bf16.msra.mxu0 %v683
  %1029 = vmatmul.bf16.gmra.mxu0 %v177
  %v1030 = vpop.f32.mrf.mxu0
  %v1031 = vadd.f32 %v1018, %v1030
  %v1032 = vpop.f32.mrf.mxu0
  %1033 = vdwg.mxu0
  %v1034 = vmax.f32 %v927, 0.0
  %v1035 = vmax.f32 %v1031, 0.0
  %v1036 = vpack.c.bf16 %v1034, %v1034
  %v1037 = vpack.c.bf16 %v1035, %v1035
  %v1038 = vld [vmem:[%s3] sm:$0xff]
  %v1039 = vld [vmem:[%s3 + $0x8] sm:$0xff]
  %v1040 = vld [vmem:[%s3 + $0x10] sm:$0xff]
  %v1041 = vld [vmem:[%s3 + $0x18] sm:$0xff]
  %v1042 = vld [vmem:[%s3 + $0x20] sm:$0xff]
  %v1043 = vld [vmem:[%s3 + $0x28] sm:$0xff]
  %v1044 = vld [vmem:[%s3 + $0x30] sm:$0xff]
  %v1045 = vld [vmem:[%s3 + $0x38] sm:$0xff]
  %v1046 = vld [vmem:[%s3 + $0x40] sm:$0xff]
  %v1047 = vld [vmem:[%s3 + $0x48] sm:$0xff]
  %v1048 = vld [vmem:[%s3 + $0x50] sm:$0xff]
  %v1049 = vld [vmem:[%s3 + $0x58] sm:$0xff]
  %v1050 = vld [vmem:[%s3 + $0x60] sm:$0xff]
  %v1051 = vld [vmem:[%s3 + $0x68] sm:$0xff]
  %v1052 = vld [vmem:[%s3 + $0x70] sm:$0xff]
  %v1053 = vld [vmem:[%s3 + $0x78] sm:$0xff]
  %v1054 = vld [vmem:[%s3 + $0x80] sm:$0xff]
  %v1055 = vld [vmem:[%s3 + $0x88] sm:$0xff]
  %v1056 = vld [vmem:[%s3 + $0x90] sm:$0xff]
  %v1057 = vld [vmem:[%s3 + $0x98] sm:$0xff]
  %v1058 = vld [vmem:[%s3 + $0xa0] sm:$0xff]
  %v1059 = vld [vmem:[%s3 + $0xa8] sm:$0xff]
  %v1060 = vld [vmem:[%s3 + $0xb0] sm:$0xff]
  %v1061 = vld [vmem:[%s3 + $0xb8] sm:$0xff]
  %v1062 = vld [vmem:[%s3 + $0xc0] sm:$0xff]
  %v1063 = vld [vmem:[%s3 + $0xc8] sm:$0xff]
  %v1064 = vld [vmem:[%s3 + $0xd0] sm:$0xff]
  %v1065 = vld [vmem:[%s3 + $0xd8] sm:$0xff]
  %v1066 = vld [vmem:[%s3 + $0xe0] sm:$0xff]
  %v1067 = vld [vmem:[%s3 + $0xe8] sm:$0xff]
  %v1068 = vld [vmem:[%s3 + $0xf0] sm:$0xff]
  %v1069 = vld [vmem:[%s3 + $0xf8] sm:$0xff]
  %v1070 = vld [vmem:[%s3 + $0x100] sm:$0xff]
  %v1071 = vld [vmem:[%s3 + $0x108] sm:$0xff]
  %v1072 = vld [vmem:[%s3 + $0x110] sm:$0xff]
  %v1073 = vld [vmem:[%s3 + $0x118] sm:$0xff]
  %v1074 = vld [vmem:[%s3 + $0x120] sm:$0xff]
  %v1075 = vld [vmem:[%s3 + $0x128] sm:$0xff]
  %v1076 = vld [vmem:[%s3 + $0x130] sm:$0xff]
  %v1077 = vld [vmem:[%s3 + $0x138] sm:$0xff]
  %v1078 = vld [vmem:[%s3 + $0x140] sm:$0xff]
  %v1079 = vld [vmem:[%s3 + $0x148] sm:$0xff]
  %v1080 = vld [vmem:[%s3 + $0x150] sm:$0xff]
  %v1081 = vld [vmem:[%s3 + $0x158] sm:$0xff]
  %v1082 = vld [vmem:[%s3 + $0x160] sm:$0xff]
  %v1083 = vld [vmem:[%s3 + $0x168] sm:$0xff]
  %v1084 = vld [vmem:[%s3 + $0x170] sm:$0xff]
  %v1085 = vld [vmem:[%s3 + $0x178] sm:$0xff]
  %v1086 = vld [vmem:[%s3 + $0x180] sm:$0xff]
  %v1087 = vld [vmem:[%s3 + $0x188] sm:$0xff]
  %v1088 = vld [vmem:[%s3 + $0x190] sm:$0xff]
  %v1089 = vld [vmem:[%s3 + $0x198] sm:$0xff]
  %v1090 = vld [vmem:[%s3 + $0x1a0] sm:$0xff]
  %v1091 = vld [vmem:[%s3 + $0x1a8] sm:$0xff]
  %v1092 = vld [vmem:[%s3 + $0x1b0] sm:$0xff]
  %v1093 = vld [vmem:[%s3 + $0x1b8] sm:$0xff]
  %v1094 = vld [vmem:[%s3 + $0x1c0] sm:$0xff]
  %v1095 = vld [vmem:[%s3 + $0x1c8] sm:$0xff]
  %v1096 = vld [vmem:[%s3 + $0x1d0] sm:$0xff]
  %v1097 = vld [vmem:[%s3 + $0x1d8] sm:$0xff]
  %v1098 = vld [vmem:[%s3 + $0x1e0] sm:$0xff]
  %v1099 = vld [vmem:[%s3 + $0x1e8] sm:$0xff]
  %v1100 = vld [vmem:[%s3 + $0x1f0] sm:$0xff]
  %v1101 = vld [vmem:[%s3 + $0x1f8] sm:$0xff]
  %v1102 = vld [vmem:[%s3 + $0x200] sm:$0xff]
  %v1103 = vld [vmem:[%s3 + $0x208] sm:$0xff]
  %v1104 = vld [vmem:[%s3 + $0x210] sm:$0xff]
  %v1105 = vld [vmem:[%s3 + $0x218] sm:$0xff]
  %v1106 = vld [vmem:[%s3 + $0x220] sm:$0xff]
  %v1107 = vld [vmem:[%s3 + $0x228] sm:$0xff]
  %v1108 = vld [vmem:[%s3 + $0x230] sm:$0xff]
  %v1109 = vld [vmem:[%s3 + $0x238] sm:$0xff]
  %v1110 = vld [vmem:[%s3 + $0x240] sm:$0xff]
  %v1111 = vld [vmem:[%s3 + $0x248] sm:$0xff]
  %v1112 = vld [vmem:[%s3 + $0x250] sm:$0xff]
  %v1113 = vld [vmem:[%s3 + $0x258] sm:$0xff]
  %v1114 = vld [vmem:[%s3 + $0x260] sm:$0xff]
  %v1115 = vld [vmem:[%s3 + $0x268] sm:$0xff]
  %v1116 = vld [vmem:[%s3 + $0x270] sm:$0xff]
  %v1117 = vld [vmem:[%s3 + $0x278] sm:$0xff]
  %v1118 = vld [vmem:[%s3 + $0x280] sm:$0xff]
  %v1119 = vld [vmem:[%s3 + $0x288] sm:$0xff]
  %v1120 = vld [vmem:[%s3 + $0x290] sm:$0xff]
  %v1121 = vld [vmem:[%s3 + $0x298] sm:$0xff]
  %v1122 = vld [vmem:[%s3 + $0x2a0] sm:$0xff]
  %v1123 = vld [vmem:[%s3 + $0x2a8] sm:$0xff]
  %v1124 = vld [vmem:[%s3 + $0x2b0] sm:$0xff]
  %v1125 = vld [vmem:[%s3 + $0x2b8] sm:$0xff]
  %v1126 = vld [vmem:[%s3 + $0x2c0] sm:$0xff]
  %v1127 = vld [vmem:[%s3 + $0x2c8] sm:$0xff]
  %v1128 = vld [vmem:[%s3 + $0x2d0] sm:$0xff]
  %v1129 = vld [vmem:[%s3 + $0x2d8] sm:$0xff]
  %v1130 = vld [vmem:[%s3 + $0x2e0] sm:$0xff]
  %v1131 = vld [vmem:[%s3 + $0x2e8] sm:$0xff]
  %v1132 = vld [vmem:[%s3 + $0x2f0] sm:$0xff]
  %v1133 = vld [vmem:[%s3 + $0x2f8] sm:$0xff]
  %v1134 = vld [vmem:[%s4] sm:$0x3f]
  %v1136 = vperm.slane %v1134, 0
  %v1137 = vperm.slane %v1134, 1
  %v1138 = vperm.slane %v1134, 2
  %v1139 = vperm.slane %v1134, 3
  %v1140 = vperm.slane %v1134, 4
  %v1141 = vperm.slane %v1134, 5
  %v1244 = vunpack.c.l.b16 %v1038
  %v1245 = vunpack.c.h.b16 %v1038
  %v1246 = vunpack.c.l.b16 %v1039
  %v1247 = vunpack.c.h.b16 %v1039
  %v1248 = vunpack.c.l.b16 %v1040
  %v1249 = vunpack.c.h.b16 %v1040
  %v1250 = vunpack.c.l.b16 %v1041
  %v1251 = vunpack.c.h.b16 %v1041
  %v1252 = vunpack.c.l.b16 %v1042
  %v1253 = vunpack.c.h.b16 %v1042
  %v1254 = vunpack.c.l.b16 %v1043
  %v1255 = vunpack.c.h.b16 %v1043
  %v1256 = vunpack.c.l.b16 %v1044
  %v1257 = vunpack.c.h.b16 %v1044
  %v1258 = vunpack.c.l.b16 %v1045
  %v1259 = vunpack.c.h.b16 %v1045
  %v1260 = vunpack.c.l.b16 %v1046
  %v1261 = vunpack.c.h.b16 %v1046
  %v1262 = vunpack.c.l.b16 %v1047
  %v1263 = vunpack.c.h.b16 %v1047
  %v1264 = vunpack.c.l.b16 %v1048
  %v1265 = vunpack.c.h.b16 %v1048
  %v1266 = vunpack.c.l.b16 %v1049
  %v1267 = vunpack.c.h.b16 %v1049
  %v1268 = vunpack.c.l.b16 %v1050
  %v1269 = vunpack.c.h.b16 %v1050
  %v1270 = vunpack.c.l.b16 %v1051
  %v1271 = vunpack.c.h.b16 %v1051
  %v1272 = vunpack.c.l.b16 %v1052
  %v1273 = vunpack.c.h.b16 %v1052
  %v1274 = vunpack.c.l.b16 %v1053
  %v1275 = vunpack.c.h.b16 %v1053
  %v1276 = vunpack.c.l.b16 %v1054
  %v1277 = vunpack.c.h.b16 %v1054
  %v1278 = vunpack.c.l.b16 %v1055
  %v1279 = vunpack.c.h.b16 %v1055
  %v1280 = vunpack.c.l.b16 %v1056
  %v1281 = vunpack.c.h.b16 %v1056
  %v1282 = vunpack.c.l.b16 %v1057
  %v1283 = vunpack.c.h.b16 %v1057
  %v1284 = vunpack.c.l.b16 %v1058
  %v1285 = vunpack.c.h.b16 %v1058
  %v1286 = vunpack.c.l.b16 %v1059
  %v1287 = vunpack.c.h.b16 %v1059
  %v1288 = vunpack.c.l.b16 %v1060
  %v1289 = vunpack.c.h.b16 %v1060
  %v1290 = vunpack.c.l.b16 %v1061
  %v1291 = vunpack.c.h.b16 %v1061
  %v1292 = vunpack.c.l.b16 %v1062
  %v1293 = vunpack.c.h.b16 %v1062
  %v1294 = vunpack.c.l.b16 %v1063
  %v1295 = vunpack.c.h.b16 %v1063
  %v1296 = vunpack.c.l.b16 %v1064
  %v1297 = vunpack.c.h.b16 %v1064
  %v1298 = vunpack.c.l.b16 %v1065
  %v1299 = vunpack.c.h.b16 %v1065
  %v1300 = vunpack.c.l.b16 %v1066
  %v1301 = vunpack.c.h.b16 %v1066
  %v1302 = vunpack.c.l.b16 %v1067
  %v1303 = vunpack.c.h.b16 %v1067
  %v1304 = vunpack.c.l.b16 %v1068
  %v1305 = vunpack.c.h.b16 %v1068
  %v1306 = vunpack.c.l.b16 %v1069
  %v1307 = vunpack.c.h.b16 %v1069
  %v1308 = vunpack.c.l.b16 %v1070
  %v1309 = vunpack.c.h.b16 %v1070
  %v1310 = vunpack.c.l.b16 %v1071
  %v1311 = vunpack.c.h.b16 %v1071
  %v1312 = vunpack.c.l.b16 %v1072
  %v1313 = vunpack.c.h.b16 %v1072
  %v1314 = vunpack.c.l.b16 %v1073
  %v1315 = vunpack.c.h.b16 %v1073
  %v1316 = vunpack.c.l.b16 %v1074
  %v1317 = vunpack.c.h.b16 %v1074
  %v1318 = vunpack.c.l.b16 %v1075
  %v1319 = vunpack.c.h.b16 %v1075
  %v1320 = vunpack.c.l.b16 %v1076
  %v1321 = vunpack.c.h.b16 %v1076
  %v1322 = vunpack.c.l.b16 %v1077
  %v1323 = vunpack.c.h.b16 %v1077
  %v1324 = vunpack.c.l.b16 %v1078
  %v1325 = vunpack.c.h.b16 %v1078
  %v1326 = vunpack.c.l.b16 %v1079
  %v1327 = vunpack.c.h.b16 %v1079
  %v1328 = vunpack.c.l.b16 %v1080
  %v1329 = vunpack.c.h.b16 %v1080
  %v1330 = vunpack.c.l.b16 %v1081
  %v1331 = vunpack.c.h.b16 %v1081
  %v1332 = vunpack.c.l.b16 %v1082
  %v1333 = vunpack.c.h.b16 %v1082
  %v1334 = vunpack.c.l.b16 %v1083
  %v1335 = vunpack.c.h.b16 %v1083
  %v1336 = vunpack.c.l.b16 %v1084
  %v1337 = vunpack.c.h.b16 %v1084
  %v1338 = vunpack.c.l.b16 %v1085
  %v1339 = vunpack.c.h.b16 %v1085
  %v1340 = vunpack.c.l.b16 %v1086
  %v1341 = vunpack.c.h.b16 %v1086
  %v1342 = vunpack.c.l.b16 %v1087
  %v1343 = vunpack.c.h.b16 %v1087
  %v1344 = vunpack.c.l.b16 %v1088
  %v1345 = vunpack.c.h.b16 %v1088
  %v1346 = vunpack.c.l.b16 %v1089
  %v1347 = vunpack.c.h.b16 %v1089
  %v1348 = vunpack.c.l.b16 %v1090
  %v1349 = vunpack.c.h.b16 %v1090
  %v1350 = vunpack.c.l.b16 %v1091
  %v1351 = vunpack.c.h.b16 %v1091
  %v1352 = vunpack.c.l.b16 %v1092
  %v1353 = vunpack.c.h.b16 %v1092
  %v1354 = vunpack.c.l.b16 %v1093
  %v1355 = vunpack.c.h.b16 %v1093
  %v1356 = vunpack.c.l.b16 %v1094
  %v1357 = vunpack.c.h.b16 %v1094
  %v1358 = vunpack.c.l.b16 %v1095
  %v1359 = vunpack.c.h.b16 %v1095
  %v1360 = vunpack.c.l.b16 %v1096
  %v1361 = vunpack.c.h.b16 %v1096
  %v1362 = vunpack.c.l.b16 %v1097
  %v1363 = vunpack.c.h.b16 %v1097
  %v1364 = vunpack.c.l.b16 %v1098
  %v1365 = vunpack.c.h.b16 %v1098
  %v1366 = vunpack.c.l.b16 %v1099
  %v1367 = vunpack.c.h.b16 %v1099
  %v1368 = vunpack.c.l.b16 %v1100
  %v1369 = vunpack.c.h.b16 %v1100
  %v1370 = vunpack.c.l.b16 %v1101
  %v1371 = vunpack.c.h.b16 %v1101
  %v1372 = vunpack.c.l.b16 %v1102
  %v1373 = vunpack.c.h.b16 %v1102
  %v1374 = vunpack.c.l.b16 %v1103
  %v1375 = vunpack.c.h.b16 %v1103
  %v1376 = vunpack.c.l.b16 %v1104
  %v1377 = vunpack.c.h.b16 %v1104
  %v1378 = vunpack.c.l.b16 %v1105
  %v1379 = vunpack.c.h.b16 %v1105
  %v1380 = vunpack.c.l.b16 %v1106
  %v1381 = vunpack.c.h.b16 %v1106
  %v1382 = vunpack.c.l.b16 %v1107
  %v1383 = vunpack.c.h.b16 %v1107
  %v1384 = vunpack.c.l.b16 %v1108
  %v1385 = vunpack.c.h.b16 %v1108
  %v1386 = vunpack.c.l.b16 %v1109
  %v1387 = vunpack.c.h.b16 %v1109
  %v1388 = vunpack.c.l.b16 %v1110
  %v1389 = vunpack.c.h.b16 %v1110
  %v1390 = vunpack.c.l.b16 %v1111
  %v1391 = vunpack.c.h.b16 %v1111
  %v1392 = vunpack.c.l.b16 %v1112
  %v1393 = vunpack.c.h.b16 %v1112
  %v1394 = vunpack.c.l.b16 %v1113
  %v1395 = vunpack.c.h.b16 %v1113
  %v1396 = vunpack.c.l.b16 %v1114
  %v1397 = vunpack.c.h.b16 %v1114
  %v1398 = vunpack.c.l.b16 %v1115
  %v1399 = vunpack.c.h.b16 %v1115
  %v1400 = vunpack.c.l.b16 %v1116
  %v1401 = vunpack.c.h.b16 %v1116
  %v1402 = vunpack.c.l.b16 %v1117
  %v1403 = vunpack.c.h.b16 %v1117
  %v1404 = vunpack.c.l.b16 %v1118
  %v1405 = vunpack.c.h.b16 %v1118
  %v1406 = vunpack.c.l.b16 %v1119
  %v1407 = vunpack.c.h.b16 %v1119
  %v1408 = vunpack.c.l.b16 %v1120
  %v1409 = vunpack.c.h.b16 %v1120
  %v1410 = vunpack.c.l.b16 %v1121
  %v1411 = vunpack.c.h.b16 %v1121
  %v1412 = vunpack.c.l.b16 %v1122
  %v1413 = vunpack.c.h.b16 %v1122
  %v1414 = vunpack.c.l.b16 %v1123
  %v1415 = vunpack.c.h.b16 %v1123
  %v1416 = vunpack.c.l.b16 %v1124
  %v1417 = vunpack.c.h.b16 %v1124
  %v1418 = vunpack.c.l.b16 %v1125
  %v1419 = vunpack.c.h.b16 %v1125
  %v1420 = vunpack.c.l.b16 %v1126
  %v1421 = vunpack.c.h.b16 %v1126
  %v1422 = vunpack.c.l.b16 %v1127
  %v1423 = vunpack.c.h.b16 %v1127
  %v1424 = vunpack.c.l.b16 %v1128
  %v1425 = vunpack.c.h.b16 %v1128
  %v1426 = vunpack.c.l.b16 %v1129
  %v1427 = vunpack.c.h.b16 %v1129
  %v1428 = vunpack.c.l.b16 %v1130
  %v1429 = vunpack.c.h.b16 %v1130
  %v1430 = vunpack.c.l.b16 %v1131
  %v1431 = vunpack.c.h.b16 %v1131
  %v1432 = vunpack.c.l.b16 %v1132
  %v1433 = vunpack.c.h.b16 %v1132
  %v1434 = vunpack.c.l.b16 %v1133
  %v1435 = vunpack.c.h.b16 %v1133
  %v1436 = vpack.c.b16 %v1250, %v1244
  %v1437 = vpack.c.b16 %v1251, %v1245
  %v1438 = vpack.c.b16 %v1252, %v1246
  %v1439 = vpack.c.b16 %v1253, %v1247
  %v1440 = vpack.c.b16 %v1254, %v1248
  %v1441 = vpack.c.b16 %v1255, %v1249
  %v1442 = vpack.c.b16 %v1262, %v1256
  %v1443 = vpack.c.b16 %v1263, %v1257
  %v1444 = vpack.c.b16 %v1264, %v1258
  %v1445 = vpack.c.b16 %v1265, %v1259
  %v1446 = vpack.c.b16 %v1266, %v1260
  %v1447 = vpack.c.b16 %v1267, %v1261
  %v1448 = vpack.c.b16 %v1274, %v1268
  %v1449 = vpack.c.b16 %v1275, %v1269
  %v1450 = vpack.c.b16 %v1276, %v1270
  %v1451 = vpack.c.b16 %v1277, %v1271
  %v1452 = vpack.c.b16 %v1278, %v1272
  %v1453 = vpack.c.b16 %v1279, %v1273
  %v1454 = vpack.c.b16 %v1286, %v1280
  %v1455 = vpack.c.b16 %v1287, %v1281
  %v1456 = vpack.c.b16 %v1288, %v1282
  %v1457 = vpack.c.b16 %v1289, %v1283
  %v1458 = vpack.c.b16 %v1290, %v1284
  %v1459 = vpack.c.b16 %v1291, %v1285
  %v1460 = vpack.c.b16 %v1298, %v1292
  %v1461 = vpack.c.b16 %v1299, %v1293
  %v1462 = vpack.c.b16 %v1300, %v1294
  %v1463 = vpack.c.b16 %v1301, %v1295
  %v1464 = vpack.c.b16 %v1302, %v1296
  %v1465 = vpack.c.b16 %v1303, %v1297
  %v1466 = vpack.c.b16 %v1310, %v1304
  %v1467 = vpack.c.b16 %v1311, %v1305
  %v1468 = vpack.c.b16 %v1312, %v1306
  %v1469 = vpack.c.b16 %v1313, %v1307
  %v1470 = vpack.c.b16 %v1314, %v1308
  %v1471 = vpack.c.b16 %v1315, %v1309
  %v1472 = vpack.c.b16 %v1322, %v1316
  %v1473 = vpack.c.b16 %v1323, %v1317
  %v1474 = vpack.c.b16 %v1324, %v1318
  %v1475 = vpack.c.b16 %v1325, %v1319
  %v1476 = vpack.c.b16 %v1326, %v1320
  %v1477 = vpack.c.b16 %v1327, %v1321
  %v1478 = vpack.c.b16 %v1334, %v1328
  %v1479 = vpack.c.b16 %v1335, %v1329
  %v1480 = vpack.c.b16 %v1336, %v1330
  %v1481 = vpack.c.b16 %v1337, %v1331
  %v1482 = vpack.c.b16 %v1338, %v1332
  %v1483 = vpack.c.b16 %v1339, %v1333
  %v1484 = vpack.c.b16 %v1346, %v1340
  %v1485 = vpack.c.b16 %v1347, %v1341
  %v1486 = vpack.c.b16 %v1348, %v1342
  %v1487 = vpack.c.b16 %v1349, %v1343
  %v1488 = vpack.c.b16 %v1350, %v1344
  %v1489 = vpack.c.b16 %v1351, %v1345
  %v1490 = vpack.c.b16 %v1358, %v1352
  %v1491 = vpack.c.b16 %v1359, %v1353
  %v1492 = vpack.c.b16 %v1360, %v1354
  %v1493 = vpack.c.b16 %v1361, %v1355
  %v1494 = vpack.c.b16 %v1362, %v1356
  %v1495 = vpack.c.b16 %v1363, %v1357
  %v1496 = vpack.c.b16 %v1370, %v1364
  %v1497 = vpack.c.b16 %v1371, %v1365
  %v1498 = vpack.c.b16 %v1372, %v1366
  %v1499 = vpack.c.b16 %v1373, %v1367
  %v1500 = vpack.c.b16 %v1374, %v1368
  %v1501 = vpack.c.b16 %v1375, %v1369
  %v1502 = vpack.c.b16 %v1382, %v1376
  %v1503 = vpack.c.b16 %v1383, %v1377
  %v1504 = vpack.c.b16 %v1384, %v1378
  %v1505 = vpack.c.b16 %v1385, %v1379
  %v1506 = vpack.c.b16 %v1386, %v1380
  %v1507 = vpack.c.b16 %v1387, %v1381
  %v1508 = vpack.c.b16 %v1394, %v1388
  %v1509 = vpack.c.b16 %v1395, %v1389
  %v1510 = vpack.c.b16 %v1396, %v1390
  %v1511 = vpack.c.b16 %v1397, %v1391
  %v1512 = vpack.c.b16 %v1398, %v1392
  %v1513 = vpack.c.b16 %v1399, %v1393
  %v1514 = vpack.c.b16 %v1406, %v1400
  %v1515 = vpack.c.b16 %v1407, %v1401
  %v1516 = vpack.c.b16 %v1408, %v1402
  %v1517 = vpack.c.b16 %v1409, %v1403
  %v1518 = vpack.c.b16 %v1410, %v1404
  %v1519 = vpack.c.b16 %v1411, %v1405
  %v1520 = vpack.c.b16 %v1418, %v1412
  %v1521 = vpack.c.b16 %v1419, %v1413
  %v1522 = vpack.c.b16 %v1420, %v1414
  %v1523 = vpack.c.b16 %v1421, %v1415
  %v1524 = vpack.c.b16 %v1422, %v1416
  %v1525 = vpack.c.b16 %v1423, %v1417
  %v1526 = vpack.c.b16 %v1430, %v1424
  %v1527 = vpack.c.b16 %v1431, %v1425
  %v1528 = vpack.c.b16 %v1432, %v1426
  %v1529 = vpack.c.b16 %v1433, %v1427
  %v1530 = vpack.c.b16 %v1434, %v1428
  %v1531 = vpack.c.b16 %v1435, %v1429
  %1628 = vmatpush.bf16.msra.mxu0 %v1478
  %1629 = vmatpush.bf16.msra.mxu0 %v1472
  %1630 = vmatpush.bf16.msra.mxu0 %v1466
  %1631 = vmatpush.bf16.msra.mxu0 %v1460
  %1632 = vmatpush.bf16.msra.mxu0 %v1454
  %1633 = vmatpush.bf16.msra.mxu0 %v1448
  %1634 = vmatpush.bf16.msra.mxu0 %v1442
  %1635 = vmatpush.bf16.msra.mxu0 %v1436
  %1636 = vmatmul.bf16.gmra.mxu0 %v1036
  %v1637 = vpop.f32.mrf.mxu0
  %v1638 = vadd.f32 %v1136, %v1637
  %v1639 = vpop.f32.mrf.mxu0
  %1640 = vdwg.mxu0
  %1641 = vmatpush.bf16.msra.mxu0 %v1526
  %1642 = vmatpush.bf16.msra.mxu0 %v1520
  %1643 = vmatpush.bf16.msra.mxu0 %v1514
  %1644 = vmatpush.bf16.msra.mxu0 %v1508
  %1645 = vmatpush.bf16.msra.mxu0 %v1502
  %1646 = vmatpush.bf16.msra.mxu0 %v1496
  %1647 = vmatpush.bf16.msra.mxu0 %v1490
  %1648 = vmatpush.bf16.msra.mxu0 %v1484
  %1649 = vmatmul.bf16.gmra.mxu0 %v1037
  %v1650 = vpop.f32.mrf.mxu0
  %v1651 = vadd.f32 %v1638, %v1650
  %v1652 = vpop.f32.mrf.mxu0
  %1653 = vdwg.mxu0
  %1654 = vmatpush.bf16.msra.mxu0 %v1479
  %1655 = vmatpush.bf16.msra.mxu0 %v1473
  %1656 = vmatpush.bf16.msra.mxu0 %v1467
  %1657 = vmatpush.bf16.msra.mxu0 %v1461
  %1658 = vmatpush.bf16.msra.mxu0 %v1455
  %1659 = vmatpush.bf16.msra.mxu0 %v1449
  %1660 = vmatpush.bf16.msra.mxu0 %v1443
  %1661 = vmatpush.bf16.msra.mxu0 %v1437
  %1662 = vmatmul.bf16.gmra.mxu0 %v1036
  %v1663 = vpop.f32.mrf.mxu0
  %v1664 = vadd.f32 %v1137, %v1663
  %v1665 = vpop.f32.mrf.mxu0
  %1666 = vdwg.mxu0
  %1667 = vmatpush.bf16.msra.mxu0 %v1527
  %1668 = vmatpush.bf16.msra.mxu0 %v1521
  %1669 = vmatpush.bf16.msra.mxu0 %v1515
  %1670 = vmatpush.bf16.msra.mxu0 %v1509
  %1671 = vmatpush.bf16.msra.mxu0 %v1503
  %1672 = vmatpush.bf16.msra.mxu0 %v1497
  %1673 = vmatpush.bf16.msra.mxu0 %v1491
  %1674 = vmatpush.bf16.msra.mxu0 %v1485
  %1675 = vmatmul.bf16.gmra.mxu0 %v1037
  %v1676 = vpop.f32.mrf.mxu0
  %v1677 = vadd.f32 %v1664, %v1676
  %v1678 = vpop.f32.mrf.mxu0
  %1679 = vdwg.mxu0
  %1680 = vmatpush.bf16.msra.mxu0 %v1480
  %1681 = vmatpush.bf16.msra.mxu0 %v1474
  %1682 = vmatpush.bf16.msra.mxu0 %v1468
  %1683 = vmatpush.bf16.msra.mxu0 %v1462
  %1684 = vmatpush.bf16.msra.mxu0 %v1456
  %1685 = vmatpush.bf16.msra.mxu0 %v1450
  %1686 = vmatpush.bf16.msra.mxu0 %v1444
  %1687 = vmatpush.bf16.msra.mxu0 %v1438
  %1688 = vmatmul.bf16.gmra.mxu0 %v1036
  %v1689 = vpop.f32.mrf.mxu0
  %v1690 = vadd.f32 %v1138, %v1689
  %v1691 = vpop.f32.mrf.mxu0
  %1692 = vdwg.mxu0
  %1693 = vmatpush.bf16.msra.mxu0 %v1528
  %1694 = vmatpush.bf16.msra.mxu0 %v1522
  %1695 = vmatpush.bf16.msra.mxu0 %v1516
  %1696 = vmatpush.bf16.msra.mxu0 %v1510
  %1697 = vmatpush.bf16.msra.mxu0 %v1504
  %1698 = vmatpush.bf16.msra.mxu0 %v1498
  %1699 = vmatpush.bf16.msra.mxu0 %v1492
  %1700 = vmatpush.bf16.msra.mxu0 %v1486
  %1701 = vmatmul.bf16.gmra.mxu0 %v1037
  %v1702 = vpop.f32.mrf.mxu0
  %v1703 = vadd.f32 %v1690, %v1702
  %v1704 = vpop.f32.mrf.mxu0
  %1705 = vdwg.mxu0
  %1706 = vmatpush.bf16.msra.mxu0 %v1481
  %1707 = vmatpush.bf16.msra.mxu0 %v1475
  %1708 = vmatpush.bf16.msra.mxu0 %v1469
  %1709 = vmatpush.bf16.msra.mxu0 %v1463
  %1710 = vmatpush.bf16.msra.mxu0 %v1457
  %1711 = vmatpush.bf16.msra.mxu0 %v1451
  %1712 = vmatpush.bf16.msra.mxu0 %v1445
  %1713 = vmatpush.bf16.msra.mxu0 %v1439
  %1714 = vmatmul.bf16.gmra.mxu0 %v1036
  %v1715 = vpop.f32.mrf.mxu0
  %v1716 = vadd.f32 %v1139, %v1715
  %v1717 = vpop.f32.mrf.mxu0
  %1718 = vdwg.mxu0
  %1719 = vmatpush.bf16.msra.mxu0 %v1529
  %1720 = vmatpush.bf16.msra.mxu0 %v1523
  %1721 = vmatpush.bf16.msra.mxu0 %v1517
  %1722 = vmatpush.bf16.msra.mxu0 %v1511
  %1723 = vmatpush.bf16.msra.mxu0 %v1505
  %1724 = vmatpush.bf16.msra.mxu0 %v1499
  %1725 = vmatpush.bf16.msra.mxu0 %v1493
  %1726 = vmatpush.bf16.msra.mxu0 %v1487
  %1727 = vmatmul.bf16.gmra.mxu0 %v1037
  %v1728 = vpop.f32.mrf.mxu0
  %v1729 = vadd.f32 %v1716, %v1728
  %v1730 = vpop.f32.mrf.mxu0
  %1731 = vdwg.mxu0
  %1732 = vmatpush.bf16.msra.mxu0 %v1482
  %1733 = vmatpush.bf16.msra.mxu0 %v1476
  %1734 = vmatpush.bf16.msra.mxu0 %v1470
  %1735 = vmatpush.bf16.msra.mxu0 %v1464
  %1736 = vmatpush.bf16.msra.mxu0 %v1458
  %1737 = vmatpush.bf16.msra.mxu0 %v1452
  %1738 = vmatpush.bf16.msra.mxu0 %v1446
  %1739 = vmatpush.bf16.msra.mxu0 %v1440
  %1740 = vmatmul.bf16.gmra.mxu0 %v1036
  %v1741 = vpop.f32.mrf.mxu0
  %v1742 = vadd.f32 %v1140, %v1741
  %v1743 = vpop.f32.mrf.mxu0
  %1744 = vdwg.mxu0
  %1745 = vmatpush.bf16.msra.mxu0 %v1530
  %1746 = vmatpush.bf16.msra.mxu0 %v1524
  %1747 = vmatpush.bf16.msra.mxu0 %v1518
  %1748 = vmatpush.bf16.msra.mxu0 %v1512
  %1749 = vmatpush.bf16.msra.mxu0 %v1506
  %1750 = vmatpush.bf16.msra.mxu0 %v1500
  %1751 = vmatpush.bf16.msra.mxu0 %v1494
  %1752 = vmatpush.bf16.msra.mxu0 %v1488
  %1753 = vmatmul.bf16.gmra.mxu0 %v1037
  %v1754 = vpop.f32.mrf.mxu0
  %v1755 = vadd.f32 %v1742, %v1754
  %v1756 = vpop.f32.mrf.mxu0
  %1757 = vdwg.mxu0
  %1758 = vmatpush.bf16.msra.mxu0 %v1483
  %1759 = vmatpush.bf16.msra.mxu0 %v1477
  %1760 = vmatpush.bf16.msra.mxu0 %v1471
  %1761 = vmatpush.bf16.msra.mxu0 %v1465
  %1762 = vmatpush.bf16.msra.mxu0 %v1459
  %1763 = vmatpush.bf16.msra.mxu0 %v1453
  %1764 = vmatpush.bf16.msra.mxu0 %v1447
  %1765 = vmatpush.bf16.msra.mxu0 %v1441
  %1766 = vmatmul.bf16.gmra.mxu0 %v1036
  %v1767 = vpop.f32.mrf.mxu0
  %v1768 = vadd.f32 %v1141, %v1767
  %v1769 = vpop.f32.mrf.mxu0
  %1770 = vdwg.mxu0
  %1771 = vmatpush.bf16.msra.mxu0 %v1531
  %1772 = vmatpush.bf16.msra.mxu0 %v1525
  %1773 = vmatpush.bf16.msra.mxu0 %v1519
  %1774 = vmatpush.bf16.msra.mxu0 %v1513
  %1775 = vmatpush.bf16.msra.mxu0 %v1507
  %1776 = vmatpush.bf16.msra.mxu0 %v1501
  %1777 = vmatpush.bf16.msra.mxu0 %v1495
  %1778 = vmatpush.bf16.msra.mxu0 %v1489
  %1779 = vmatmul.bf16.gmra.mxu0 %v1037
  %v1780 = vpop.f32.mrf.mxu0
  %v1781 = vadd.f32 %v1768, %v1780
  %v1782 = vpop.f32.mrf.mxu0
  %1783 = vdwg.mxu0
  %1784 = vst [vmem:[%s5] sm:$0xff] %v1651
  %1785 = vst [vmem:[%s5 + $0x8] sm:$0xff] %v1677
  %1786 = vst [vmem:[%s5 + $0x10] sm:$0xff] %v1703
  %1787 = vst [vmem:[%s5 + $0x18] sm:$0xff] %v1729
  %1788 = vst [vmem:[%s5 + $0x20] sm:$0xff] %v1755
  %1789 = vst [vmem:[%s5 + $0x28] sm:$0xff] %v1781
  // Predicated region
  $region22: #{predictive_autoencoder.9} parent=0 // pred_check
    _
  $region23: #{predictive_autoencoder.9} parent=0 // pred_check_branch
    %1791 = sbr.rel (0) target = $region25
  $region24: #{predictive_autoencoder.9} parent=0 // pred_region
    _
  $region25: #{predictive_autoencoder.9} parent=0 // pred_fallthru
    _
  // Predicated region
  $region26: #{predictive_autoencoder.9} parent=0 // pred_check
    _
  $region27: #{predictive_autoencoder.9} parent=0 // pred_check_branch
    %1793 = sbr.rel (0) target = $region29
  $region28: #{predictive_autoencoder.9} parent=0 // pred_region
    _
  $region29: #{predictive_autoencoder.9} parent=0 // pred_fallthru
    _

// kernel: predictive_autoencoder.11
$region0: #{predictive_autoencoder.11}
  #allocation0 [shape = 'u32[]', space=smem, size = 0x4, offset = 0x4, fixed_abs, tag = 'smem constant byte address 0x4 - core index']
  #allocation1 [shape = 'u32[72,128]{1,0:T(1,128)}', space=vmem, size = 0x9000, scoped, tag = 'internal scratch']
  %s0 = inlined_call_operand.vmem [shape: bf16[8,256], index: 0, kind: input, shape index: {}]
  %s1 = inlined_call_operand.vmem [shape: bf16[256,1024], index: 1, kind: input, shape index: {}]
  %s2 = inlined_call_operand.vmem [shape: f32[1,1024], index: 2, kind: input, shape index: {}]
  %s3 = inlined_call_operand.vmem [shape: bf16[8,1024], index: 3, kind: output, shape index: {}]
  %s4 = sld [smem:[#allocation0]]
  $region22: #{predictive_autoencoder.11} parent=0
    _
  %s6 = ssub.s32 1, %s4
  %s7 = scalar_select 0, %s6, %s4
  // Predicated region
  $region2: #{predictive_autoencoder.11} parent=0 // pred_check
    _
  $region3: #{predictive_autoencoder.11} parent=0 // pred_check_branch
    %9 = sbr.rel (0) target = $region5
  $region4: #{predictive_autoencoder.11} parent=0 // pred_region
    _
  $region5: #{predictive_autoencoder.11} parent=0 // pred_fallthru
    _
  // Predicated region
  $region6: #{predictive_autoencoder.11} parent=0 // pred_check
    _
  $region7: #{predictive_autoencoder.11} parent=0 // pred_check_branch
    %11 = sbr.rel (0) target = $region9
  $region8: #{predictive_autoencoder.11} parent=0 // pred_region
    _
  $region9: #{predictive_autoencoder.11} parent=0 // pred_fallthru
    _
  // Predicated region
  $region10: #{predictive_autoencoder.11} parent=0 // pred_check
    _
  $region11: #{predictive_autoencoder.11} parent=0 // pred_check_branch
    %13 = sbr.rel (0) target = $region13
  $region12: #{predictive_autoencoder.11} parent=0 // pred_region
    _
  $region13: #{predictive_autoencoder.11} parent=0 // pred_fallthru
    _
  %v14 = vld [vmem:[%s0] sm:$0xff]
  %v15 = vld [vmem:[%s1] sm:$0xff]
  %v16 = vld [vmem:[%s1 + $0x8] sm:$0xff]
  %v17 = vld [vmem:[%s1 + $0x10] sm:$0xff]
  %v18 = vld [vmem:[%s1 + $0x18] sm:$0xff]
  %v19 = vld [vmem:[%s1 + $0x20] sm:$0xff]
  %v20 = vld [vmem:[%s1 + $0x28] sm:$0xff]
  %v21 = vld [vmem:[%s1 + $0x30] sm:$0xff]
  %v22 = vld [vmem:[%s1 + $0x38] sm:$0xff]
  %v23 = vld [vmem:[%s1 + $0x40] sm:$0xff]
  %v24 = vld [vmem:[%s1 + $0x48] sm:$0xff]
  %v25 = vld [vmem:[%s1 + $0x50] sm:$0xff]
  %v26 = vld [vmem:[%s1 + $0x58] sm:$0xff]
  %v27 = vld [vmem:[%s1 + $0x60] sm:$0xff]
  %v28 = vld [vmem:[%s1 + $0x68] sm:$0xff]
  %v29 = vld [vmem:[%s1 + $0x70] sm:$0xff]
  %v30 = vld [vmem:[%s1 + $0x78] sm:$0xff]
  %v31 = vld [vmem:[%s1 + $0x80] sm:$0xff]
  %v32 = vld [vmem:[%s1 + $0x88] sm:$0xff]
  %v33 = vld [vmem:[%s1 + $0x90] sm:$0xff]
  %v34 = vld [vmem:[%s1 + $0x98] sm:$0xff]
  %v35 = vld [vmem:[%s1 + $0xa0] sm:$0xff]
  %v36 = vld [vmem:[%s1 + $0xa8] sm:$0xff]
  %v37 = vld [vmem:[%s1 + $0xb0] sm:$0xff]
  %v38 = vld [vmem:[%s1 + $0xb8] sm:$0xff]
  %v39 = vld [vmem:[%s1 + $0xc0] sm:$0xff]
  %v40 = vld [vmem:[%s1 + $0xc8] sm:$0xff]
  %v41 = vld [vmem:[%s1 + $0xd0] sm:$0xff]
  %v42 = vld [vmem:[%s1 + $0xd8] sm:$0xff]
  %v43 = vld [vmem:[%s1 + $0xe0] sm:$0xff]
  %v44 = vld [vmem:[%s1 + $0xe8] sm:$0xff]
  %v45 = vld [vmem:[%s1 + $0xf0] sm:$0xff]
  %v46 = vld [vmem:[%s1 + $0xf8] sm:$0xff]
  %v47 = vld [vmem:[%s1 + $0x100] sm:$0xff]
  %v48 = vld [vmem:[%s1 + $0x108] sm:$0xff]
  %v49 = vld [vmem:[%s1 + $0x110] sm:$0xff]
  %v50 = vld [vmem:[%s1 + $0x118] sm:$0xff]
  %v51 = vld [vmem:[%s1 + $0x120] sm:$0xff]
  %v52 = vld [vmem:[%s1 + $0x128] sm:$0xff]
  %v53 = vld [vmem:[%s1 + $0x130] sm:$0xff]
  %v54 = vld [vmem:[%s1 + $0x138] sm:$0xff]
  %v55 = vld [vmem:[%s1 + $0x140] sm:$0xff]
  %v56 = vld [vmem:[%s1 + $0x148] sm:$0xff]
  %v57 = vld [vmem:[%s1 + $0x150] sm:$0xff]
  %v58 = vld [vmem:[%s1 + $0x158] sm:$0xff]
  %v59 = vld [vmem:[%s1 + $0x160] sm:$0xff]
  %v60 = vld [vmem:[%s1 + $0x168] sm:$0xff]
  %v61 = vld [vmem:[%s1 + $0x170] sm:$0xff]
  %v62 = vld [vmem:[%s1 + $0x178] sm:$0xff]
  %v63 = vld [vmem:[%s1 + $0x180] sm:$0xff]
  %v64 = vld [vmem:[%s1 + $0x188] sm:$0xff]
  %v65 = vld [vmem:[%s1 + $0x190] sm:$0xff]
  %v66 = vld [vmem:[%s1 + $0x198] sm:$0xff]
  %v67 = vld [vmem:[%s1 + $0x1a0] sm:$0xff]
  %v68 = vld [vmem:[%s1 + $0x1a8] sm:$0xff]
  %v69 = vld [vmem:[%s1 + $0x1b0] sm:$0xff]
  %v70 = vld [vmem:[%s1 + $0x1b8] sm:$0xff]
  %v71 = vld [vmem:[%s1 + $0x1c0] sm:$0xff]
  %v72 = vld [vmem:[%s1 + $0x1c8] sm:$0xff]
  %v73 = vld [vmem:[%s1 + $0x1d0] sm:$0xff]
  %v74 = vld [vmem:[%s1 + $0x1d8] sm:$0xff]
  %v75 = vld [vmem:[%s1 + $0x1e0] sm:$0xff]
  %v76 = vld [vmem:[%s1 + $0x1e8] sm:$0xff]
  %v77 = vld [vmem:[%s1 + $0x1f0] sm:$0xff]
  %v78 = vld [vmem:[%s1 + $0x1f8] sm:$0xff]
  %v79 = vld [vmem:[%s1 + $0x200] sm:$0xff]
  %v80 = vld [vmem:[%s1 + $0x208] sm:$0xff]
  %v81 = vld [vmem:[%s1 + $0x210] sm:$0xff]
  %v82 = vld [vmem:[%s1 + $0x218] sm:$0xff]
  %v83 = vld [vmem:[%s1 + $0x220] sm:$0xff]
  %v84 = vld [vmem:[%s1 + $0x228] sm:$0xff]
  %v85 = vld [vmem:[%s1 + $0x230] sm:$0xff]
  %v86 = vld [vmem:[%s1 + $0x238] sm:$0xff]
  %v87 = vld [vmem:[%s1 + $0x240] sm:$0xff]
  %v88 = vld [vmem:[%s1 + $0x248] sm:$0xff]
  %v89 = vld [vmem:[%s1 + $0x250] sm:$0xff]
  %v90 = vld [vmem:[%s1 + $0x258] sm:$0xff]
  %v91 = vld [vmem:[%s1 + $0x260] sm:$0xff]
  %v92 = vld [vmem:[%s1 + $0x268] sm:$0xff]
  %v93 = vld [vmem:[%s1 + $0x270] sm:$0xff]
  %v94 = vld [vmem:[%s1 + $0x278] sm:$0xff]
  %v95 = vld [vmem:[%s1 + $0x280] sm:$0xff]
  %v96 = vld [vmem:[%s1 + $0x288] sm:$0xff]
  %v97 = vld [vmem:[%s1 + $0x290] sm:$0xff]
  %v98 = vld [vmem:[%s1 + $0x298] sm:$0xff]
  %v99 = vld [vmem:[%s1 + $0x2a0] sm:$0xff]
  %v100 = vld [vmem:[%s1 + $0x2a8] sm:$0xff]
  %v101 = vld [vmem:[%s1 + $0x2b0] sm:$0xff]
  %v102 = vld [vmem:[%s1 + $0x2b8] sm:$0xff]
  %v103 = vld [vmem:[%s1 + $0x2c0] sm:$0xff]
  %v104 = vld [vmem:[%s1 + $0x2c8] sm:$0xff]
  %v105 = vld [vmem:[%s1 + $0x2d0] sm:$0xff]
  %v106 = vld [vmem:[%s1 + $0x2d8] sm:$0xff]
  %v107 = vld [vmem:[%s1 + $0x2e0] sm:$0xff]
  %v108 = vld [vmem:[%s1 + $0x2e8] sm:$0xff]
  %v109 = vld [vmem:[%s1 + $0x2f0] sm:$0xff]
  %v110 = vld [vmem:[%s1 + $0x2f8] sm:$0xff]
  %v111 = vld [vmem:[%s1 + $0x300] sm:$0xff]
  %v112 = vld [vmem:[%s1 + $0x308] sm:$0xff]
  %v113 = vld [vmem:[%s1 + $0x310] sm:$0xff]
  %v114 = vld [vmem:[%s1 + $0x318] sm:$0xff]
  %v115 = vld [vmem:[%s1 + $0x320] sm:$0xff]
  %v116 = vld [vmem:[%s1 + $0x328] sm:$0xff]
  %v117 = vld [vmem:[%s1 + $0x330] sm:$0xff]
  %v118 = vld [vmem:[%s1 + $0x338] sm:$0xff]
  %v119 = vld [vmem:[%s1 + $0x340] sm:$0xff]
  %v120 = vld [vmem:[%s1 + $0x348] sm:$0xff]
  %v121 = vld [vmem:[%s1 + $0x350] sm:$0xff]
  %v122 = vld [vmem:[%s1 + $0x358] sm:$0xff]
  %v123 = vld [vmem:[%s1 + $0x360] sm:$0xff]
  %v124 = vld [vmem:[%s1 + $0x368] sm:$0xff]
  %v125 = vld [vmem:[%s1 + $0x370] sm:$0xff]
  %v126 = vld [vmem:[%s1 + $0x378] sm:$0xff]
  %v127 = vld [vmem:[%s1 + $0x380] sm:$0xff]
  %v128 = vld [vmem:[%s1 + $0x388] sm:$0xff]
  %v129 = vld [vmem:[%s1 + $0x390] sm:$0xff]
  %v130 = vld [vmem:[%s1 + $0x398] sm:$0xff]
  %v131 = vld [vmem:[%s1 + $0x3a0] sm:$0xff]
  %v132 = vld [vmem:[%s1 + $0x3a8] sm:$0xff]
  %v133 = vld [vmem:[%s1 + $0x3b0] sm:$0xff]
  %v134 = vld [vmem:[%s1 + $0x3b8] sm:$0xff]
  %v135 = vld [vmem:[%s1 + $0x3c0] sm:$0xff]
  %v136 = vld [vmem:[%s1 + $0x3c8] sm:$0xff]
  %v137 = vld [vmem:[%s1 + $0x3d0] sm:$0xff]
  %v138 = vld [vmem:[%s1 + $0x3d8] sm:$0xff]
  %v139 = vld [vmem:[%s1 + $0x3e0] sm:$0xff]
  %v140 = vld [vmem:[%s1 + $0x3e8] sm:$0xff]
  %v141 = vld [vmem:[%s1 + $0x3f0] sm:$0xff]
  %v142 = vld [vmem:[%s1 + $0x3f8] sm:$0xff]
  %v143 = vld [vmem:[%s2] sm:$0xff]
  %v145 = vperm.slane %v143, 0
  %v146 = vperm.slane %v143, 1
  %v147 = vperm.slane %v143, 2
  %v148 = vperm.slane %v143, 3
  %v149 = vperm.slane %v143, 4
  %v150 = vperm.slane %v143, 5
  %v151 = vperm.slane %v143, 6
  %v152 = vperm.slane %v143, 7
  %v162 = vunpack.c.l.b16 %v14
  %v163 = vunpack.c.h.b16 %v14
  %v164 = vpack.c.b16 %v162, %v162
  %v165 = vpack.c.b16 %v163, %v163
  %v296 = vunpack.c.l.b16 %v15
  %v297 = vunpack.c.h.b16 %v15
  %v298 = vunpack.c.l.b16 %v16
  %v299 = vunpack.c.h.b16 %v16
  %v300 = vunpack.c.l.b16 %v17
  %v301 = vunpack.c.h.b16 %v17
  %v302 = vunpack.c.l.b16 %v18
  %v303 = vunpack.c.h.b16 %v18
  %v304 = vunpack.c.l.b16 %v19
  %v305 = vunpack.c.h.b16 %v19
  %v306 = vunpack.c.l.b16 %v20
  %v307 = vunpack.c.h.b16 %v20
  %v308 = vunpack.c.l.b16 %v21
  %v309 = vunpack.c.h.b16 %v21
  %v310 = vunpack.c.l.b16 %v22
  %v311 = vunpack.c.h.b16 %v22
  %v312 = vunpack.c.l.b16 %v23
  %v313 = vunpack.c.h.b16 %v23
  %v314 = vunpack.c.l.b16 %v24
  %v315 = vunpack.c.h.b16 %v24
  %v316 = vunpack.c.l.b16 %v25
  %v317 = vunpack.c.h.b16 %v25
  %v318 = vunpack.c.l.b16 %v26
  %v319 = vunpack.c.h.b16 %v26
  %v320 = vunpack.c.l.b16 %v27
  %v321 = vunpack.c.h.b16 %v27
  %v322 = vunpack.c.l.b16 %v28
  %v323 = vunpack.c.h.b16 %v28
  %v324 = vunpack.c.l.b16 %v29
  %v325 = vunpack.c.h.b16 %v29
  %v326 = vunpack.c.l.b16 %v30
  %v327 = vunpack.c.h.b16 %v30
  %v328 = vunpack.c.l.b16 %v31
  %v329 = vunpack.c.h.b16 %v31
  %v330 = vunpack.c.l.b16 %v32
  %v331 = vunpack.c.h.b16 %v32
  %v332 = vunpack.c.l.b16 %v33
  %v333 = vunpack.c.h.b16 %v33
  %v334 = vunpack.c.l.b16 %v34
  %v335 = vunpack.c.h.b16 %v34
  %v336 = vunpack.c.l.b16 %v35
  %v337 = vunpack.c.h.b16 %v35
  %v338 = vunpack.c.l.b16 %v36
  %v339 = vunpack.c.h.b16 %v36
  %v340 = vunpack.c.l.b16 %v37
  %v341 = vunpack.c.h.b16 %v37
  %v342 = vunpack.c.l.b16 %v38
  %v343 = vunpack.c.h.b16 %v38
  %v344 = vunpack.c.l.b16 %v39
  %v345 = vunpack.c.h.b16 %v39
  %v346 = vunpack.c.l.b16 %v40
  %v347 = vunpack.c.h.b16 %v40
  %v348 = vunpack.c.l.b16 %v41
  %v349 = vunpack.c.h.b16 %v41
  %v350 = vunpack.c.l.b16 %v42
  %v351 = vunpack.c.h.b16 %v42
  %v352 = vunpack.c.l.b16 %v43
  %v353 = vunpack.c.h.b16 %v43
  %v354 = vunpack.c.l.b16 %v44
  %v355 = vunpack.c.h.b16 %v44
  %v356 = vunpack.c.l.b16 %v45
  %v357 = vunpack.c.h.b16 %v45
  %v358 = vunpack.c.l.b16 %v46
  %v359 = vunpack.c.h.b16 %v46
  %v360 = vunpack.c.l.b16 %v47
  %v361 = vunpack.c.h.b16 %v47
  %v362 = vunpack.c.l.b16 %v48
  %v363 = vunpack.c.h.b16 %v48
  %v364 = vunpack.c.l.b16 %v49
  %v365 = vunpack.c.h.b16 %v49
  %v366 = vunpack.c.l.b16 %v50
  %v367 = vunpack.c.h.b16 %v50
  %v368 = vunpack.c.l.b16 %v51
  %v369 = vunpack.c.h.b16 %v51
  %v370 = vunpack.c.l.b16 %v52
  %v371 = vunpack.c.h.b16 %v52
  %v372 = vunpack.c.l.b16 %v53
  %v373 = vunpack.c.h.b16 %v53
  %v374 = vunpack.c.l.b16 %v54
  %v375 = vunpack.c.h.b16 %v54
  %v376 = vunpack.c.l.b16 %v55
  %v377 = vunpack.c.h.b16 %v55
  %v378 = vunpack.c.l.b16 %v56
  %v379 = vunpack.c.h.b16 %v56
  %v380 = vunpack.c.l.b16 %v57
  %v381 = vunpack.c.h.b16 %v57
  %v382 = vunpack.c.l.b16 %v58
  %v383 = vunpack.c.h.b16 %v58
  %v384 = vunpack.c.l.b16 %v59
  %v385 = vunpack.c.h.b16 %v59
  %v386 = vunpack.c.l.b16 %v60
  %v387 = vunpack.c.h.b16 %v60
  %v388 = vunpack.c.l.b16 %v61
  %v389 = vunpack.c.h.b16 %v61
  %v390 = vunpack.c.l.b16 %v62
  %v391 = vunpack.c.h.b16 %v62
  %v392 = vunpack.c.l.b16 %v63
  %v393 = vunpack.c.h.b16 %v63
  %v394 = vunpack.c.l.b16 %v64
  %v395 = vunpack.c.h.b16 %v64
  %v396 = vunpack.c.l.b16 %v65
  %v397 = vunpack.c.h.b16 %v65
  %v398 = vunpack.c.l.b16 %v66
  %v399 = vunpack.c.h.b16 %v66
  %v400 = vunpack.c.l.b16 %v67
  %v401 = vunpack.c.h.b16 %v67
  %v402 = vunpack.c.l.b16 %v68
  %v403 = vunpack.c.h.b16 %v68
  %v404 = vunpack.c.l.b16 %v69
  %v405 = vunpack.c.h.b16 %v69
  %v406 = vunpack.c.l.b16 %v70
  %v407 = vunpack.c.h.b16 %v70
  %v408 = vunpack.c.l.b16 %v71
  %v409 = vunpack.c.h.b16 %v71
  %v410 = vunpack.c.l.b16 %v72
  %v411 = vunpack.c.h.b16 %v72
  %v412 = vunpack.c.l.b16 %v73
  %v413 = vunpack.c.h.b16 %v73
  %v414 = vunpack.c.l.b16 %v74
  %v415 = vunpack.c.h.b16 %v74
  %v416 = vunpack.c.l.b16 %v75
  %v417 = vunpack.c.h.b16 %v75
  %v418 = vunpack.c.l.b16 %v76
  %v419 = vunpack.c.h.b16 %v76
  %v420 = vunpack.c.l.b16 %v77
  %v421 = vunpack.c.h.b16 %v77
  %v422 = vunpack.c.l.b16 %v78
  %v423 = vunpack.c.h.b16 %v78
  %v424 = vunpack.c.l.b16 %v79
  %v425 = vunpack.c.h.b16 %v79
  %v426 = vunpack.c.l.b16 %v80
  %v427 = vunpack.c.h.b16 %v80
  %v428 = vunpack.c.l.b16 %v81
  %v429 = vunpack.c.h.b16 %v81
  %v430 = vunpack.c.l.b16 %v82
  %v431 = vunpack.c.h.b16 %v82
  %v432 = vunpack.c.l.b16 %v83
  %v433 = vunpack.c.h.b16 %v83
  %v434 = vunpack.c.l.b16 %v84
  %v435 = vunpack.c.h.b16 %v84
  %v436 = vunpack.c.l.b16 %v85
  %v437 = vunpack.c.h.b16 %v85
  %v438 = vunpack.c.l.b16 %v86
  %v439 = vunpack.c.h.b16 %v86
  %v440 = vunpack.c.l.b16 %v87
  %v441 = vunpack.c.h.b16 %v87
  %v442 = vunpack.c.l.b16 %v88
  %v443 = vunpack.c.h.b16 %v88
  %v444 = vunpack.c.l.b16 %v89
  %v445 = vunpack.c.h.b16 %v89
  %v446 = vunpack.c.l.b16 %v90
  %v447 = vunpack.c.h.b16 %v90
  %v448 = vunpack.c.l.b16 %v91
  %v449 = vunpack.c.h.b16 %v91
  %v450 = vunpack.c.l.b16 %v92
  %v451 = vunpack.c.h.b16 %v92
  %v452 = vunpack.c.l.b16 %v93
  %v453 = vunpack.c.h.b16 %v93
  %v454 = vunpack.c.l.b16 %v94
  %v455 = vunpack.c.h.b16 %v94
  %v456 = vunpack.c.l.b16 %v95
  %v457 = vunpack.c.h.b16 %v95
  %v458 = vunpack.c.l.b16 %v96
  %v459 = vunpack.c.h.b16 %v96
  %v460 = vunpack.c.l.b16 %v97
  %v461 = vunpack.c.h.b16 %v97
  %v462 = vunpack.c.l.b16 %v98
  %v463 = vunpack.c.h.b16 %v98
  %v464 = vunpack.c.l.b16 %v99
  %v465 = vunpack.c.h.b16 %v99
  %v466 = vunpack.c.l.b16 %v100
  %v467 = vunpack.c.h.b16 %v100
  %v468 = vunpack.c.l.b16 %v101
  %v469 = vunpack.c.h.b16 %v101
  %v470 = vunpack.c.l.b16 %v102
  %v471 = vunpack.c.h.b16 %v102
  %v472 = vunpack.c.l.b16 %v103
  %v473 = vunpack.c.h.b16 %v103
  %v474 = vunpack.c.l.b16 %v104
  %v475 = vunpack.c.h.b16 %v104
  %v476 = vunpack.c.l.b16 %v105
  %v477 = vunpack.c.h.b16 %v105
  %v478 = vunpack.c.l.b16 %v106
  %v479 = vunpack.c.h.b16 %v106
  %v480 = vunpack.c.l.b16 %v107
  %v481 = vunpack.c.h.b16 %v107
  %v482 = vunpack.c.l.b16 %v108
  %v483 = vunpack.c.h.b16 %v108
  %v484 = vunpack.c.l.b16 %v109
  %v485 = vunpack.c.h.b16 %v109
  %v486 = vunpack.c.l.b16 %v110
  %v487 = vunpack.c.h.b16 %v110
  %v488 = vunpack.c.l.b16 %v111
  %v489 = vunpack.c.h.b16 %v111
  %v490 = vunpack.c.l.b16 %v112
  %v491 = vunpack.c.h.b16 %v112
  %v492 = vunpack.c.l.b16 %v113
  %v493 = vunpack.c.h.b16 %v113
  %v494 = vunpack.c.l.b16 %v114
  %v495 = vunpack.c.h.b16 %v114
  %v496 = vunpack.c.l.b16 %v115
  %v497 = vunpack.c.h.b16 %v115
  %v498 = vunpack.c.l.b16 %v116
  %v499 = vunpack.c.h.b16 %v116
  %v500 = vunpack.c.l.b16 %v117
  %v501 = vunpack.c.h.b16 %v117
  %v502 = vunpack.c.l.b16 %v118
  %v503 = vunpack.c.h.b16 %v118
  %v504 = vunpack.c.l.b16 %v119
  %v505 = vunpack.c.h.b16 %v119
  %v506 = vunpack.c.l.b16 %v120
  %v507 = vunpack.c.h.b16 %v120
  %v508 = vunpack.c.l.b16 %v121
  %v509 = vunpack.c.h.b16 %v121
  %v510 = vunpack.c.l.b16 %v122
  %v511 = vunpack.c.h.b16 %v122
  %v512 = vunpack.c.l.b16 %v123
  %v513 = vunpack.c.h.b16 %v123
  %v514 = vunpack.c.l.b16 %v124
  %v515 = vunpack.c.h.b16 %v124
  %v516 = vunpack.c.l.b16 %v125
  %v517 = vunpack.c.h.b16 %v125
  %v518 = vunpack.c.l.b16 %v126
  %v519 = vunpack.c.h.b16 %v126
  %v520 = vunpack.c.l.b16 %v127
  %v521 = vunpack.c.h.b16 %v127
  %v522 = vunpack.c.l.b16 %v128
  %v523 = vunpack.c.h.b16 %v128
  %v524 = vunpack.c.l.b16 %v129
  %v525 = vunpack.c.h.b16 %v129
  %v526 = vunpack.c.l.b16 %v130
  %v527 = vunpack.c.h.b16 %v130
  %v528 = vunpack.c.l.b16 %v131
  %v529 = vunpack.c.h.b16 %v131
  %v530 = vunpack.c.l.b16 %v132
  %v531 = vunpack.c.h.b16 %v132
  %v532 = vunpack.c.l.b16 %v133
  %v533 = vunpack.c.h.b16 %v133
  %v534 = vunpack.c.l.b16 %v134
  %v535 = vunpack.c.h.b16 %v134
  %v536 = vunpack.c.l.b16 %v135
  %v537 = vunpack.c.h.b16 %v135
  %v538 = vunpack.c.l.b16 %v136
  %v539 = vunpack.c.h.b16 %v136
  %v540 = vunpack.c.l.b16 %v137
  %v541 = vunpack.c.h.b16 %v137
  %v542 = vunpack.c.l.b16 %v138
  %v543 = vunpack.c.h.b16 %v138
  %v544 = vunpack.c.l.b16 %v139
  %v545 = vunpack.c.h.b16 %v139
  %v546 = vunpack.c.l.b16 %v140
  %v547 = vunpack.c.h.b16 %v140
  %v548 = vunpack.c.l.b16 %v141
  %v549 = vunpack.c.h.b16 %v141
  %v550 = vunpack.c.l.b16 %v142
  %v551 = vunpack.c.h.b16 %v142
  %v552 = vpack.c.b16 %v304, %v296
  %v553 = vpack.c.b16 %v305, %v297
  %v554 = vpack.c.b16 %v306, %v298
  %v555 = vpack.c.b16 %v307, %v299
  %v556 = vpack.c.b16 %v308, %v300
  %v557 = vpack.c.b16 %v309, %v301
  %v558 = vpack.c.b16 %v310, %v302
  %v559 = vpack.c.b16 %v311, %v303
  %v560 = vpack.c.b16 %v320, %v312
  %v561 = vpack.c.b16 %v321, %v313
  %v562 = vpack.c.b16 %v322, %v314
  %v563 = vpack.c.b16 %v323, %v315
  %v564 = vpack.c.b16 %v324, %v316
  %v565 = vpack.c.b16 %v325, %v317
  %v566 = vpack.c.b16 %v326, %v318
  %v567 = vpack.c.b16 %v327, %v319
  %v568 = vpack.c.b16 %v336, %v328
  %v569 = vpack.c.b16 %v337, %v329
  %v570 = vpack.c.b16 %v338, %v330
  %v571 = vpack.c.b16 %v339, %v331
  %v572 = vpack.c.b16 %v340, %v332
  %v573 = vpack.c.b16 %v341, %v333
  %v574 = vpack.c.b16 %v342, %v334
  %v575 = vpack.c.b16 %v343, %v335
  %v576 = vpack.c.b16 %v352, %v344
  %v577 = vpack.c.b16 %v353, %v345
  %v578 = vpack.c.b16 %v354, %v346
  %v579 = vpack.c.b16 %v355, %v347
  %v580 = vpack.c.b16 %v356, %v348
  %v581 = vpack.c.b16 %v357, %v349
  %v582 = vpack.c.b16 %v358, %v350
  %v583 = vpack.c.b16 %v359, %v351
  %v584 = vpack.c.b16 %v368, %v360
  %v585 = vpack.c.b16 %v369, %v361
  %v586 = vpack.c.b16 %v370, %v362
  %v587 = vpack.c.b16 %v371, %v363
  %v588 = vpack.c.b16 %v372, %v364
  %v589 = vpack.c.b16 %v373, %v365
  %v590 = vpack.c.b16 %v374, %v366
  %v591 = vpack.c.b16 %v375, %v367
  %v592 = vpack.c.b16 %v384, %v376
  %v593 = vpack.c.b16 %v385, %v377
  %v594 = vpack.c.b16 %v386, %v378
  %v595 = vpack.c.b16 %v387, %v379
  %v596 = vpack.c.b16 %v388, %v380
  %v597 = vpack.c.b16 %v389, %v381
  %v598 = vpack.c.b16 %v390, %v382
  %v599 = vpack.c.b16 %v391, %v383
  %v600 = vpack.c.b16 %v400, %v392
  %v601 = vpack.c.b16 %v401, %v393
  %v602 = vpack.c.b16 %v402, %v394
  %v603 = vpack.c.b16 %v403, %v395
  %v604 = vpack.c.b16 %v404, %v396
  %v605 = vpack.c.b16 %v405, %v397
  %v606 = vpack.c.b16 %v406, %v398
  %v607 = vpack.c.b16 %v407, %v399
  %v608 = vpack.c.b16 %v416, %v408
  %v609 = vpack.c.b16 %v417, %v409
  %v610 = vpack.c.b16 %v418, %v410
  %v611 = vpack.c.b16 %v419, %v411
  %v612 = vpack.c.b16 %v420, %v412
  %v613 = vpack.c.b16 %v421, %v413
  %v614 = vpack.c.b16 %v422, %v414
  %v615 = vpack.c.b16 %v423, %v415
  %v616 = vpack.c.b16 %v432, %v424
  %v617 = vpack.c.b16 %v433, %v425
  %v618 = vpack.c.b16 %v434, %v426
  %v619 = vpack.c.b16 %v435, %v427
  %v620 = vpack.c.b16 %v436, %v428
  %v621 = vpack.c.b16 %v437, %v429
  %v622 = vpack.c.b16 %v438, %v430
  %v623 = vpack.c.b16 %v439, %v431
  %v624 = vpack.c.b16 %v448, %v440
  %v625 = vpack.c.b16 %v449, %v441
  %v626 = vpack.c.b16 %v450, %v442
  %v627 = vpack.c.b16 %v451, %v443
  %v628 = vpack.c.b16 %v452, %v444
  %v629 = vpack.c.b16 %v453, %v445
  %v630 = vpack.c.b16 %v454, %v446
  %v631 = vpack.c.b16 %v455, %v447
  %v632 = vpack.c.b16 %v464, %v456
  %v633 = vpack.c.b16 %v465, %v457
  %v634 = vpack.c.b16 %v466, %v458
  %v635 = vpack.c.b16 %v467, %v459
  %v636 = vpack.c.b16 %v468, %v460
  %v637 = vpack.c.b16 %v469, %v461
  %v638 = vpack.c.b16 %v470, %v462
  %v639 = vpack.c.b16 %v471, %v463
  %v640 = vpack.c.b16 %v480, %v472
  %v641 = vpack.c.b16 %v481, %v473
  %v642 = vpack.c.b16 %v482, %v474
  %v643 = vpack.c.b16 %v483, %v475
  %v644 = vpack.c.b16 %v484, %v476
  %v645 = vpack.c.b16 %v485, %v477
  %v646 = vpack.c.b16 %v486, %v478
  %v647 = vpack.c.b16 %v487, %v479
  %v648 = vpack.c.b16 %v496, %v488
  %v649 = vpack.c.b16 %v497, %v489
  %v650 = vpack.c.b16 %v498, %v490
  %v651 = vpack.c.b16 %v499, %v491
  %v652 = vpack.c.b16 %v500, %v492
  %v653 = vpack.c.b16 %v501, %v493
  %v654 = vpack.c.b16 %v502, %v494
  %v655 = vpack.c.b16 %v503, %v495
  %v656 = vpack.c.b16 %v512, %v504
  %v657 = vpack.c.b16 %v513, %v505
  %v658 = vpack.c.b16 %v514, %v506
  %v659 = vpack.c.b16 %v515, %v507
  %v660 = vpack.c.b16 %v516, %v508
  %v661 = vpack.c.b16 %v517, %v509
  %v662 = vpack.c.b16 %v518, %v510
  %v663 = vpack.c.b16 %v519, %v511
  %v664 = vpack.c.b16 %v528, %v520
  %v665 = vpack.c.b16 %v529, %v521
  %v666 = vpack.c.b16 %v530, %v522
  %v667 = vpack.c.b16 %v531, %v523
  %v668 = vpack.c.b16 %v532, %v524
  %v669 = vpack.c.b16 %v533, %v525
  %v670 = vpack.c.b16 %v534, %v526
  %v671 = vpack.c.b16 %v535, %v527
  %v672 = vpack.c.b16 %v544, %v536
  %v673 = vpack.c.b16 %v545, %v537
  %v674 = vpack.c.b16 %v546, %v538
  %v675 = vpack.c.b16 %v547, %v539
  %v676 = vpack.c.b16 %v548, %v540
  %v677 = vpack.c.b16 %v549, %v541
  %v678 = vpack.c.b16 %v550, %v542
  %v679 = vpack.c.b16 %v551, %v543
  %808 = vmatpush.bf16.msra.mxu0 %v608
  %809 = vmatpush.bf16.msra.mxu0 %v600
  %810 = vmatpush.bf16.msra.mxu0 %v592
  %811 = vmatpush.bf16.msra.mxu0 %v584
  %812 = vmatpush.bf16.msra.mxu0 %v576
  %813 = vmatpush.bf16.msra.mxu0 %v568
  %814 = vmatpush.bf16.msra.mxu0 %v560
  %815 = vmatpush.bf16.msra.mxu0 %v552
  %816 = vmatmul.bf16.gmra.mxu0 %v164
  %v817 = vpop.f32.mrf.mxu0
  %v818 = vadd.f32 %v145, %v817
  %v819 = vpop.f32.mrf.mxu0
  %820 = vdwg.mxu0
  %821 = vmatpush.bf16.msra.mxu0 %v672
  %822 = vmatpush.bf16.msra.mxu0 %v664
  %823 = vmatpush.bf16.msra.mxu0 %v656
  %824 = vmatpush.bf16.msra.mxu0 %v648
  %825 = vmatpush.bf16.msra.mxu0 %v640
  %826 = vmatpush.bf16.msra.mxu0 %v632
  %827 = vmatpush.bf16.msra.mxu0 %v624
  %828 = vmatpush.bf16.msra.mxu0 %v616
  %829 = vmatmul.bf16.gmra.mxu0 %v165
  %v830 = vpop.f32.mrf.mxu0
  %v831 = vadd.f32 %v818, %v830
  %v832 = vpop.f32.mrf.mxu0
  %833 = vdwg.mxu0
  %834 = vmatpush.bf16.msra.mxu0 %v609
  %835 = vmatpush.bf16.msra.mxu0 %v601
  %836 = vmatpush.bf16.msra.mxu0 %v593
  %837 = vmatpush.bf16.msra.mxu0 %v585
  %838 = vmatpush.bf16.msra.mxu0 %v577
  %839 = vmatpush.bf16.msra.mxu0 %v569
  %840 = vmatpush.bf16.msra.mxu0 %v561
  %841 = vmatpush.bf16.msra.mxu0 %v553
  %842 = vmatmul.bf16.gmra.mxu0 %v164
  %v843 = vpop.f32.mrf.mxu0
  %v844 = vadd.f32 %v146, %v843
  %v845 = vpop.f32.mrf.mxu0
  %846 = vdwg.mxu0
  %847 = vmatpush.bf16.msra.mxu0 %v673
  %848 = vmatpush.bf16.msra.mxu0 %v665
  %849 = vmatpush.bf16.msra.mxu0 %v657
  %850 = vmatpush.bf16.msra.mxu0 %v649
  %851 = vmatpush.bf16.msra.mxu0 %v641
  %852 = vmatpush.bf16.msra.mxu0 %v633
  %853 = vmatpush.bf16.msra.mxu0 %v625
  %854 = vmatpush.bf16.msra.mxu0 %v617
  %855 = vmatmul.bf16.gmra.mxu0 %v165
  %v856 = vpop.f32.mrf.mxu0
  %v857 = vadd.f32 %v844, %v856
  %v858 = vpop.f32.mrf.mxu0
  %859 = vdwg.mxu0
  %860 = vmatpush.bf16.msra.mxu0 %v610
  %861 = vmatpush.bf16.msra.mxu0 %v602
  %862 = vmatpush.bf16.msra.mxu0 %v594
  %863 = vmatpush.bf16.msra.mxu0 %v586
  %864 = vmatpush.bf16.msra.mxu0 %v578
  %865 = vmatpush.bf16.msra.mxu0 %v570
  %866 = vmatpush.bf16.msra.mxu0 %v562
  %867 = vmatpush.bf16.msra.mxu0 %v554
  %868 = vmatmul.bf16.gmra.mxu0 %v164
  %v869 = vpop.f32.mrf.mxu0
  %v870 = vadd.f32 %v147, %v869
  %v871 = vpop.f32.mrf.mxu0
  %872 = vdwg.mxu0
  %873 = vmatpush.bf16.msra.mxu0 %v674
  %874 = vmatpush.bf16.msra.mxu0 %v666
  %875 = vmatpush.bf16.msra.mxu0 %v658
  %876 = vmatpush.bf16.msra.mxu0 %v650
  %877 = vmatpush.bf16.msra.mxu0 %v642
  %878 = vmatpush.bf16.msra.mxu0 %v634
  %879 = vmatpush.bf16.msra.mxu0 %v626
  %880 = vmatpush.bf16.msra.mxu0 %v618
  %881 = vmatmul.bf16.gmra.mxu0 %v165
  %v882 = vpop.f32.mrf.mxu0
  %v883 = vadd.f32 %v870, %v882
  %v884 = vpop.f32.mrf.mxu0
  %885 = vdwg.mxu0
  %886 = vmatpush.bf16.msra.mxu0 %v611
  %887 = vmatpush.bf16.msra.mxu0 %v603
  %888 = vmatpush.bf16.msra.mxu0 %v595
  %889 = vmatpush.bf16.msra.mxu0 %v587
  %890 = vmatpush.bf16.msra.mxu0 %v579
  %891 = vmatpush.bf16.msra.mxu0 %v571
  %892 = vmatpush.bf16.msra.mxu0 %v563
  %893 = vmatpush.bf16.msra.mxu0 %v555
  %894 = vmatmul.bf16.gmra.mxu0 %v164
  %v895 = vpop.f32.mrf.mxu0
  %v896 = vadd.f32 %v148, %v895
  %v897 = vpop.f32.mrf.mxu0
  %898 = vdwg.mxu0
  %899 = vmatpush.bf16.msra.mxu0 %v675
  %900 = vmatpush.bf16.msra.mxu0 %v667
  %901 = vmatpush.bf16.msra.mxu0 %v659
  %902 = vmatpush.bf16.msra.mxu0 %v651
  %903 = vmatpush.bf16.msra.mxu0 %v643
  %904 = vmatpush.bf16.msra.mxu0 %v635
  %905 = vmatpush.bf16.msra.mxu0 %v627
  %906 = vmatpush.bf16.msra.mxu0 %v619
  %907 = vmatmul.bf16.gmra.mxu0 %v165
  %v908 = vpop.f32.mrf.mxu0
  %v909 = vadd.f32 %v896, %v908
  %v910 = vpop.f32.mrf.mxu0
  %911 = vdwg.mxu0
  %912 = vmatpush.bf16.msra.mxu0 %v612
  %913 = vmatpush.bf16.msra.mxu0 %v604
  %914 = vmatpush.bf16.msra.mxu0 %v596
  %915 = vmatpush.bf16.msra.mxu0 %v588
  %916 = vmatpush.bf16.msra.mxu0 %v580
  %917 = vmatpush.bf16.msra.mxu0 %v572
  %918 = vmatpush.bf16.msra.mxu0 %v564
  %919 = vmatpush.bf16.msra.mxu0 %v556
  %920 = vmatmul.bf16.gmra.mxu0 %v164
  %v921 = vpop.f32.mrf.mxu0
  %v922 = vadd.f32 %v149, %v921
  %v923 = vpop.f32.mrf.mxu0
  %924 = vdwg.mxu0
  %925 = vmatpush.bf16.msra.mxu0 %v676
  %926 = vmatpush.bf16.msra.mxu0 %v668
  %927 = vmatpush.bf16.msra.mxu0 %v660
  %928 = vmatpush.bf16.msra.mxu0 %v652
  %929 = vmatpush.bf16.msra.mxu0 %v644
  %930 = vmatpush.bf16.msra.mxu0 %v636
  %931 = vmatpush.bf16.msra.mxu0 %v628
  %932 = vmatpush.bf16.msra.mxu0 %v620
  %933 = vmatmul.bf16.gmra.mxu0 %v165
  %v934 = vpop.f32.mrf.mxu0
  %v935 = vadd.f32 %v922, %v934
  %v936 = vpop.f32.mrf.mxu0
  %937 = vdwg.mxu0
  %938 = vmatpush.bf16.msra.mxu0 %v613
  %939 = vmatpush.bf16.msra.mxu0 %v605
  %940 = vmatpush.bf16.msra.mxu0 %v597
  %941 = vmatpush.bf16.msra.mxu0 %v589
  %942 = vmatpush.bf16.msra.mxu0 %v581
  %943 = vmatpush.bf16.msra.mxu0 %v573
  %944 = vmatpush.bf16.msra.mxu0 %v565
  %945 = vmatpush.bf16.msra.mxu0 %v557
  %946 = vmatmul.bf16.gmra.mxu0 %v164
  %v947 = vpop.f32.mrf.mxu0
  %v948 = vadd.f32 %v150, %v947
  %v949 = vpop.f32.mrf.mxu0
  %950 = vdwg.mxu0
  %951 = vmatpush.bf16.msra.mxu0 %v677
  %952 = vmatpush.bf16.msra.mxu0 %v669
  %953 = vmatpush.bf16.msra.mxu0 %v661
  %954 = vmatpush.bf16.msra.mxu0 %v653
  %955 = vmatpush.bf16.msra.mxu0 %v645
  %956 = vmatpush.bf16.msra.mxu0 %v637
  %957 = vmatpush.bf16.msra.mxu0 %v629
  %958 = vmatpush.bf16.msra.mxu0 %v621
  %959 = vmatmul.bf16.gmra.mxu0 %v165
  %v960 = vpop.f32.mrf.mxu0
  %v961 = vadd.f32 %v948, %v960
  %v962 = vpop.f32.mrf.mxu0
  %963 = vdwg.mxu0
  %964 = vmatpush.bf16.msra.mxu0 %v614
  %965 = vmatpush.bf16.msra.mxu0 %v606
  %966 = vmatpush.bf16.msra.mxu0 %v598
  %967 = vmatpush.bf16.msra.mxu0 %v590
  %968 = vmatpush.bf16.msra.mxu0 %v582
  %969 = vmatpush.bf16.msra.mxu0 %v574
  %970 = vmatpush.bf16.msra.mxu0 %v566
  %971 = vmatpush.bf16.msra.mxu0 %v558
  %972 = vmatmul.bf16.gmra.mxu0 %v164
  %v973 = vpop.f32.mrf.mxu0
  %v974 = vadd.f32 %v151, %v973
  %v975 = vpop.f32.mrf.mxu0
  %976 = vdwg.mxu0
  %977 = vmatpush.bf16.msra.mxu0 %v678
  %978 = vmatpush.bf16.msra.mxu0 %v670
  %979 = vmatpush.bf16.msra.mxu0 %v662
  %980 = vmatpush.bf16.msra.mxu0 %v654
  %981 = vmatpush.bf16.msra.mxu0 %v646
  %982 = vmatpush.bf16.msra.mxu0 %v638
  %983 = vmatpush.bf16.msra.mxu0 %v630
  %984 = vmatpush.bf16.msra.mxu0 %v622
  %985 = vmatmul.bf16.gmra.mxu0 %v165
  %v986 = vpop.f32.mrf.mxu0
  %v987 = vadd.f32 %v974, %v986
  %v988 = vpop.f32.mrf.mxu0
  %989 = vdwg.mxu0
  %990 = vmatpush.bf16.msra.mxu0 %v615
  %991 = vmatpush.bf16.msra.mxu0 %v607
  %992 = vmatpush.bf16.msra.mxu0 %v599
  %993 = vmatpush.bf16.msra.mxu0 %v591
  %994 = vmatpush.bf16.msra.mxu0 %v583
  %995 = vmatpush.bf16.msra.mxu0 %v575
  %996 = vmatpush.bf16.msra.mxu0 %v567
  %997 = vmatpush.bf16.msra.mxu0 %v559
  %998 = vmatmul.bf16.gmra.mxu0 %v164
  %v999 = vpop.f32.mrf.mxu0
  %v1000 = vadd.f32 %v152, %v999
  %v1001 = vpop.f32.mrf.mxu0
  %1002 = vdwg.mxu0
  %1003 = vmatpush.bf16.msra.mxu0 %v679
  %1004 = vmatpush.bf16.msra.mxu0 %v671
  %1005 = vmatpush.bf16.msra.mxu0 %v663
  %1006 = vmatpush.bf16.msra.mxu0 %v655
  %1007 = vmatpush.bf16.msra.mxu0 %v647
  %1008 = vmatpush.bf16.msra.mxu0 %v639
  %1009 = vmatpush.bf16.msra.mxu0 %v631
  %1010 = vmatpush.bf16.msra.mxu0 %v623
  %1011 = vmatmul.bf16.gmra.mxu0 %v165
  %v1012 = vpop.f32.mrf.mxu0
  %v1013 = vadd.f32 %v1000, %v1012
  %v1014 = vpop.f32.mrf.mxu0
  %1015 = vdwg.mxu0
  %v1016 = vmax.f32 %v831, 0.0
  %v1017 = vmax.f32 %v857, 0.0
  %v1018 = vmax.f32 %v883, 0.0
  %v1019 = vmax.f32 %v909, 0.0
  %v1020 = vmax.f32 %v935, 0.0
  %v1021 = vmax.f32 %v961, 0.0
  %v1022 = vmax.f32 %v987, 0.0
  %v1023 = vmax.f32 %v1013, 0.0
  %v1024 = vpack.c.bf16 %v1017, %v1016
  %v1025 = vpack.c.bf16 %v1019, %v1018
  %v1026 = vpack.c.bf16 %v1021, %v1020
  %v1027 = vpack.c.bf16 %v1023, %v1022
  %1028 = vst [vmem:[%s3] sm:$0xff] %v1024
  %1029 = vst [vmem:[%s3 + $0x8] sm:$0xff] %v1025
  %1030 = vst [vmem:[%s3 + $0x10] sm:$0xff] %v1026
  %1031 = vst [vmem:[%s3 + $0x18] sm:$0xff] %v1027
  // Predicated region
  $region14: #{predictive_autoencoder.11} parent=0 // pred_check
    _
  $region15: #{predictive_autoencoder.11} parent=0 // pred_check_branch
    %1033 = sbr.rel (0) target = $region17
  $region16: #{predictive_autoencoder.11} parent=0 // pred_region
    _
  $region17: #{predictive_autoencoder.11} parent=0 // pred_fallthru
    _
  // Predicated region
  $region18: #{predictive_autoencoder.11} parent=0 // pred_check
    _
  $region19: #{predictive_autoencoder.11} parent=0 // pred_check_branch
    %1035 = sbr.rel (0) target = $region21
  $region20: #{predictive_autoencoder.11} parent=0 // pred_region
    _
  $region21: #{predictive_autoencoder.11} parent=0 // pred_fallthru
    _

// kernel: predictive_autoencoder.12
$region0: #{predictive_autoencoder.12}
  #allocation0 [shape = 'u32[]', space=smem, size = 0x4, offset = 0x4, fixed_abs, tag = 'smem constant byte address 0x4 - core index']
  #allocation1 [shape = 'u32[72,128]{1,0:T(1,128)}', space=vmem, size = 0x9000, scoped, tag = 'internal scratch']
  %s0 = inlined_call_operand.vmem [shape: bf16[64,64], index: 0, kind: input, shape index: {}]
  %s1 = inlined_call_operand.vmem [shape: bf16[64,256], index: 1, kind: input, shape index: {}]
  %s2 = inlined_call_operand.vmem [shape: f32[64,1], index: 2, kind: input, shape index: {}]
  %s3 = inlined_call_operand.vmem [shape: bf16[64,256], index: 3, kind: output, shape index: {}]
  %s4 = sld [smem:[#allocation0]]
  $region22: #{predictive_autoencoder.12} parent=0
    _
  %s6 = ssub.s32 1, %s4
  %s7 = scalar_select 0, %s6, %s4
  // Predicated region
  $region2: #{predictive_autoencoder.12} parent=0 // pred_check
    _
  $region3: #{predictive_autoencoder.12} parent=0 // pred_check_branch
    %9 = sbr.rel (0) target = $region5
  $region4: #{predictive_autoencoder.12} parent=0 // pred_region
    _
  $region5: #{predictive_autoencoder.12} parent=0 // pred_fallthru
    _
  // Predicated region
  $region6: #{predictive_autoencoder.12} parent=0 // pred_check
    _
  $region7: #{predictive_autoencoder.12} parent=0 // pred_check_branch
    %11 = sbr.rel (0) target = $region9
  $region8: #{predictive_autoencoder.12} parent=0 // pred_region
    _
  $region9: #{predictive_autoencoder.12} parent=0 // pred_fallthru
    _
  // Predicated region
  $region10: #{predictive_autoencoder.12} parent=0 // pred_check
    _
  $region11: #{predictive_autoencoder.12} parent=0 // pred_check_branch
    %13 = sbr.rel (0) target = $region13
  $region12: #{predictive_autoencoder.12} parent=0 // pred_region
    _
  $region13: #{predictive_autoencoder.12} parent=0 // pred_fallthru
    _
  %v15 = vld [vmem:[%s0] sm:$0xf]
  %v16 = vld [vmem:[%s0 + $0x4] sm:$0xf]
  %v17 = vld [vmem:[%s0 + $0x8] sm:$0xf]
  %v18 = vld [vmem:[%s0 + $0xc] sm:$0xf]
  %v19 = vld [vmem:[%s0 + $0x10] sm:$0xf]
  %v20 = vld [vmem:[%s0 + $0x14] sm:$0xf]
  %v21 = vld [vmem:[%s0 + $0x18] sm:$0xf]
  %v22 = vld [vmem:[%s0 + $0x1c] sm:$0xf]
  %v23 = vld [vmem:[%s1] sm:$0xff]
  %v24 = vld [vmem:[%s1 + $0x8] sm:$0xff]
  %v25 = vld [vmem:[%s1 + $0x10] sm:$0xff]
  %v26 = vld [vmem:[%s1 + $0x18] sm:$0xff]
  %v27 = vld [vmem:[%s1 + $0x20] sm:$0xff]
  %v28 = vld [vmem:[%s1 + $0x28] sm:$0xff]
  %v29 = vld [vmem:[%s1 + $0x30] sm:$0xff]
  %v30 = vld [vmem:[%s1 + $0x38] sm:$0xff]
  %v31 = vld [vmem:[%s2] sm:$0xff]
  %v32 = vld [vmem:[%s2 + $0x8] sm:$0xff]
  %v33 = vld [vmem:[%s2 + $0x10] sm:$0xff]
  %v34 = vld [vmem:[%s2 + $0x18] sm:$0xff]
  %v35 = vld [vmem:[%s2 + $0x20] sm:$0xff]
  %v36 = vld [vmem:[%s2 + $0x28] sm:$0xff]
  %v37 = vld [vmem:[%s2 + $0x30] sm:$0xff]
  %v38 = vld [vmem:[%s2 + $0x38] sm:$0xff]
  %40 = vset.pattern.permute.xlu0 0
  %41 = vperm.xlu0 %40, %v31
  %v42 = vpop.permute.xlu0 %41
  %45 = vset.pattern.permute.xlu0 0
  %46 = vperm.xlu0 %45, %v32
  %v47 = vpop.permute.xlu0 %46
  %50 = vset.pattern.permute.xlu0 0
  %51 = vperm.xlu0 %50, %v33
  %v52 = vpop.permute.xlu0 %51
  %55 = vset.pattern.permute.xlu0 0
  %56 = vperm.xlu0 %55, %v34
  %v57 = vpop.permute.xlu0 %56
  %60 = vset.pattern.permute.xlu0 0
  %61 = vperm.xlu0 %60, %v35
  %v62 = vpop.permute.xlu0 %61
  %65 = vset.pattern.permute.xlu0 0
  %66 = vperm.xlu0 %65, %v36
  %v67 = vpop.permute.xlu0 %66
  %70 = vset.pattern.permute.xlu0 0
  %71 = vperm.xlu0 %70, %v37
  %v72 = vpop.permute.xlu0 %71
  %75 = vset.pattern.permute.xlu0 0
  %76 = vperm.xlu0 %75, %v38
  %v77 = vpop.permute.xlu0 %76
  %v87 = vunpack.c.l.b16 %v15
  %v88 = vunpack.c.l.b16 %v16
  %v89 = vunpack.c.l.b16 %v17
  %v90 = vunpack.c.l.b16 %v18
  %v91 = vunpack.c.l.b16 %v19
  %v92 = vunpack.c.l.b16 %v20
  %v93 = vunpack.c.l.b16 %v21
  %v94 = vunpack.c.l.b16 %v22
  %v95 = vpack.c.b16 %v88, %v87
  %v96 = vpack.c.b16 %v90, %v89
  %v97 = vpack.c.b16 %v92, %v91
  %v98 = vpack.c.b16 %v94, %v93
  %v107 = vunpack.c.l.b16 %v23
  %v108 = vunpack.c.h.b16 %v23
  %v109 = vunpack.c.l.b16 %v24
  %v110 = vunpack.c.h.b16 %v24
  %v111 = vunpack.c.l.b16 %v25
  %v112 = vunpack.c.h.b16 %v25
  %v113 = vunpack.c.l.b16 %v26
  %v114 = vunpack.c.h.b16 %v26
  %v115 = vunpack.c.l.b16 %v27
  %v116 = vunpack.c.h.b16 %v27
  %v117 = vunpack.c.l.b16 %v28
  %v118 = vunpack.c.h.b16 %v28
  %v119 = vunpack.c.l.b16 %v29
  %v120 = vunpack.c.h.b16 %v29
  %v121 = vunpack.c.l.b16 %v30
  %v122 = vunpack.c.h.b16 %v30
  %v123 = vpack.c.b16 %v109, %v107
  %v124 = vpack.c.b16 %v110, %v108
  %v125 = vpack.c.b16 %v113, %v111
  %v126 = vpack.c.b16 %v114, %v112
  %v127 = vpack.c.b16 %v117, %v115
  %v128 = vpack.c.b16 %v118, %v116
  %v129 = vpack.c.b16 %v121, %v119
  %v130 = vpack.c.b16 %v122, %v120
  %vm139 = vcmask 523264
  %v141 = vsel %vm139, %v95, 0
  %v144 = vsel %vm139, %v96, 0
  %v147 = vsel %vm139, %v97, 0
  %v150 = vsel %vm139, %v98, 0
  %152 = vmatpush.bf16.msra.mxu0 0
  %153 = vmatpush.bf16.msra.mxu0 0
  %154 = vmatpush.bf16.msra.mxu0 0
  %155 = vmatpush.bf16.msra.mxu0 0
  %156 = vmatpush.bf16.msra.mxu0 %v129
  %157 = vmatpush.bf16.msra.mxu0 %v127
  %158 = vmatpush.bf16.msra.mxu0 %v125
  %159 = vmatpush.bf16.msra.mxu0 %v123
  %160 = vmatmul.bf16.gmra.mxu0 %v141
  %v161 = vpop.f32.mrf.mxu0
  %v162 = vadd.f32 %v42, %v161
  %v163 = vpop.f32.mrf.mxu0
  %v164 = vadd.f32 %v47, %v163
  %165 = vmatmul.bf16.gmra.mxu0 %v144
  %v166 = vpop.f32.mrf.mxu0
  %v167 = vadd.f32 %v52, %v166
  %v168 = vpop.f32.mrf.mxu0
  %v169 = vadd.f32 %v57, %v168
  %170 = vmatmul.bf16.gmra.mxu0 %v147
  %v171 = vpop.f32.mrf.mxu0
  %v172 = vadd.f32 %v62, %v171
  %v173 = vpop.f32.mrf.mxu0
  %v174 = vadd.f32 %v67, %v173
  %175 = vmatmul.bf16.gmra.mxu0 %v150
  %v176 = vpop.f32.mrf.mxu0
  %v177 = vadd.f32 %v72, %v176
  %v178 = vpop.f32.mrf.mxu0
  %v179 = vadd.f32 %v77, %v178
  %180 = vdwg.mxu0
  %181 = vmatpush.bf16.msra.mxu0 0
  %182 = vmatpush.bf16.msra.mxu0 0
  %183 = vmatpush.bf16.msra.mxu0 0
  %184 = vmatpush.bf16.msra.mxu0 0
  %185 = vmatpush.bf16.msra.mxu0 %v130
  %186 = vmatpush.bf16.msra.mxu0 %v128
  %187 = vmatpush.bf16.msra.mxu0 %v126
  %188 = vmatpush.bf16.msra.mxu0 %v124
  %189 = vmatmul.bf16.gmra.mxu0 %v141
  %v190 = vpop.f32.mrf.mxu0
  %v191 = vadd.f32 %v42, %v190
  %v192 = vpop.f32.mrf.mxu0
  %v193 = vadd.f32 %v47, %v192
  %194 = vmatmul.bf16.gmra.mxu0 %v144
  %v195 = vpop.f32.mrf.mxu0
  %v196 = vadd.f32 %v52, %v195
  %v197 = vpop.f32.mrf.mxu0
  %v198 = vadd.f32 %v57, %v197
  %199 = vmatmul.bf16.gmra.mxu0 %v147
  %v200 = vpop.f32.mrf.mxu0
  %v201 = vadd.f32 %v62, %v200
  %v202 = vpop.f32.mrf.mxu0
  %v203 = vadd.f32 %v67, %v202
  %204 = vmatmul.bf16.gmra.mxu0 %v150
  %v205 = vpop.f32.mrf.mxu0
  %v206 = vadd.f32 %v72, %v205
  %v207 = vpop.f32.mrf.mxu0
  %v208 = vadd.f32 %v77, %v207
  %209 = vdwg.mxu0
  %v210 = vmax.f32 %v162, 0.0
  %v211 = vmax.f32 %v191, 0.0
  %v212 = vmax.f32 %v164, 0.0
  %v213 = vmax.f32 %v193, 0.0
  %v214 = vmax.f32 %v167, 0.0
  %v215 = vmax.f32 %v196, 0.0
  %v216 = vmax.f32 %v169, 0.0
  %v217 = vmax.f32 %v198, 0.0
  %v218 = vmax.f32 %v172, 0.0
  %v219 = vmax.f32 %v201, 0.0
  %v220 = vmax.f32 %v174, 0.0
  %v221 = vmax.f32 %v203, 0.0
  %v222 = vmax.f32 %v177, 0.0
  %v223 = vmax.f32 %v206, 0.0
  %v224 = vmax.f32 %v179, 0.0
  %v225 = vmax.f32 %v208, 0.0
  %v226 = vpack.c.bf16 %v211, %v210
  %v227 = vpack.c.bf16 %v213, %v212
  %v228 = vpack.c.bf16 %v215, %v214
  %v229 = vpack.c.bf16 %v217, %v216
  %v230 = vpack.c.bf16 %v219, %v218
  %v231 = vpack.c.bf16 %v221, %v220
  %v232 = vpack.c.bf16 %v223, %v222
  %v233 = vpack.c.bf16 %v225, %v224
  %234 = vst [vmem:[%s3] sm:$0xff] %v226
  %235 = vst [vmem:[%s3 + $0x8] sm:$0xff] %v227
  %236 = vst [vmem:[%s3 + $0x10] sm:$0xff] %v228
  %237 = vst [vmem:[%s3 + $0x18] sm:$0xff] %v229
  %238 = vst [vmem:[%s3 + $0x20] sm:$0xff] %v230
  %239 = vst [vmem:[%s3 + $0x28] sm:$0xff] %v231
  %240 = vst [vmem:[%s3 + $0x30] sm:$0xff] %v232
  %241 = vst [vmem:[%s3 + $0x38] sm:$0xff] %v233
  // Predicated region
  $region14: #{predictive_autoencoder.12} parent=0 // pred_check
    _
  $region15: #{predictive_autoencoder.12} parent=0 // pred_check_branch
    %243 = sbr.rel (0) target = $region17
  $region16: #{predictive_autoencoder.12} parent=0 // pred_region
    _
  $region17: #{predictive_autoencoder.12} parent=0 // pred_fallthru
    _
  // Predicated region
  $region18: #{predictive_autoencoder.12} parent=0 // pred_check
    _
  $region19: #{predictive_autoencoder.12} parent=0 // pred_check_branch
    %245 = sbr.rel (0) target = $region21
  $region20: #{predictive_autoencoder.12} parent=0 // pred_region
    _
  $region21: #{predictive_autoencoder.12} parent=0 // pred_fallthru
    _

// kernel: predictive_autoencoder.13
$region0: #{predictive_autoencoder.13}
  #allocation0 [shape = 'u32[]', space=smem, size = 0x4, offset = 0x4, fixed_abs, tag = 'smem constant byte address 0x4 - core index']
  #allocation1 [shape = 'u32[72,128]{1,0:T(1,128)}', space=vmem, size = 0x9000, scoped, tag = 'internal scratch']
  %s0 = inlined_call_operand.vmem [shape: bf16[4,144], index: 0, kind: input, shape index: {}]
  %s1 = inlined_call_operand.vmem [shape: bf16[144,896], index: 1, kind: input, shape index: {}]
  %s2 = inlined_call_operand.vmem [shape: f32[4,1], index: 2, kind: input, shape index: {}]
  %s3 = inlined_call_operand.vmem [shape: f32[4,896], index: 3, kind: output, shape index: {}]
  %s4 = sld [smem:[#allocation0]]
  $region22: #{predictive_autoencoder.13} parent=0
    _
  %s6 = ssub.s32 1, %s4
  %s7 = scalar_select 0, %s6, %s4
  // Predicated region
  $region2: #{predictive_autoencoder.13} parent=0 // pred_check
    _
  $region3: #{predictive_autoencoder.13} parent=0 // pred_check_branch
    %9 = sbr.rel (0) target = $region5
  $region4: #{predictive_autoencoder.13} parent=0 // pred_region
    _
  $region5: #{predictive_autoencoder.13} parent=0 // pred_fallthru
    _
  // Predicated region
  $region6: #{predictive_autoencoder.13} parent=0 // pred_check
    _
  $region7: #{predictive_autoencoder.13} parent=0 // pred_check_branch
    %11 = sbr.rel (0) target = $region9
  $region8: #{predictive_autoencoder.13} parent=0 // pred_region
    _
  $region9: #{predictive_autoencoder.13} parent=0 // pred_fallthru
    _
  // Predicated region
  $region10: #{predictive_autoencoder.13} parent=0 // pred_check
    _
  $region11: #{predictive_autoencoder.13} parent=0 // pred_check_branch
    %13 = sbr.rel (0) target = $region13
  $region12: #{predictive_autoencoder.13} parent=0 // pred_region
    _
  $region13: #{predictive_autoencoder.13} parent=0 // pred_fallthru
    _
  %v15 = vld [vmem:[%s0] sm:$0xf]
  %v16 = vld [vmem:[%s1] sm:$0xff]
  %v17 = vld [vmem:[%s1 + $0x8] sm:$0xff]
  %v18 = vld [vmem:[%s1 + $0x10] sm:$0xff]
  %v19 = vld [vmem:[%s1 + $0x18] sm:$0xf]
  %v20 = vld [vmem:[%s1 + $0x1c] sm:$0xff]
  %v21 = vld [vmem:[%s1 + $0x24] sm:$0xff]
  %v22 = vld [vmem:[%s1 + $0x2c] sm:$0xff]
  %v23 = vld [vmem:[%s1 + $0x34] sm:$0xf]
  %v24 = vld [vmem:[%s1 + $0x38] sm:$0xff]
  %v25 = vld [vmem:[%s1 + $0x40] sm:$0xff]
  %v26 = vld [vmem:[%s1 + $0x48] sm:$0xff]
  %v27 = vld [vmem:[%s1 + $0x50] sm:$0xf]
  %v28 = vld [vmem:[%s1 + $0x54] sm:$0xff]
  %v29 = vld [vmem:[%s1 + $0x5c] sm:$0xff]
  %v30 = vld [vmem:[%s1 + $0x64] sm:$0xff]
  %v31 = vld [vmem:[%s1 + $0x6c] sm:$0xf]
  %v32 = vld [vmem:[%s1 + $0x70] sm:$0xff]
  %v33 = vld [vmem:[%s1 + $0x78] sm:$0xff]
  %v34 = vld [vmem:[%s1 + $0x80] sm:$0xff]
  %v35 = vld [vmem:[%s1 + $0x88] sm:$0xf]
  %v36 = vld [vmem:[%s1 + $0x8c] sm:$0xff]
  %v37 = vld [vmem:[%s1 + $0x94] sm:$0xff]
  %v38 = vld [vmem:[%s1 + $0x9c] sm:$0xff]
  %v39 = vld [vmem:[%s1 + $0xa4] sm:$0xf]
  %v40 = vld [vmem:[%s1 + $0xa8] sm:$0xff]
  %v41 = vld [vmem:[%s1 + $0xb0] sm:$0xff]
  %v42 = vld [vmem:[%s1 + $0xb8] sm:$0xff]
  %v43 = vld [vmem:[%s1 + $0xc0] sm:$0xf]
  %v44 = vld [vmem:[%s1 + $0xc4] sm:$0xff]
  %v45 = vld [vmem:[%s1 + $0xcc] sm:$0xff]
  %v46 = vld [vmem:[%s1 + $0xd4] sm:$0xff]
  %v47 = vld [vmem:[%s1 + $0xdc] sm:$0xf]
  %v48 = vld [vmem:[%s1 + $0xe0] sm:$0xff]
  %v49 = vld [vmem:[%s1 + $0xe8] sm:$0xff]
  %v50 = vld [vmem:[%s1 + $0xf0] sm:$0xff]
  %v51 = vld [vmem:[%s1 + $0xf8] sm:$0xf]
  %v52 = vld [vmem:[%s1 + $0xfc] sm:$0xff]
  %v53 = vld [vmem:[%s1 + $0x104] sm:$0xff]
  %v54 = vld [vmem:[%s1 + $0x10c] sm:$0xff]
  %v55 = vld [vmem:[%s1 + $0x114] sm:$0xf]
  %v56 = vld [vmem:[%s1 + $0x118] sm:$0xff]
  %v57 = vld [vmem:[%s1 + $0x120] sm:$0xff]
  %v58 = vld [vmem:[%s1 + $0x128] sm:$0xff]
  %v59 = vld [vmem:[%s1 + $0x130] sm:$0xf]
  %v60 = vld [vmem:[%s1 + $0x134] sm:$0xff]
  %v61 = vld [vmem:[%s1 + $0x13c] sm:$0xff]
  %v62 = vld [vmem:[%s1 + $0x144] sm:$0xff]
  %v63 = vld [vmem:[%s1 + $0x14c] sm:$0xf]
  %v64 = vld [vmem:[%s1 + $0x150] sm:$0xff]
  %v65 = vld [vmem:[%s1 + $0x158] sm:$0xff]
  %v66 = vld [vmem:[%s1 + $0x160] sm:$0xff]
  %v67 = vld [vmem:[%s1 + $0x168] sm:$0xf]
  %v68 = vld [vmem:[%s1 + $0x16c] sm:$0xff]
  %v69 = vld [vmem:[%s1 + $0x174] sm:$0xff]
  %v70 = vld [vmem:[%s1 + $0x17c] sm:$0xff]
  %v71 = vld [vmem:[%s1 + $0x184] sm:$0xf]
  %v72 = vld [vmem:[%s1 + $0x188] sm:$0xff]
  %v73 = vld [vmem:[%s1 + $0x190] sm:$0xff]
  %v74 = vld [vmem:[%s1 + $0x198] sm:$0xff]
  %v75 = vld [vmem:[%s1 + $0x1a0] sm:$0xf]
  %v76 = vld [vmem:[%s1 + $0x1a4] sm:$0xff]
  %v77 = vld [vmem:[%s1 + $0x1ac] sm:$0xff]
  %v78 = vld [vmem:[%s1 + $0x1b4] sm:$0xff]
  %v79 = vld [vmem:[%s1 + $0x1bc] sm:$0xf]
  %v80 = vld [vmem:[%s1 + $0x1c0] sm:$0xff]
  %v81 = vld [vmem:[%s1 + $0x1c8] sm:$0xff]
  %v82 = vld [vmem:[%s1 + $0x1d0] sm:$0xff]
  %v83 = vld [vmem:[%s1 + $0x1d8] sm:$0xf]
  %v84 = vld [vmem:[%s1 + $0x1dc] sm:$0xff]
  %v85 = vld [vmem:[%s1 + $0x1e4] sm:$0xff]
  %v86 = vld [vmem:[%s1 + $0x1ec] sm:$0xff]
  %v87 = vld [vmem:[%s1 + $0x1f4] sm:$0xf]
  %v88 = vld [vmem:[%s2] sm:$0xf]
  %90 = vset.pattern.permute.xlu0 0
  %91 = vperm.xlu0 %90, %v88
  %v92 = vpop.permute.xlu0 %91
  %95 = vst [vmem:[#allocation1] ss:$4 sm:$0xff] %v15
  %v96 = vld.sshfl [vmem:[#allocation1] sm:$0xff pattern:$0x73625140]
  %v97 = vld.sshfl [vmem:[#allocation1 + $0x8] sm:$0xff pattern:$0x73625140]
  %v171 = vunpack.c.l.b16 %v16
  %v172 = vunpack.c.h.b16 %v16
  %v173 = vunpack.c.l.b16 %v17
  %v174 = vunpack.c.h.b16 %v17
  %v175 = vunpack.c.l.b16 %v18
  %v176 = vunpack.c.h.b16 %v18
  %v177 = vunpack.c.l.b16 %v19
  %v178 = vunpack.c.l.b16 %v20
  %v179 = vunpack.c.h.b16 %v20
  %v180 = vunpack.c.l.b16 %v21
  %v181 = vunpack.c.h.b16 %v21
  %v182 = vunpack.c.l.b16 %v22
  %v183 = vunpack.c.h.b16 %v22
  %v184 = vunpack.c.l.b16 %v23
  %v185 = vunpack.c.l.b16 %v24
  %v186 = vunpack.c.h.b16 %v24
  %v187 = vunpack.c.l.b16 %v25
  %v188 = vunpack.c.h.b16 %v25
  %v189 = vunpack.c.l.b16 %v26
  %v190 = vunpack.c.h.b16 %v26
  %v191 = vunpack.c.l.b16 %v27
  %v192 = vunpack.c.l.b16 %v28
  %v193 = vunpack.c.h.b16 %v28
  %v194 = vunpack.c.l.b16 %v29
  %v195 = vunpack.c.h.b16 %v29
  %v196 = vunpack.c.l.b16 %v30
  %v197 = vunpack.c.h.b16 %v30
  %v198 = vunpack.c.l.b16 %v31
  %v199 = vunpack.c.l.b16 %v32
  %v200 = vunpack.c.h.b16 %v32
  %v201 = vunpack.c.l.b16 %v33
  %v202 = vunpack.c.h.b16 %v33
  %v203 = vunpack.c.l.b16 %v34
  %v204 = vunpack.c.h.b16 %v34
  %v205 = vunpack.c.l.b16 %v35
  %v206 = vunpack.c.l.b16 %v36
  %v207 = vunpack.c.h.b16 %v36
  %v208 = vunpack.c.l.b16 %v37
  %v209 = vunpack.c.h.b16 %v37
  %v210 = vunpack.c.l.b16 %v38
  %v211 = vunpack.c.h.b16 %v38
  %v212 = vunpack.c.l.b16 %v39
  %v213 = vunpack.c.l.b16 %v40
  %v214 = vunpack.c.h.b16 %v40
  %v215 = vunpack.c.l.b16 %v41
  %v216 = vunpack.c.h.b16 %v41
  %v217 = vunpack.c.l.b16 %v42
  %v218 = vunpack.c.h.b16 %v42
  %v219 = vunpack.c.l.b16 %v43
  %v220 = vunpack.c.l.b16 %v44
  %v221 = vunpack.c.h.b16 %v44
  %v222 = vunpack.c.l.b16 %v45
  %v223 = vunpack.c.h.b16 %v45
  %v224 = vunpack.c.l.b16 %v46
  %v225 = vunpack.c.h.b16 %v46
  %v226 = vunpack.c.l.b16 %v47
  %v227 = vunpack.c.l.b16 %v48
  %v228 = vunpack.c.h.b16 %v48
  %v229 = vunpack.c.l.b16 %v49
  %v230 = vunpack.c.h.b16 %v49
  %v231 = vunpack.c.l.b16 %v50
  %v232 = vunpack.c.h.b16 %v50
  %v233 = vunpack.c.l.b16 %v51
  %v234 = vunpack.c.l.b16 %v52
  %v235 = vunpack.c.h.b16 %v52
  %v236 = vunpack.c.l.b16 %v53
  %v237 = vunpack.c.h.b16 %v53
  %v238 = vunpack.c.l.b16 %v54
  %v239 = vunpack.c.h.b16 %v54
  %v240 = vunpack.c.l.b16 %v55
  %v241 = vunpack.c.l.b16 %v56
  %v242 = vunpack.c.h.b16 %v56
  %v243 = vunpack.c.l.b16 %v57
  %v244 = vunpack.c.h.b16 %v57
  %v245 = vunpack.c.l.b16 %v58
  %v246 = vunpack.c.h.b16 %v58
  %v247 = vunpack.c.l.b16 %v59
  %v248 = vunpack.c.l.b16 %v60
  %v249 = vunpack.c.h.b16 %v60
  %v250 = vunpack.c.l.b16 %v61
  %v251 = vunpack.c.h.b16 %v61
  %v252 = vunpack.c.l.b16 %v62
  %v253 = vunpack.c.h.b16 %v62
  %v254 = vunpack.c.l.b16 %v63
  %v255 = vunpack.c.l.b16 %v64
  %v256 = vunpack.c.h.b16 %v64
  %v257 = vunpack.c.l.b16 %v65
  %v258 = vunpack.c.h.b16 %v65
  %v259 = vunpack.c.l.b16 %v66
  %v260 = vunpack.c.h.b16 %v66
  %v261 = vunpack.c.l.b16 %v67
  %v262 = vunpack.c.l.b16 %v68
  %v263 = vunpack.c.h.b16 %v68
  %v264 = vunpack.c.l.b16 %v69
  %v265 = vunpack.c.h.b16 %v69
  %v266 = vunpack.c.l.b16 %v70
  %v267 = vunpack.c.h.b16 %v70
  %v268 = vunpack.c.l.b16 %v71
  %v269 = vunpack.c.l.b16 %v72
  %v270 = vunpack.c.h.b16 %v72
  %v271 = vunpack.c.l.b16 %v73
  %v272 = vunpack.c.h.b16 %v73
  %v273 = vunpack.c.l.b16 %v74
  %v274 = vunpack.c.h.b16 %v74
  %v275 = vunpack.c.l.b16 %v75
  %v276 = vunpack.c.l.b16 %v76
  %v277 = vunpack.c.h.b16 %v76
  %v278 = vunpack.c.l.b16 %v77
  %v279 = vunpack.c.h.b16 %v77
  %v280 = vunpack.c.l.b16 %v78
  %v281 = vunpack.c.h.b16 %v78
  %v282 = vunpack.c.l.b16 %v79
  %v283 = vunpack.c.l.b16 %v80
  %v284 = vunpack.c.h.b16 %v80
  %v285 = vunpack.c.l.b16 %v81
  %v286 = vunpack.c.h.b16 %v81
  %v287 = vunpack.c.l.b16 %v82
  %v288 = vunpack.c.h.b16 %v82
  %v289 = vunpack.c.l.b16 %v83
  %v290 = vunpack.c.l.b16 %v84
  %v291 = vunpack.c.h.b16 %v84
  %v292 = vunpack.c.l.b16 %v85
  %v293 = vunpack.c.h.b16 %v85
  %v294 = vunpack.c.l.b16 %v86
  %v295 = vunpack.c.h.b16 %v86
  %v296 = vunpack.c.l.b16 %v87
  %v297 = vpack.c.b16 %v178, %v171
  %v298 = vpack.c.b16 %v179, %v172
  %v299 = vpack.c.b16 %v180, %v173
  %v300 = vpack.c.b16 %v181, %v174
  %v301 = vpack.c.b16 %v182, %v175
  %v302 = vpack.c.b16 %v183, %v176
  %v303 = vpack.c.b16 %v184, %v177
  %v304 = vpack.c.b16 %v192, %v185
  %v305 = vpack.c.b16 %v193, %v186
  %v306 = vpack.c.b16 %v194, %v187
  %v307 = vpack.c.b16 %v195, %v188
  %v308 = vpack.c.b16 %v196, %v189
  %v309 = vpack.c.b16 %v197, %v190
  %v310 = vpack.c.b16 %v198, %v191
  %v311 = vpack.c.b16 %v206, %v199
  %v312 = vpack.c.b16 %v207, %v200
  %v313 = vpack.c.b16 %v208, %v201
  %v314 = vpack.c.b16 %v209, %v202
  %v315 = vpack.c.b16 %v210, %v203
  %v316 = vpack.c.b16 %v211, %v204
  %v317 = vpack.c.b16 %v212, %v205
  %v318 = vpack.c.b16 %v220, %v213
  %v319 = vpack.c.b16 %v221, %v214
  %v320 = vpack.c.b16 %v222, %v215
  %v321 = vpack.c.b16 %v223, %v216
  %v322 = vpack.c.b16 %v224, %v217
  %v323 = vpack.c.b16 %v225, %v218
  %v324 = vpack.c.b16 %v226, %v219
  %v325 = vpack.c.b16 %v234, %v227
  %v326 = vpack.c.b16 %v235, %v228
  %v327 = vpack.c.b16 %v236, %v229
  %v328 = vpack.c.b16 %v237, %v230
  %v329 = vpack.c.b16 %v238, %v231
  %v330 = vpack.c.b16 %v239, %v232
  %v331 = vpack.c.b16 %v240, %v233
  %v332 = vpack.c.b16 %v248, %v241
  %v333 = vpack.c.b16 %v249, %v242
  %v334 = vpack.c.b16 %v250, %v243
  %v335 = vpack.c.b16 %v251, %v244
  %v336 = vpack.c.b16 %v252, %v245
  %v337 = vpack.c.b16 %v253, %v246
  %v338 = vpack.c.b16 %v254, %v247
  %v339 = vpack.c.b16 %v262, %v255
  %v340 = vpack.c.b16 %v263, %v256
  %v341 = vpack.c.b16 %v264, %v257
  %v342 = vpack.c.b16 %v265, %v258
  %v343 = vpack.c.b16 %v266, %v259
  %v344 = vpack.c.b16 %v267, %v260
  %v345 = vpack.c.b16 %v268, %v261
  %v346 = vpack.c.b16 %v276, %v269
  %v347 = vpack.c.b16 %v277, %v270
  %v348 = vpack.c.b16 %v278, %v271
  %v349 = vpack.c.b16 %v279, %v272
  %v350 = vpack.c.b16 %v280, %v273
  %v351 = vpack.c.b16 %v281, %v274
  %v352 = vpack.c.b16 %v282, %v275
  %v353 = vpack.c.b16 %v290, %v283
  %v354 = vpack.c.b16 %v291, %v284
  %v355 = vpack.c.b16 %v292, %v285
  %v356 = vpack.c.b16 %v293, %v286
  %v357 = vpack.c.b16 %v294, %v287
  %v358 = vpack.c.b16 %v295, %v288
  %v359 = vpack.c.b16 %v296, %v289
  %vm423 = vcmask 130048
  %v424 = vsel %vm423, %v97, 0
  %426 = vmatpush.bf16.msra.mxu0 %v346
  %427 = vmatpush.bf16.msra.mxu0 %v339
  %428 = vmatpush.bf16.msra.mxu0 %v332
  %429 = vmatpush.bf16.msra.mxu0 %v325
  %430 = vmatpush.bf16.msra.mxu0 %v318
  %431 = vmatpush.bf16.msra.mxu0 %v311
  %432 = vmatpush.bf16.msra.mxu0 %v304
  %433 = vmatpush.bf16.msra.mxu0 %v297
  %434 = vmatmul.bf16.gmra.mxu0 %v96
  %v435 = vpop.f32.mrf.mxu0
  %v436 = vadd.f32 %v92, %v435
  %v437 = vpop.f32.mrf.mxu0
  %438 = vdwg.mxu0
  %439 = vmatpush.bf16.msra.mxu0 0
  %440 = vmatpush.bf16.msra.mxu0 0
  %441 = vmatpush.bf16.msra.mxu0 0
  %442 = vmatpush.bf16.msra.mxu0 0
  %443 = vmatpush.bf16.msra.mxu0 0
  %444 = vmatpush.bf16.msra.mxu0 0
  %445 = vmatpush.bf16.msra.mxu0 0
  %446 = vmatpush.bf16.msra.mxu0 %v353
  %447 = vmatmul.bf16.gmra.mxu0 %v424
  %v448 = vpop.f32.mrf.mxu0
  %v449 = vadd.f32 %v436, %v448
  %v450 = vpop.f32.mrf.mxu0
  %451 = vdwg.mxu0
  %452 = vmatpush.bf16.msra.mxu0 %v347
  %453 = vmatpush.bf16.msra.mxu0 %v340
  %454 = vmatpush.bf16.msra.mxu0 %v333
  %455 = vmatpush.bf16.msra.mxu0 %v326
  %456 = vmatpush.bf16.msra.mxu0 %v319
  %457 = vmatpush.bf16.msra.mxu0 %v312
  %458 = vmatpush.bf16.msra.mxu0 %v305
  %459 = vmatpush.bf16.msra.mxu0 %v298
  %460 = vmatmul.bf16.gmra.mxu0 %v96
  %v461 = vpop.f32.mrf.mxu0
  %v462 = vadd.f32 %v92, %v461
  %v463 = vpop.f32.mrf.mxu0
  %464 = vdwg.mxu0
  %465 = vmatpush.bf16.msra.mxu0 0
  %466 = vmatpush.bf16.msra.mxu0 0
  %467 = vmatpush.bf16.msra.mxu0 0
  %468 = vmatpush.bf16.msra.mxu0 0
  %469 = vmatpush.bf16.msra.mxu0 0
  %470 = vmatpush.bf16.msra.mxu0 0
  %471 = vmatpush.bf16.msra.mxu0 0
  %472 = vmatpush.bf16.msra.mxu0 %v354
  %473 = vmatmul.bf16.gmra.mxu0 %v424
  %v474 = vpop.f32.mrf.mxu0
  %v475 = vadd.f32 %v462, %v474
  %v476 = vpop.f32.mrf.mxu0
  %477 = vdwg.mxu0
  %478 = vmatpush.bf16.msra.mxu0 %v348
  %479 = vmatpush.bf16.msra.mxu0 %v341
  %480 = vmatpush.bf16.msra.mxu0 %v334
  %481 = vmatpush.bf16.msra.mxu0 %v327
  %482 = vmatpush.bf16.msra.mxu0 %v320
  %483 = vmatpush.bf16.msra.mxu0 %v313
  %484 = vmatpush.bf16.msra.mxu0 %v306
  %485 = vmatpush.bf16.msra.mxu0 %v299
  %486 = vmatmul.bf16.gmra.mxu0 %v96
  %v487 = vpop.f32.mrf.mxu0
  %v488 = vadd.f32 %v92, %v487
  %v489 = vpop.f32.mrf.mxu0
  %490 = vdwg.mxu0
  %491 = vmatpush.bf16.msra.mxu0 0
  %492 = vmatpush.bf16.msra.mxu0 0
  %493 = vmatpush.bf16.msra.mxu0 0
  %494 = vmatpush.bf16.msra.mxu0 0
  %495 = vmatpush.bf16.msra.mxu0 0
  %496 = vmatpush.bf16.msra.mxu0 0
  %497 = vmatpush.bf16.msra.mxu0 0
  %498 = vmatpush.bf16.msra.mxu0 %v355
  %499 = vmatmul.bf16.gmra.mxu0 %v424
  %v500 = vpop.f32.mrf.mxu0
  %v501 = vadd.f32 %v488, %v500
  %v502 = vpop.f32.mrf.mxu0
  %503 = vdwg.mxu0
  %504 = vmatpush.bf16.msra.mxu0 %v349
  %505 = vmatpush.bf16.msra.mxu0 %v342
  %506 = vmatpush.bf16.msra.mxu0 %v335
  %507 = vmatpush.bf16.msra.mxu0 %v328
  %508 = vmatpush.bf16.msra.mxu0 %v321
  %509 = vmatpush.bf16.msra.mxu0 %v314
  %510 = vmatpush.bf16.msra.mxu0 %v307
  %511 = vmatpush.bf16.msra.mxu0 %v300
  %512 = vmatmul.bf16.gmra.mxu0 %v96
  %v513 = vpop.f32.mrf.mxu0
  %v514 = vadd.f32 %v92, %v513
  %v515 = vpop.f32.mrf.mxu0
  %516 = vdwg.mxu0
  %517 = vmatpush.bf16.msra.mxu0 0
  %518 = vmatpush.bf16.msra.mxu0 0
  %519 = vmatpush.bf16.msra.mxu0 0
  %520 = vmatpush.bf16.msra.mxu0 0
  %521 = vmatpush.bf16.msra.mxu0 0
  %522 = vmatpush.bf16.msra.mxu0 0
  %523 = vmatpush.bf16.msra.mxu0 0
  %524 = vmatpush.bf16.msra.mxu0 %v356
  %525 = vmatmul.bf16.gmra.mxu0 %v424
  %v526 = vpop.f32.mrf.mxu0
  %v527 = vadd.f32 %v514, %v526
  %v528 = vpop.f32.mrf.mxu0
  %529 = vdwg.mxu0
  %530 = vmatpush.bf16.msra.mxu0 %v350
  %531 = vmatpush.bf16.msra.mxu0 %v343
  %532 = vmatpush.bf16.msra.mxu0 %v336
  %533 = vmatpush.bf16.msra.mxu0 %v329
  %534 = vmatpush.bf16.msra.mxu0 %v322
  %535 = vmatpush.bf16.msra.mxu0 %v315
  %536 = vmatpush.bf16.msra.mxu0 %v308
  %537 = vmatpush.bf16.msra.mxu0 %v301
  %538 = vmatmul.bf16.gmra.mxu0 %v96
  %v539 = vpop.f32.mrf.mxu0
  %v540 = vadd.f32 %v92, %v539
  %v541 = vpop.f32.mrf.mxu0
  %542 = vdwg.mxu0
  %543 = vmatpush.bf16.msra.mxu0 0
  %544 = vmatpush.bf16.msra.mxu0 0
  %545 = vmatpush.bf16.msra.mxu0 0
  %546 = vmatpush.bf16.msra.mxu0 0
  %547 = vmatpush.bf16.msra.mxu0 0
  %548 = vmatpush.bf16.msra.mxu0 0
  %549 = vmatpush.bf16.msra.mxu0 0
  %550 = vmatpush.bf16.msra.mxu0 %v357
  %551 = vmatmul.bf16.gmra.mxu0 %v424
  %v552 = vpop.f32.mrf.mxu0
  %v553 = vadd.f32 %v540, %v552
  %v554 = vpop.f32.mrf.mxu0
  %555 = vdwg.mxu0
  %556 = vmatpush.bf16.msra.mxu0 %v351
  %557 = vmatpush.bf16.msra.mxu0 %v344
  %558 = vmatpush.bf16.msra.mxu0 %v337
  %559 = vmatpush.bf16.msra.mxu0 %v330
  %560 = vmatpush.bf16.msra.mxu0 %v323
  %561 = vmatpush.bf16.msra.mxu0 %v316
  %562 = vmatpush.bf16.msra.mxu0 %v309
  %563 = vmatpush.bf16.msra.mxu0 %v302
  %564 = vmatmul.bf16.gmra.mxu0 %v96
  %v565 = vpop.f32.mrf.mxu0
  %v566 = vadd.f32 %v92, %v565
  %v567 = vpop.f32.mrf.mxu0
  %568 = vdwg.mxu0
  %569 = vmatpush.bf16.msra.mxu0 0
  %570 = vmatpush.bf16.msra.mxu0 0
  %571 = vmatpush.bf16.msra.mxu0 0
  %572 = vmatpush.bf16.msra.mxu0 0
  %573 = vmatpush.bf16.msra.mxu0 0
  %574 = vmatpush.bf16.msra.mxu0 0
  %575 = vmatpush.bf16.msra.mxu0 0
  %576 = vmatpush.bf16.msra.mxu0 %v358
  %577 = vmatmul.bf16.gmra.mxu0 %v424
  %v578 = vpop.f32.mrf.mxu0
  %v579 = vadd.f32 %v566, %v578
  %v580 = vpop.f32.mrf.mxu0
  %581 = vdwg.mxu0
  %582 = vmatpush.bf16.msra.mxu0 %v352
  %583 = vmatpush.bf16.msra.mxu0 %v345
  %584 = vmatpush.bf16.msra.mxu0 %v338
  %585 = vmatpush.bf16.msra.mxu0 %v331
  %586 = vmatpush.bf16.msra.mxu0 %v324
  %587 = vmatpush.bf16.msra.mxu0 %v317
  %588 = vmatpush.bf16.msra.mxu0 %v310
  %589 = vmatpush.bf16.msra.mxu0 %v303
  %590 = vmatmul.bf16.gmra.mxu0 %v96
  %v591 = vpop.f32.mrf.mxu0
  %v592 = vadd.f32 %v92, %v591
  %v593 = vpop.f32.mrf.mxu0
  %594 = vdwg.mxu0
  %595 = vmatpush.bf16.msra.mxu0 0
  %596 = vmatpush.bf16.msra.mxu0 0
  %597 = vmatpush.bf16.msra.mxu0 0
  %598 = vmatpush.bf16.msra.mxu0 0
  %599 = vmatpush.bf16.msra.mxu0 0
  %600 = vmatpush.bf16.msra.mxu0 0
  %601 = vmatpush.bf16.msra.mxu0 0
  %602 = vmatpush.bf16.msra.mxu0 %v359
  %603 = vmatmul.bf16.gmra.mxu0 %v424
  %v604 = vpop.f32.mrf.mxu0
  %v605 = vadd.f32 %v592, %v604
  %v606 = vpop.f32.mrf.mxu0
  %607 = vdwg.mxu0
  %v608 = vxor.u32 %v449, 2147483648
  %v609 = vxor.u32 %v475, 2147483648
  %v610 = vxor.u32 %v501, 2147483648
  %v611 = vxor.u32 %v527, 2147483648
  %v612 = vxor.u32 %v553, 2147483648
  %v613 = vxor.u32 %v579, 2147483648
  %v614 = vxor.u32 %v605, 2147483648
  %v615 = vmul.f32 %v608, 1.442695
  %v616 = vpow.pop %v615
  %v617 = vmul.f32 %v609, 1.442695
  %v618 = vpow.pop %v617
  %v619 = vmul.f32 %v610, 1.442695
  %v620 = vpow.pop %v619
  %v621 = vmul.f32 %v611, 1.442695
  %v622 = vpow.pop %v621
  %v623 = vmul.f32 %v612, 1.442695
  %v624 = vpow.pop %v623
  %v625 = vmul.f32 %v613, 1.442695
  %v626 = vpow.pop %v625
  %v627 = vmul.f32 %v614, 1.442695
  %v628 = vpow.pop %v627
  %v629 = vadd.f32 %v616, 1.0
  %v630 = vadd.f32 %v618, 1.0
  %v631 = vadd.f32 %v620, 1.0
  %v632 = vadd.f32 %v622, 1.0
  %v633 = vadd.f32 %v624, 1.0
  %v634 = vadd.f32 %v626, 1.0
  %v635 = vadd.f32 %v628, 1.0
  %v636 = vrcp.pop %v629
  %v637 = vmul.f32 %v629, %v636
  %v638 = vsub.f32 1.0, %v637
  %v639 = vmul.f32 %v636, %v638
  %v640 = vadd.f32 %v636, %v639
  %vm641 = vweird.f32 %v629
  %vm642 = vweird.f32 %v636
  %vm643 = vmor %vm641, %vm642
  %v644 = vsel %vm643, %v636, %v640
  %v645 = vand.u32 2147483647, %v629
  %vm646 = vcmp.eq.f32.partialorder %v645, 8.507059e+37
  %v647 = vand.u32 %v629, 2147483648
  %v648 = vor.u32 1.1754944e-38, %v647
  %v649 = vsel %vm646, %v648, %v644
  %v650 = vmul.f32 1.0, %v649
  %v651 = vrcp.pop %v630
  %v652 = vmul.f32 %v630, %v651
  %v653 = vsub.f32 1.0, %v652
  %v654 = vmul.f32 %v651, %v653
  %v655 = vadd.f32 %v651, %v654
  %vm656 = vweird.f32 %v630
  %vm657 = vweird.f32 %v651
  %vm658 = vmor %vm656, %vm657
  %v659 = vsel %vm658, %v651, %v655
  %v660 = vand.u32 2147483647, %v630
  %vm661 = vcmp.eq.f32.partialorder %v660, 8.507059e+37
  %v662 = vand.u32 %v630, 2147483648
  %v663 = vor.u32 1.1754944e-38, %v662
  %v664 = vsel %vm661, %v663, %v659
  %v665 = vmul.f32 1.0, %v664
  %v666 = vrcp.pop %v631
  %v667 = vmul.f32 %v631, %v666
  %v668 = vsub.f32 1.0, %v667
  %v669 = vmul.f32 %v666, %v668
  %v670 = vadd.f32 %v666, %v669
  %vm671 = vweird.f32 %v631
  %vm672 = vweird.f32 %v666
  %vm673 = vmor %vm671, %vm672
  %v674 = vsel %vm673, %v666, %v670
  %v675 = vand.u32 2147483647, %v631
  %vm676 = vcmp.eq.f32.partialorder %v675, 8.507059e+37
  %v677 = vand.u32 %v631, 2147483648
  %v678 = vor.u32 1.1754944e-38, %v677
  %v679 = vsel %vm676, %v678, %v674
  %v680 = vmul.f32 1.0, %v679
  %v681 = vrcp.pop %v632
  %v682 = vmul.f32 %v632, %v681
  %v683 = vsub.f32 1.0, %v682
  %v684 = vmul.f32 %v681, %v683
  %v685 = vadd.f32 %v681, %v684
  %vm686 = vweird.f32 %v632
  %vm687 = vweird.f32 %v681
  %vm688 = vmor %vm686, %vm687
  %v689 = vsel %vm688, %v681, %v685
  %v690 = vand.u32 2147483647, %v632
  %vm691 = vcmp.eq.f32.partialorder %v690, 8.507059e+37
  %v692 = vand.u32 %v632, 2147483648
  %v693 = vor.u32 1.1754944e-38, %v692
  %v694 = vsel %vm691, %v693, %v689
  %v695 = vmul.f32 1.0, %v694
  %v696 = vrcp.pop %v633
  %v697 = vmul.f32 %v633, %v696
  %v698 = vsub.f32 1.0, %v697
  %v699 = vmul.f32 %v696, %v698
  %v700 = vadd.f32 %v696, %v699
  %vm701 = vweird.f32 %v633
  %vm702 = vweird.f32 %v696
  %vm703 = vmor %vm701, %vm702
  %v704 = vsel %vm703, %v696, %v700
  %v705 = vand.u32 2147483647, %v633
  %vm706 = vcmp.eq.f32.partialorder %v705, 8.507059e+37
  %v707 = vand.u32 %v633, 2147483648
  %v708 = vor.u32 1.1754944e-38, %v707
  %v709 = vsel %vm706, %v708, %v704
  %v710 = vmul.f32 1.0, %v709
  %v711 = vrcp.pop %v634
  %v712 = vmul.f32 %v634, %v711
  %v713 = vsub.f32 1.0, %v712
  %v714 = vmul.f32 %v711, %v713
  %v715 = vadd.f32 %v711, %v714
  %vm716 = vweird.f32 %v634
  %vm717 = vweird.f32 %v711
  %vm718 = vmor %vm716, %vm717
  %v719 = vsel %vm718, %v711, %v715
  %v720 = vand.u32 2147483647, %v634
  %vm721 = vcmp.eq.f32.partialorder %v720, 8.507059e+37
  %v722 = vand.u32 %v634, 2147483648
  %v723 = vor.u32 1.1754944e-38, %v722
  %v724 = vsel %vm721, %v723, %v719
  %v725 = vmul.f32 1.0, %v724
  %v726 = vrcp.pop %v635
  %v727 = vmul.f32 %v635, %v726
  %v728 = vsub.f32 1.0, %v727
  %v729 = vmul.f32 %v726, %v728
  %v730 = vadd.f32 %v726, %v729
  %vm731 = vweird.f32 %v635
  %vm732 = vweird.f32 %v726
  %vm733 = vmor %vm731, %vm732
  %v734 = vsel %vm733, %v726, %v730
  %v735 = vand.u32 2147483647, %v635
  %vm736 = vcmp.eq.f32.partialorder %v735, 8.507059e+37
  %v737 = vand.u32 %v635, 2147483648
  %v738 = vor.u32 1.1754944e-38, %v737
  %v739 = vsel %vm736, %v738, %v734
  %v740 = vmul.f32 1.0, %v739
  %v747 = vrot.slane %v665, 4
  %v748 = vrot.slane %v695, 4
  %v749 = vrot.slane %v725, 4
  %vm750 = vcmask 1043456
  %v751 = vsel %vm750, %v650, %v747
  %v752 = vsel %vm750, %v680, %v748
  %v753 = vsel %vm750, %v710, %v749
  %757 = vst [vmem:[%s3] sm:$0xff] %v751
  %758 = vst [vmem:[%s3 + $0x8] sm:$0xff] %v752
  %759 = vst [vmem:[%s3 + $0x10] sm:$0xff] %v753
  %760 = vst [vmem:[%s3 + $0x18] sm:$0xf] %v740
  // Predicated region
  $region14: #{predictive_autoencoder.13} parent=0 // pred_check
    _
  $region15: #{predictive_autoencoder.13} parent=0 // pred_check_branch
    %762 = sbr.rel (0) target = $region17
  $region16: #{predictive_autoencoder.13} parent=0 // pred_region
    _
  $region17: #{predictive_autoencoder.13} parent=0 // pred_fallthru
    _
  // Predicated region
  $region18: #{predictive_autoencoder.13} parent=0 // pred_check
    _
  $region19: #{predictive_autoencoder.13} parent=0 // pred_check_branch
    %764 = sbr.rel (0) target = $region21
  $region20: #{predictive_autoencoder.13} parent=0 // pred_region
    _
  $region21: #{predictive_autoencoder.13} parent=0 // pred_fallthru
    _

</llo_original>
